<compile_context>
chip_gen: v7x
topology: tpu7x:2x2x1
jax: 0.10.0
libtpu: 0.0.40
codegen_flags: <defaults>
</compile_context>

<pallas_src>
import numpy as np
import jax
import jax.numpy as jnp
from jax import lax
from jax.experimental import pallas as pl
from jax.experimental.pallas import tpu as pltpu

KS = 5     # conv kernel size
PAD = 2    # conv padding
LANE = 128


def input_block_forward(x, weight, bias, gamma, beta, running_mean,
                        running_var, eps=1e-5):
    """x: (N, Cin, D, H, W) f32; weight: (Cout, Cin, 5, 5, 5) f32 -> NCDHW f32."""
    N, Cin, D, H, W = x.shape
    Cout = weight.shape[0]
    Dp, Hp, Wp = D + 2 * PAD, H + 2 * PAD, W + 2 * PAD
    P = Hp * Wp                       # flattened padded plane (on lanes)
    HW = H * W
    K = KS * KS * KS * Cin            # im2col contraction depth (500 for Cin=4)
    max_off = (KS - 1) * Wp + (KS - 1)
    # Lane-pad the flat plane so every shifted window read stays in bounds.
    L = ((P + max_off + LANE - 1) // LANE) * LANE

    # ---- wrapper glue: NCDHW -> (N, Dp, Cin, L) padded bf16; fold bias + BN ----
    x_t = jnp.transpose(x, (0, 2, 1, 3, 4))                        # (N, D, Cin, H, W)
    x_p = jnp.pad(x_t, ((0, 0), (PAD, PAD), (0, 0), (PAD, PAD), (PAD, PAD)))
    x_p = x_p.reshape(N, Dp, Cin, P)
    x_p = jnp.pad(x_p, ((0, 0), (0, 0), (0, 0), (0, L - P))).astype(jnp.bfloat16)

    bn_scale = gamma / jnp.sqrt(running_var + eps)                 # (Cout,)
    w_folded = weight * bn_scale[:, None, None, None, None]        # exact scale fold
    # (Cout, Cin, kd, kh, kw) -> (Cout, kd, kh, kw, Cin) -> lane-dense (Cout, K)
    w2d = jnp.transpose(w_folded, (0, 2, 3, 4, 1)).reshape(Cout, K).astype(jnp.bfloat16)
    shift = (beta + (bias - running_mean) * bn_scale).reshape(Cout, 1).astype(jnp.float32)

    def kernel(x_ref, w_ref, shift_ref, o_ref, cols_ref):
        # x_ref    : (Dp, Cin, L) bf16   whole padded sample, flat planes on lanes
        # w_ref    : (Cout, K)  bf16     BN-folded weights, tap-major K
        # shift_ref: (Cout, 1)  f32      folded conv-bias + BN shift
        # o_ref    : (Cout, D*H*W) f32   flattened NCDHW output for this sample
        # cols_ref : (K, P) bf16 VMEM    per-plane im2col scratch
        shift_v = shift_ref[...]                                   # (Cout, 1)

        def one_plane(d, carry):
            # Build the im2col ONCE per plane: row (tap*Cin + ci) holds the input
            # plane at depth d+kd, lane-shifted by (kh*Wp + kw).
            for kd in range(KS):
                plane = x_ref[d + kd]                              # (Cin, L) bf16
                for kh in range(KS):
                    for kw in range(KS):
                        off = kh * Wp + kw
                        tap = (kd * KS + kh) * KS + kw
                        cols_ref[tap * Cin:(tap + 1) * Cin, :] = plane[:, off:off + P]
            # Single deep-K MXU matmul per plane; f32 accumulation inside the MXU.
            # (Mosaic tiles the K=500 contraction per-chip: 128-deep on v5e,
            #  256-deep on v6e/v7x.)
            acc = jnp.dot(w_ref[...], cols_ref[...],
                          preferred_element_type=jnp.float32)      # (Cout, P)
            y = jnp.maximum(acc + shift_v, 0.0)                    # fused bias/BN + ReLU
            # Drop the W-halo columns (p = h*Wp + w, keep w < W): one small lane
            # compaction per plane on a (Cout, .) tile instead of 125 input relayouts.
            yv = jnp.concatenate([y[:, h * Wp:h * Wp + W] for h in range(H)],
                                 axis=1)                           # (Cout, H*W)
            d_off = pl.multiple_of(d * HW, HW)
            o_ref[:, pl.ds(d_off, HW)] = yv.astype(o_ref.dtype)    # lane-dense store
            return carry

        lax.fori_loop(0, D, one_plane, 0)

    out_flat = pl.pallas_call(
        kernel,
        out_shape=jax.ShapeDtypeStruct((N, Cout, D * H * W), jnp.float32),
        grid=(N,),
        in_specs=[
            pl.BlockSpec((None, Dp, Cin, L), lambda n: (n, 0, 0, 0)),  # one sample
            pl.BlockSpec((Cout, K), lambda n: (0, 0)),                 # resident weights
            pl.BlockSpec((Cout, 1), lambda n: (0, 0)),                 # resident shift
        ],
        out_specs=pl.BlockSpec((None, Cout, D * H * W), lambda n: (n, 0, 0)),
        scratch_shapes=[pltpu.VMEM((K, P), jnp.bfloat16)],             # im2col scratch
        compiler_params=pltpu.CompilerParams(
            dimension_semantics=("parallel",),       # both TCs busy on v7x (N>=2)
            vmem_limit_bytes=32 * 1024 * 1024),      # ~1.5 MB used; safe on v5e..v7x
    )(x_p, w2d, shift)

    return out_flat.reshape(N, Cout, D, H, W)        # free reshape to NCDHW


def reference_forward(x, weight, bias, gamma, beta, running_mean,
                      running_var, eps=1e-5):
    """Pure-JAX f32 reference: Conv3d(k=5, pad=2) -> BatchNorm3d(eval) -> ReLU."""
    conv = jax.lax.conv_general_dilated(
        x, weight, window_strides=(1, 1, 1),
        padding=((2, 2), (2, 2), (2, 2)),
        dimension_numbers=('NCDHW', 'OIDHW', 'NCDHW'))
    conv = conv + bias.reshape(1, -1, 1, 1, 1)
    inv = gamma / jnp.sqrt(running_var + eps)
    y = (conv - running_mean.reshape(1, -1, 1, 1, 1)) * inv.reshape(1, -1, 1, 1, 1) \
        + beta.reshape(1, -1, 1, 1, 1)
    return jnp.maximum(y, 0.0)


if __name__ == "__main__":
    key = jax.random.PRNGKey(0)
    # Small shapes: batch=2, in_ch=4, out_ch=8, spatial=16^3.
    N, Cin, Cout, S = 2, 4, 8, 16
    kx, kw, kb, kg, kbe, km, kv = jax.random.split(key, 7)

    x = jax.random.normal(kx, (N, Cin, S, S, S), jnp.float32)
    weight = 0.05 * jax.random.normal(kw, (Cout, Cin, 5, 5, 5), jnp.float32)
    bias = 0.1 * jax.random.normal(kb, (Cout,), jnp.float32)
    gamma = 1.0 + 0.1 * jax.random.normal(kg, (Cout,), jnp.float32)
    beta = 0.1 * jax.random.normal(kbe, (Cout,), jnp.float32)
    running_mean = 0.1 * jax.random.normal(km, (Cout,), jnp.float32)
    running_var = jnp.abs(jax.random.normal(kv, (Cout,), jnp.float32)) + 0.5

    fwd = jax.jit(input_block_forward)
    out = fwd(x, weight, bias, gamma, beta, running_mean, running_var)
    out = jax.block_until_ready(out)

    ref = reference_forward(x, weight, bias, gamma, beta,
                            running_mean, running_var)
    ref = jax.block_until_ready(ref)

    # bf16 matmul operands (f32 accumulation) -> slightly loose tolerance vs f32 ref.
    np.testing.assert_allclose(np.asarray(out), np.asarray(ref),
                               rtol=3e-2, atol=3e-2)
    print("KERNEL_OK")
</pallas_src>

<mosaic_0001>
module attributes {stable_mosaic.version = 11 : i64} {
  func.func @kernel(%arg0: i32, %arg1: memref<1x20x4x512xbf16, #tpu.memory_space<vmem>>, %arg2: memref<8x500xbf16, #tpu.memory_space<vmem>>, %arg3: memref<8x1xf32, #tpu.memory_space<vmem>>, %arg4: memref<1x8x4096xf32, #tpu.memory_space<vmem>>, %arg5: memref<500x400xbf16, #tpu.memory_space<vmem>>) attributes {dimension_semantics = [#tpu.dimension_semantics<parallel>], iteration_bounds = array<i64: 2>, scalar_prefetch = 0 : i64, scratch_operands = 1 : i64, tpu.core_type = #tpu.core_type<tc>, window_params = [{transform_indices = @transform_0, window_bounds = array<i64: 1, 20, 4, 512>}, {pipeline_mode = #tpu.pipeline_mode<synchronous>, transform_indices = @transform_1, window_bounds = array<i64: 8, 500>}, {pipeline_mode = #tpu.pipeline_mode<synchronous>, transform_indices = @transform_2, window_bounds = array<i64: 8, 1>}, {transform_indices = @transform_3, window_bounds = array<i64: 1, 8, 4096>}]} {
    %c0 = arith.constant 0 : index
    %c0_0 = arith.constant 0 : index
    %0 = vector.load %arg3[%c0, %c0_0] : memref<8x1xf32, #tpu.memory_space<vmem>>, vector<8x1xf32>
    %c0_i32 = arith.constant 0 : i32
    %c16_i32 = arith.constant 16 : i32
    %1 = arith.addi %c0_i32, %c16_i32 : i32
    %c1_i32 = arith.constant 1 : i32
    scf.for %arg6 = %c0_i32 to %1 step %c1_i32  : i32 {
      %c0_i32_2 = arith.constant 0 : i32
      %2 = arith.addi %arg6, %c0_i32_2 : i32
      %c0_3 = arith.constant 0 : index
      %3 = arith.index_cast %2 : i32 to index
      %c0_4 = arith.constant 0 : index
      %c0_5 = arith.constant 0 : index
      %4 = vector.load %arg1[%c0_3, %3, %c0_4, %c0_5] : memref<1x20x4x512xbf16, #tpu.memory_space<vmem>>, vector<1x1x4x512xbf16>
      %5 = vector.shape_cast %4 : vector<1x1x4x512xbf16> to vector<4x512xbf16>
      %6 = vector.extract_strided_slice %5 {offsets = [0, 0], sizes = [4, 400], strides = [1, 1]} : vector<4x512xbf16> to vector<4x400xbf16>
      %c0_6 = arith.constant 0 : index
      %c0_7 = arith.constant 0 : index
      %7 = vector.load %arg5[%c0_6, %c0_7] : memref<500x400xbf16, #tpu.memory_space<vmem>>, vector<4x400xbf16>
      tpu.vector_store %arg5[%c0_6, %c0_7], %6 {strides = array<i32>} : memref<500x400xbf16, #tpu.memory_space<vmem>>, vector<4x400xbf16>,
      %8 = vector.extract_strided_slice %5 {offsets = [0, 1], sizes = [4, 400], strides = [1, 1]} : vector<4x512xbf16> to vector<4x400xbf16>
      %c4 = arith.constant 4 : index
      %c0_8 = arith.constant 0 : index
      %9 = vector.load %arg5[%c4, %c0_8] : memref<500x400xbf16, #tpu.memory_space<vmem>>, vector<4x400xbf16>
      tpu.vector_store %arg5[%c4, %c0_8], %8 {strides = array<i32>} : memref<500x400xbf16, #tpu.memory_space<vmem>>, vector<4x400xbf16>,
      %10 = vector.extract_strided_slice %5 {offsets = [0, 2], sizes = [4, 400], strides = [1, 1]} : vector<4x512xbf16> to vector<4x400xbf16>
      %c8 = arith.constant 8 : index
      %c0_9 = arith.constant 0 : index
      %11 = vector.load %arg5[%c8, %c0_9] : memref<500x400xbf16, #tpu.memory_space<vmem>>, vector<4x400xbf16>
      tpu.vector_store %arg5[%c8, %c0_9], %10 {strides = array<i32>} : memref<500x400xbf16, #tpu.memory_space<vmem>>, vector<4x400xbf16>,
      %12 = vector.extract_strided_slice %5 {offsets = [0, 3], sizes = [4, 400], strides = [1, 1]} : vector<4x512xbf16> to vector<4x400xbf16>
      %c12 = arith.constant 12 : index
      %c0_10 = arith.constant 0 : index
      %13 = vector.load %arg5[%c12, %c0_10] : memref<500x400xbf16, #tpu.memory_space<vmem>>, vector<4x400xbf16>
      tpu.vector_store %arg5[%c12, %c0_10], %12 {strides = array<i32>} : memref<500x400xbf16, #tpu.memory_space<vmem>>, vector<4x400xbf16>,
      %14 = vector.extract_strided_slice %5 {offsets = [0, 4], sizes = [4, 400], strides = [1, 1]} : vector<4x512xbf16> to vector<4x400xbf16>
      %c16 = arith.constant 16 : index
      %c0_11 = arith.constant 0 : index
      %15 = vector.load %arg5[%c16, %c0_11] : memref<500x400xbf16, #tpu.memory_space<vmem>>, vector<4x400xbf16>
      tpu.vector_store %arg5[%c16, %c0_11], %14 {strides = array<i32>} : memref<500x400xbf16, #tpu.memory_space<vmem>>, vector<4x400xbf16>,
      %16 = vector.extract_strided_slice %5 {offsets = [0, 20], sizes = [4, 400], strides = [1, 1]} : vector<4x512xbf16> to vector<4x400xbf16>
      %c20 = arith.constant 20 : index
      %c0_12 = arith.constant 0 : index
      %17 = vector.load %arg5[%c20, %c0_12] : memref<500x400xbf16, #tpu.memory_space<vmem>>, vector<4x400xbf16>
      tpu.vector_store %arg5[%c20, %c0_12], %16 {strides = array<i32>} : memref<500x400xbf16, #tpu.memory_space<vmem>>, vector<4x400xbf16>,
      %18 = vector.extract_strided_slice %5 {offsets = [0, 21], sizes = [4, 400], strides = [1, 1]} : vector<4x512xbf16> to vector<4x400xbf16>
      %c24 = arith.constant 24 : index
      %c0_13 = arith.constant 0 : index
      %19 = vector.load %arg5[%c24, %c0_13] : memref<500x400xbf16, #tpu.memory_space<vmem>>, vector<4x400xbf16>
      tpu.vector_store %arg5[%c24, %c0_13], %18 {strides = array<i32>} : memref<500x400xbf16, #tpu.memory_space<vmem>>, vector<4x400xbf16>,
      %20 = vector.extract_strided_slice %5 {offsets = [0, 22], sizes = [4, 400], strides = [1, 1]} : vector<4x512xbf16> to vector<4x400xbf16>
      %c28 = arith.constant 28 : index
      %c0_14 = arith.constant 0 : index
      %21 = vector.load %arg5[%c28, %c0_14] : memref<500x400xbf16, #tpu.memory_space<vmem>>, vector<4x400xbf16>
      tpu.vector_store %arg5[%c28, %c0_14], %20 {strides = array<i32>} : memref<500x400xbf16, #tpu.memory_space<vmem>>, vector<4x400xbf16>,
      %22 = vector.extract_strided_slice %5 {offsets = [0, 23], sizes = [4, 400], strides = [1, 1]} : vector<4x512xbf16> to vector<4x400xbf16>
      %c32 = arith.constant 32 : index
      %c0_15 = arith.constant 0 : index
      %23 = vector.load %arg5[%c32, %c0_15] : memref<500x400xbf16, #tpu.memory_space<vmem>>, vector<4x400xbf16>
      tpu.vector_store %arg5[%c32, %c0_15], %22 {strides = array<i32>} : memref<500x400xbf16, #tpu.memory_space<vmem>>, vector<4x400xbf16>,
      %24 = vector.extract_strided_slice %5 {offsets = [0, 24], sizes = [4, 400], strides = [1, 1]} : vector<4x512xbf16> to vector<4x400xbf16>
      %c36 = arith.constant 36 : index
      %c0_16 = arith.constant 0 : index
      %25 = vector.load %arg5[%c36, %c0_16] : memref<500x400xbf16, #tpu.memory_space<vmem>>, vector<4x400xbf16>
      tpu.vector_store %arg5[%c36, %c0_16], %24 {strides = array<i32>} : memref<500x400xbf16, #tpu.memory_space<vmem>>, vector<4x400xbf16>,
      %26 = vector.extract_strided_slice %5 {offsets = [0, 40], sizes = [4, 400], strides = [1, 1]} : vector<4x512xbf16> to vector<4x400xbf16>
      %c40 = arith.constant 40 : index
      %c0_17 = arith.constant 0 : index
      %27 = vector.load %arg5[%c40, %c0_17] : memref<500x400xbf16, #tpu.memory_space<vmem>>, vector<4x400xbf16>
      tpu.vector_store %arg5[%c40, %c0_17], %26 {strides = array<i32>} : memref<500x400xbf16, #tpu.memory_space<vmem>>, vector<4x400xbf16>,
      %28 = vector.extract_strided_slice %5 {offsets = [0, 41], sizes = [4, 400], strides = [1, 1]} : vector<4x512xbf16> to vector<4x400xbf16>
      %c44 = arith.constant 44 : index
      %c0_18 = arith.constant 0 : index
      %29 = vector.load %arg5[%c44, %c0_18] : memref<500x400xbf16, #tpu.memory_space<vmem>>, vector<4x400xbf16>
      tpu.vector_store %arg5[%c44, %c0_18], %28 {strides = array<i32>} : memref<500x400xbf16, #tpu.memory_space<vmem>>, vector<4x400xbf16>,
      %30 = vector.extract_strided_slice %5 {offsets = [0, 42], sizes = [4, 400], strides = [1, 1]} : vector<4x512xbf16> to vector<4x400xbf16>
      %c48 = arith.constant 48 : index
      %c0_19 = arith.constant 0 : index
      %31 = vector.load %arg5[%c48, %c0_19] : memref<500x400xbf16, #tpu.memory_space<vmem>>, vector<4x400xbf16>
      tpu.vector_store %arg5[%c48, %c0_19], %30 {strides = array<i32>} : memref<500x400xbf16, #tpu.memory_space<vmem>>, vector<4x400xbf16>,
      %32 = vector.extract_strided_slice %5 {offsets = [0, 43], sizes = [4, 400], strides = [1, 1]} : vector<4x512xbf16> to vector<4x400xbf16>
      %c52 = arith.constant 52 : index
      %c0_20 = arith.constant 0 : index
      %33 = vector.load %arg5[%c52, %c0_20] : memref<500x400xbf16, #tpu.memory_space<vmem>>, vector<4x400xbf16>
      tpu.vector_store %arg5[%c52, %c0_20], %32 {strides = array<i32>} : memref<500x400xbf16, #tpu.memory_space<vmem>>, vector<4x400xbf16>,
      %34 = vector.extract_strided_slice %5 {offsets = [0, 44], sizes = [4, 400], strides = [1, 1]} : vector<4x512xbf16> to vector<4x400xbf16>
      %c56 = arith.constant 56 : index
      %c0_21 = arith.constant 0 : index
      %35 = vector.load %arg5[%c56, %c0_21] : memref<500x400xbf16, #tpu.memory_space<vmem>>, vector<4x400xbf16>
      tpu.vector_store %arg5[%c56, %c0_21], %34 {strides = array<i32>} : memref<500x400xbf16, #tpu.memory_space<vmem>>, vector<4x400xbf16>,
      %36 = vector.extract_strided_slice %5 {offsets = [0, 60], sizes = [4, 400], strides = [1, 1]} : vector<4x512xbf16> to vector<4x400xbf16>
      %c60 = arith.constant 60 : index
      %c0_22 = arith.constant 0 : index
      %37 = vector.load %arg5[%c60, %c0_22] : memref<500x400xbf16, #tpu.memory_space<vmem>>, vector<4x400xbf16>
      tpu.vector_store %arg5[%c60, %c0_22], %36 {strides = array<i32>} : memref<500x400xbf16, #tpu.memory_space<vmem>>, vector<4x400xbf16>,
      %38 = vector.extract_strided_slice %5 {offsets = [0, 61], sizes = [4, 400], strides = [1, 1]} : vector<4x512xbf16> to vector<4x400xbf16>
      %c64 = arith.constant 64 : index
      %c0_23 = arith.constant 0 : index
      %39 = vector.load %arg5[%c64, %c0_23] : memref<500x400xbf16, #tpu.memory_space<vmem>>, vector<4x400xbf16>
      tpu.vector_store %arg5[%c64, %c0_23], %38 {strides = array<i32>} : memref<500x400xbf16, #tpu.memory_space<vmem>>, vector<4x400xbf16>,
      %40 = vector.extract_strided_slice %5 {offsets = [0, 62], sizes = [4, 400], strides = [1, 1]} : vector<4x512xbf16> to vector<4x400xbf16>
      %c68 = arith.constant 68 : index
      %c0_24 = arith.constant 0 : index
      %41 = vector.load %arg5[%c68, %c0_24] : memref<500x400xbf16, #tpu.memory_space<vmem>>, vector<4x400xbf16>
      tpu.vector_store %arg5[%c68, %c0_24], %40 {strides = array<i32>} : memref<500x400xbf16, #tpu.memory_space<vmem>>, vector<4x400xbf16>,
      %42 = vector.extract_strided_slice %5 {offsets = [0, 63], sizes = [4, 400], strides = [1, 1]} : vector<4x512xbf16> to vector<4x400xbf16>
      %c72 = arith.constant 72 : index
      %c0_25 = arith.constant 0 : index
      %43 = vector.load %arg5[%c72, %c0_25] : memref<500x400xbf16, #tpu.memory_space<vmem>>, vector<4x400xbf16>
      tpu.vector_store %arg5[%c72, %c0_25], %42 {strides = array<i32>} : memref<500x400xbf16, #tpu.memory_space<vmem>>, vector<4x400xbf16>,
      %44 = vector.extract_strided_slice %5 {offsets = [0, 64], sizes = [4, 400], strides = [1, 1]} : vector<4x512xbf16> to vector<4x400xbf16>
      %c76 = arith.constant 76 : index
      %c0_26 = arith.constant 0 : index
      %45 = vector.load %arg5[%c76, %c0_26] : memref<500x400xbf16, #tpu.memory_space<vmem>>, vector<4x400xbf16>
      tpu.vector_store %arg5[%c76, %c0_26], %44 {strides = array<i32>} : memref<500x400xbf16, #tpu.memory_space<vmem>>, vector<4x400xbf16>,
      %46 = vector.extract_strided_slice %5 {offsets = [0, 80], sizes = [4, 400], strides = [1, 1]} : vector<4x512xbf16> to vector<4x400xbf16>
      %c80 = arith.constant 80 : index
      %c0_27 = arith.constant 0 : index
      %47 = vector.load %arg5[%c80, %c0_27] : memref<500x400xbf16, #tpu.memory_space<vmem>>, vector<4x400xbf16>
      tpu.vector_store %arg5[%c80, %c0_27], %46 {strides = array<i32>} : memref<500x400xbf16, #tpu.memory_space<vmem>>, vector<4x400xbf16>,
      %48 = vector.extract_strided_slice %5 {offsets = [0, 81], sizes = [4, 400], strides = [1, 1]} : vector<4x512xbf16> to vector<4x400xbf16>
      %c84 = arith.constant 84 : index
      %c0_28 = arith.constant 0 : index
      %49 = vector.load %arg5[%c84, %c0_28] : memref<500x400xbf16, #tpu.memory_space<vmem>>, vector<4x400xbf16>
      tpu.vector_store %arg5[%c84, %c0_28], %48 {strides = array<i32>} : memref<500x400xbf16, #tpu.memory_space<vmem>>, vector<4x400xbf16>,
      %50 = vector.extract_strided_slice %5 {offsets = [0, 82], sizes = [4, 400], strides = [1, 1]} : vector<4x512xbf16> to vector<4x400xbf16>
      %c88 = arith.constant 88 : index
      %c0_29 = arith.constant 0 : index
      %51 = vector.load %arg5[%c88, %c0_29] : memref<500x400xbf16, #tpu.memory_space<vmem>>, vector<4x400xbf16>
      tpu.vector_store %arg5[%c88, %c0_29], %50 {strides = array<i32>} : memref<500x400xbf16, #tpu.memory_space<vmem>>, vector<4x400xbf16>,
      %52 = vector.extract_strided_slice %5 {offsets = [0, 83], sizes = [4, 400], strides = [1, 1]} : vector<4x512xbf16> to vector<4x400xbf16>
      %c92 = arith.constant 92 : index
      %c0_30 = arith.constant 0 : index
      %53 = vector.load %arg5[%c92, %c0_30] : memref<500x400xbf16, #tpu.memory_space<vmem>>, vector<4x400xbf16>
      tpu.vector_store %arg5[%c92, %c0_30], %52 {strides = array<i32>} : memref<500x400xbf16, #tpu.memory_space<vmem>>, vector<4x400xbf16>,
      %54 = vector.extract_strided_slice %5 {offsets = [0, 84], sizes = [4, 400], strides = [1, 1]} : vector<4x512xbf16> to vector<4x400xbf16>
      %c96 = arith.constant 96 : index
      %c0_31 = arith.constant 0 : index
      %55 = vector.load %arg5[%c96, %c0_31] : memref<500x400xbf16, #tpu.memory_space<vmem>>, vector<4x400xbf16>
      tpu.vector_store %arg5[%c96, %c0_31], %54 {strides = array<i32>} : memref<500x400xbf16, #tpu.memory_space<vmem>>, vector<4x400xbf16>,
      %c1_i32_32 = arith.constant 1 : i32
      %56 = arith.addi %arg6, %c1_i32_32 : i32
      %c0_33 = arith.constant 0 : index
      %57 = arith.index_cast %56 : i32 to index
      %c0_34 = arith.constant 0 : index
      %c0_35 = arith.constant 0 : index
      %58 = vector.load %arg1[%c0_33, %57, %c0_34, %c0_35] : memref<1x20x4x512xbf16, #tpu.memory_space<vmem>>, vector<1x1x4x512xbf16>
      %59 = vector.shape_cast %58 : vector<1x1x4x512xbf16> to vector<4x512xbf16>
      %60 = vector.extract_strided_slice %59 {offsets = [0, 0], sizes = [4, 400], strides = [1, 1]} : vector<4x512xbf16> to vector<4x400xbf16>
      %c100 = arith.constant 100 : index
      %c0_36 = arith.constant 0 : index
      %61 = vector.load %arg5[%c100, %c0_36] : memref<500x400xbf16, #tpu.memory_space<vmem>>, vector<4x400xbf16>
      tpu.vector_store %arg5[%c100, %c0_36], %60 {strides = array<i32>} : memref<500x400xbf16, #tpu.memory_space<vmem>>, vector<4x400xbf16>,
      %62 = vector.extract_strided_slice %59 {offsets = [0, 1], sizes = [4, 400], strides = [1, 1]} : vector<4x512xbf16> to vector<4x400xbf16>
      %c104 = arith.constant 104 : index
      %c0_37 = arith.constant 0 : index
      %63 = vector.load %arg5[%c104, %c0_37] : memref<500x400xbf16, #tpu.memory_space<vmem>>, vector<4x400xbf16>
      tpu.vector_store %arg5[%c104, %c0_37], %62 {strides = array<i32>} : memref<500x400xbf16, #tpu.memory_space<vmem>>, vector<4x400xbf16>,
      %64 = vector.extract_strided_slice %59 {offsets = [0, 2], sizes = [4, 400], strides = [1, 1]} : vector<4x512xbf16> to vector<4x400xbf16>
      %c108 = arith.constant 108 : index
      %c0_38 = arith.constant 0 : index
      %65 = vector.load %arg5[%c108, %c0_38] : memref<500x400xbf16, #tpu.memory_space<vmem>>, vector<4x400xbf16>
      tpu.vector_store %arg5[%c108, %c0_38], %64 {strides = array<i32>} : memref<500x400xbf16, #tpu.memory_space<vmem>>, vector<4x400xbf16>,
      %66 = vector.extract_strided_slice %59 {offsets = [0, 3], sizes = [4, 400], strides = [1, 1]} : vector<4x512xbf16> to vector<4x400xbf16>
      %c112 = arith.constant 112 : index
      %c0_39 = arith.constant 0 : index
      %67 = vector.load %arg5[%c112, %c0_39] : memref<500x400xbf16, #tpu.memory_space<vmem>>, vector<4x400xbf16>
      tpu.vector_store %arg5[%c112, %c0_39], %66 {strides = array<i32>} : memref<500x400xbf16, #tpu.memory_space<vmem>>, vector<4x400xbf16>,
      %68 = vector.extract_strided_slice %59 {offsets = [0, 4], sizes = [4, 400], strides = [1, 1]} : vector<4x512xbf16> to vector<4x400xbf16>
      %c116 = arith.constant 116 : index
      %c0_40 = arith.constant 0 : index
      %69 = vector.load %arg5[%c116, %c0_40] : memref<500x400xbf16, #tpu.memory_space<vmem>>, vector<4x400xbf16>
      tpu.vector_store %arg5[%c116, %c0_40], %68 {strides = array<i32>} : memref<500x400xbf16, #tpu.memory_space<vmem>>, vector<4x400xbf16>,
      %70 = vector.extract_strided_slice %59 {offsets = [0, 20], sizes = [4, 400], strides = [1, 1]} : vector<4x512xbf16> to vector<4x400xbf16>
      %c120 = arith.constant 120 : index
      %c0_41 = arith.constant 0 : index
      %71 = vector.load %arg5[%c120, %c0_41] : memref<500x400xbf16, #tpu.memory_space<vmem>>, vector<4x400xbf16>
      tpu.vector_store %arg5[%c120, %c0_41], %70 {strides = array<i32>} : memref<500x400xbf16, #tpu.memory_space<vmem>>, vector<4x400xbf16>,
      %72 = vector.extract_strided_slice %59 {offsets = [0, 21], sizes = [4, 400], strides = [1, 1]} : vector<4x512xbf16> to vector<4x400xbf16>
      %c124 = arith.constant 124 : index
      %c0_42 = arith.constant 0 : index
      %73 = vector.load %arg5[%c124, %c0_42] : memref<500x400xbf16, #tpu.memory_space<vmem>>, vector<4x400xbf16>
      tpu.vector_store %arg5[%c124, %c0_42], %72 {strides = array<i32>} : memref<500x400xbf16, #tpu.memory_space<vmem>>, vector<4x400xbf16>,
      %74 = vector.extract_strided_slice %59 {offsets = [0, 22], sizes = [4, 400], strides = [1, 1]} : vector<4x512xbf16> to vector<4x400xbf16>
      %c128 = arith.constant 128 : index
      %c0_43 = arith.constant 0 : index
      %75 = vector.load %arg5[%c128, %c0_43] : memref<500x400xbf16, #tpu.memory_space<vmem>>, vector<4x400xbf16>
      tpu.vector_store %arg5[%c128, %c0_43], %74 {strides = array<i32>} : memref<500x400xbf16, #tpu.memory_space<vmem>>, vector<4x400xbf16>,
      %76 = vector.extract_strided_slice %59 {offsets = [0, 23], sizes = [4, 400], strides = [1, 1]} : vector<4x512xbf16> to vector<4x400xbf16>
      %c132 = arith.constant 132 : index
      %c0_44 = arith.constant 0 : index
      %77 = vector.load %arg5[%c132, %c0_44] : memref<500x400xbf16, #tpu.memory_space<vmem>>, vector<4x400xbf16>
      tpu.vector_store %arg5[%c132, %c0_44], %76 {strides = array<i32>} : memref<500x400xbf16, #tpu.memory_space<vmem>>, vector<4x400xbf16>,
      %78 = vector.extract_strided_slice %59 {offsets = [0, 24], sizes = [4, 400], strides = [1, 1]} : vector<4x512xbf16> to vector<4x400xbf16>
      %c136 = arith.constant 136 : index
      %c0_45 = arith.constant 0 : index
      %79 = vector.load %arg5[%c136, %c0_45] : memref<500x400xbf16, #tpu.memory_space<vmem>>, vector<4x400xbf16>
      tpu.vector_store %arg5[%c136, %c0_45], %78 {strides = array<i32>} : memref<500x400xbf16, #tpu.memory_space<vmem>>, vector<4x400xbf16>,
      %80 = vector.extract_strided_slice %59 {offsets = [0, 40], sizes = [4, 400], strides = [1, 1]} : vector<4x512xbf16> to vector<4x400xbf16>
      %c140 = arith.constant 140 : index
      %c0_46 = arith.constant 0 : index
      %81 = vector.load %arg5[%c140, %c0_46] : memref<500x400xbf16, #tpu.memory_space<vmem>>, vector<4x400xbf16>
      tpu.vector_store %arg5[%c140, %c0_46], %80 {strides = array<i32>} : memref<500x400xbf16, #tpu.memory_space<vmem>>, vector<4x400xbf16>,
      %82 = vector.extract_strided_slice %59 {offsets = [0, 41], sizes = [4, 400], strides = [1, 1]} : vector<4x512xbf16> to vector<4x400xbf16>
      %c144 = arith.constant 144 : index
      %c0_47 = arith.constant 0 : index
      %83 = vector.load %arg5[%c144, %c0_47] : memref<500x400xbf16, #tpu.memory_space<vmem>>, vector<4x400xbf16>
      tpu.vector_store %arg5[%c144, %c0_47], %82 {strides = array<i32>} : memref<500x400xbf16, #tpu.memory_space<vmem>>, vector<4x400xbf16>,
      %84 = vector.extract_strided_slice %59 {offsets = [0, 42], sizes = [4, 400], strides = [1, 1]} : vector<4x512xbf16> to vector<4x400xbf16>
      %c148 = arith.constant 148 : index
      %c0_48 = arith.constant 0 : index
      %85 = vector.load %arg5[%c148, %c0_48] : memref<500x400xbf16, #tpu.memory_space<vmem>>, vector<4x400xbf16>
      tpu.vector_store %arg5[%c148, %c0_48], %84 {strides = array<i32>} : memref<500x400xbf16, #tpu.memory_space<vmem>>, vector<4x400xbf16>,
      %86 = vector.extract_strided_slice %59 {offsets = [0, 43], sizes = [4, 400], strides = [1, 1]} : vector<4x512xbf16> to vector<4x400xbf16>
      %c152 = arith.constant 152 : index
      %c0_49 = arith.constant 0 : index
      %87 = vector.load %arg5[%c152, %c0_49] : memref<500x400xbf16, #tpu.memory_space<vmem>>, vector<4x400xbf16>
      tpu.vector_store %arg5[%c152, %c0_49], %86 {strides = array<i32>} : memref<500x400xbf16, #tpu.memory_space<vmem>>, vector<4x400xbf16>,
      %88 = vector.extract_strided_slice %59 {offsets = [0, 44], sizes = [4, 400], strides = [1, 1]} : vector<4x512xbf16> to vector<4x400xbf16>
      %c156 = arith.constant 156 : index
      %c0_50 = arith.constant 0 : index
      %89 = vector.load %arg5[%c156, %c0_50] : memref<500x400xbf16, #tpu.memory_space<vmem>>, vector<4x400xbf16>
      tpu.vector_store %arg5[%c156, %c0_50], %88 {strides = array<i32>} : memref<500x400xbf16, #tpu.memory_space<vmem>>, vector<4x400xbf16>,
      %90 = vector.extract_strided_slice %59 {offsets = [0, 60], sizes = [4, 400], strides = [1, 1]} : vector<4x512xbf16> to vector<4x400xbf16>
      %c160 = arith.constant 160 : index
      %c0_51 = arith.constant 0 : index
      %91 = vector.load %arg5[%c160, %c0_51] : memref<500x400xbf16, #tpu.memory_space<vmem>>, vector<4x400xbf16>
      tpu.vector_store %arg5[%c160, %c0_51], %90 {strides = array<i32>} : memref<500x400xbf16, #tpu.memory_space<vmem>>, vector<4x400xbf16>,
      %92 = vector.extract_strided_slice %59 {offsets = [0, 61], sizes = [4, 400], strides = [1, 1]} : vector<4x512xbf16> to vector<4x400xbf16>
      %c164 = arith.constant 164 : index
      %c0_52 = arith.constant 0 : index
      %93 = vector.load %arg5[%c164, %c0_52] : memref<500x400xbf16, #tpu.memory_space<vmem>>, vector<4x400xbf16>
      tpu.vector_store %arg5[%c164, %c0_52], %92 {strides = array<i32>} : memref<500x400xbf16, #tpu.memory_space<vmem>>, vector<4x400xbf16>,
      %94 = vector.extract_strided_slice %59 {offsets = [0, 62], sizes = [4, 400], strides = [1, 1]} : vector<4x512xbf16> to vector<4x400xbf16>
      %c168 = arith.constant 168 : index
      %c0_53 = arith.constant 0 : index
      %95 = vector.load %arg5[%c168, %c0_53] : memref<500x400xbf16, #tpu.memory_space<vmem>>, vector<4x400xbf16>
      tpu.vector_store %arg5[%c168, %c0_53], %94 {strides = array<i32>} : memref<500x400xbf16, #tpu.memory_space<vmem>>, vector<4x400xbf16>,
      %96 = vector.extract_strided_slice %59 {offsets = [0, 63], sizes = [4, 400], strides = [1, 1]} : vector<4x512xbf16> to vector<4x400xbf16>
      %c172 = arith.constant 172 : index
      %c0_54 = arith.constant 0 : index
      %97 = vector.load %arg5[%c172, %c0_54] : memref<500x400xbf16, #tpu.memory_space<vmem>>, vector<4x400xbf16>
      tpu.vector_store %arg5[%c172, %c0_54], %96 {strides = array<i32>} : memref<500x400xbf16, #tpu.memory_space<vmem>>, vector<4x400xbf16>,
      %98 = vector.extract_strided_slice %59 {offsets = [0, 64], sizes = [4, 400], strides = [1, 1]} : vector<4x512xbf16> to vector<4x400xbf16>
      %c176 = arith.constant 176 : index
      %c0_55 = arith.constant 0 : index
      %99 = vector.load %arg5[%c176, %c0_55] : memref<500x400xbf16, #tpu.memory_space<vmem>>, vector<4x400xbf16>
      tpu.vector_store %arg5[%c176, %c0_55], %98 {strides = array<i32>} : memref<500x400xbf16, #tpu.memory_space<vmem>>, vector<4x400xbf16>,
      %100 = vector.extract_strided_slice %59 {offsets = [0, 80], sizes = [4, 400], strides = [1, 1]} : vector<4x512xbf16> to vector<4x400xbf16>
      %c180 = arith.constant 180 : index
      %c0_56 = arith.constant 0 : index
      %101 = vector.load %arg5[%c180, %c0_56] : memref<500x400xbf16, #tpu.memory_space<vmem>>, vector<4x400xbf16>
      tpu.vector_store %arg5[%c180, %c0_56], %100 {strides = array<i32>} : memref<500x400xbf16, #tpu.memory_space<vmem>>, vector<4x400xbf16>,
      %102 = vector.extract_strided_slice %59 {offsets = [0, 81], sizes = [4, 400], strides = [1, 1]} : vector<4x512xbf16> to vector<4x400xbf16>
      %c184 = arith.constant 184 : index
      %c0_57 = arith.constant 0 : index
      %103 = vector.load %arg5[%c184, %c0_57] : memref<500x400xbf16, #tpu.memory_space<vmem>>, vector<4x400xbf16>
      tpu.vector_store %arg5[%c184, %c0_57], %102 {strides = array<i32>} : memref<500x400xbf16, #tpu.memory_space<vmem>>, vector<4x400xbf16>,
      %104 = vector.extract_strided_slice %59 {offsets = [0, 82], sizes = [4, 400], strides = [1, 1]} : vector<4x512xbf16> to vector<4x400xbf16>
      %c188 = arith.constant 188 : index
      %c0_58 = arith.constant 0 : index
      %105 = vector.load %arg5[%c188, %c0_58] : memref<500x400xbf16, #tpu.memory_space<vmem>>, vector<4x400xbf16>
      tpu.vector_store %arg5[%c188, %c0_58], %104 {strides = array<i32>} : memref<500x400xbf16, #tpu.memory_space<vmem>>, vector<4x400xbf16>,
      %106 = vector.extract_strided_slice %59 {offsets = [0, 83], sizes = [4, 400], strides = [1, 1]} : vector<4x512xbf16> to vector<4x400xbf16>
      %c192 = arith.constant 192 : index
      %c0_59 = arith.constant 0 : index
      %107 = vector.load %arg5[%c192, %c0_59] : memref<500x400xbf16, #tpu.memory_space<vmem>>, vector<4x400xbf16>
      tpu.vector_store %arg5[%c192, %c0_59], %106 {strides = array<i32>} : memref<500x400xbf16, #tpu.memory_space<vmem>>, vector<4x400xbf16>,
      %108 = vector.extract_strided_slice %59 {offsets = [0, 84], sizes = [4, 400], strides = [1, 1]} : vector<4x512xbf16> to vector<4x400xbf16>
      %c196 = arith.constant 196 : index
      %c0_60 = arith.constant 0 : index
      %109 = vector.load %arg5[%c196, %c0_60] : memref<500x400xbf16, #tpu.memory_space<vmem>>, vector<4x400xbf16>
      tpu.vector_store %arg5[%c196, %c0_60], %108 {strides = array<i32>} : memref<500x400xbf16, #tpu.memory_space<vmem>>, vector<4x400xbf16>,
      %c2_i32 = arith.constant 2 : i32
      %110 = arith.addi %arg6, %c2_i32 : i32
      %c0_61 = arith.constant 0 : index
      %111 = arith.index_cast %110 : i32 to index
      %c0_62 = arith.constant 0 : index
      %c0_63 = arith.constant 0 : index
      %112 = vector.load %arg1[%c0_61, %111, %c0_62, %c0_63] : memref<1x20x4x512xbf16, #tpu.memory_space<vmem>>, vector<1x1x4x512xbf16>
      %113 = vector.shape_cast %112 : vector<1x1x4x512xbf16> to vector<4x512xbf16>
      %114 = vector.extract_strided_slice %113 {offsets = [0, 0], sizes = [4, 400], strides = [1, 1]} : vector<4x512xbf16> to vector<4x400xbf16>
      %c200 = arith.constant 200 : index
      %c0_64 = arith.constant 0 : index
      %115 = vector.load %arg5[%c200, %c0_64] : memref<500x400xbf16, #tpu.memory_space<vmem>>, vector<4x400xbf16>
      tpu.vector_store %arg5[%c200, %c0_64], %114 {strides = array<i32>} : memref<500x400xbf16, #tpu.memory_space<vmem>>, vector<4x400xbf16>,
      %116 = vector.extract_strided_slice %113 {offsets = [0, 1], sizes = [4, 400], strides = [1, 1]} : vector<4x512xbf16> to vector<4x400xbf16>
      %c204 = arith.constant 204 : index
      %c0_65 = arith.constant 0 : index
      %117 = vector.load %arg5[%c204, %c0_65] : memref<500x400xbf16, #tpu.memory_space<vmem>>, vector<4x400xbf16>
      tpu.vector_store %arg5[%c204, %c0_65], %116 {strides = array<i32>} : memref<500x400xbf16, #tpu.memory_space<vmem>>, vector<4x400xbf16>,
      %118 = vector.extract_strided_slice %113 {offsets = [0, 2], sizes = [4, 400], strides = [1, 1]} : vector<4x512xbf16> to vector<4x400xbf16>
      %c208 = arith.constant 208 : index
      %c0_66 = arith.constant 0 : index
      %119 = vector.load %arg5[%c208, %c0_66] : memref<500x400xbf16, #tpu.memory_space<vmem>>, vector<4x400xbf16>
      tpu.vector_store %arg5[%c208, %c0_66], %118 {strides = array<i32>} : memref<500x400xbf16, #tpu.memory_space<vmem>>, vector<4x400xbf16>,
      %120 = vector.extract_strided_slice %113 {offsets = [0, 3], sizes = [4, 400], strides = [1, 1]} : vector<4x512xbf16> to vector<4x400xbf16>
      %c212 = arith.constant 212 : index
      %c0_67 = arith.constant 0 : index
      %121 = vector.load %arg5[%c212, %c0_67] : memref<500x400xbf16, #tpu.memory_space<vmem>>, vector<4x400xbf16>
      tpu.vector_store %arg5[%c212, %c0_67], %120 {strides = array<i32>} : memref<500x400xbf16, #tpu.memory_space<vmem>>, vector<4x400xbf16>,
      %122 = vector.extract_strided_slice %113 {offsets = [0, 4], sizes = [4, 400], strides = [1, 1]} : vector<4x512xbf16> to vector<4x400xbf16>
      %c216 = arith.constant 216 : index
      %c0_68 = arith.constant 0 : index
      %123 = vector.load %arg5[%c216, %c0_68] : memref<500x400xbf16, #tpu.memory_space<vmem>>, vector<4x400xbf16>
      tpu.vector_store %arg5[%c216, %c0_68], %122 {strides = array<i32>} : memref<500x400xbf16, #tpu.memory_space<vmem>>, vector<4x400xbf16>,
      %124 = vector.extract_strided_slice %113 {offsets = [0, 20], sizes = [4, 400], strides = [1, 1]} : vector<4x512xbf16> to vector<4x400xbf16>
      %c220 = arith.constant 220 : index
      %c0_69 = arith.constant 0 : index
      %125 = vector.load %arg5[%c220, %c0_69] : memref<500x400xbf16, #tpu.memory_space<vmem>>, vector<4x400xbf16>
      tpu.vector_store %arg5[%c220, %c0_69], %124 {strides = array<i32>} : memref<500x400xbf16, #tpu.memory_space<vmem>>, vector<4x400xbf16>,
      %126 = vector.extract_strided_slice %113 {offsets = [0, 21], sizes = [4, 400], strides = [1, 1]} : vector<4x512xbf16> to vector<4x400xbf16>
      %c224 = arith.constant 224 : index
      %c0_70 = arith.constant 0 : index
      %127 = vector.load %arg5[%c224, %c0_70] : memref<500x400xbf16, #tpu.memory_space<vmem>>, vector<4x400xbf16>
      tpu.vector_store %arg5[%c224, %c0_70], %126 {strides = array<i32>} : memref<500x400xbf16, #tpu.memory_space<vmem>>, vector<4x400xbf16>,
      %128 = vector.extract_strided_slice %113 {offsets = [0, 22], sizes = [4, 400], strides = [1, 1]} : vector<4x512xbf16> to vector<4x400xbf16>
      %c228 = arith.constant 228 : index
      %c0_71 = arith.constant 0 : index
      %129 = vector.load %arg5[%c228, %c0_71] : memref<500x400xbf16, #tpu.memory_space<vmem>>, vector<4x400xbf16>
      tpu.vector_store %arg5[%c228, %c0_71], %128 {strides = array<i32>} : memref<500x400xbf16, #tpu.memory_space<vmem>>, vector<4x400xbf16>,
      %130 = vector.extract_strided_slice %113 {offsets = [0, 23], sizes = [4, 400], strides = [1, 1]} : vector<4x512xbf16> to vector<4x400xbf16>
      %c232 = arith.constant 232 : index
      %c0_72 = arith.constant 0 : index
      %131 = vector.load %arg5[%c232, %c0_72] : memref<500x400xbf16, #tpu.memory_space<vmem>>, vector<4x400xbf16>
      tpu.vector_store %arg5[%c232, %c0_72], %130 {strides = array<i32>} : memref<500x400xbf16, #tpu.memory_space<vmem>>, vector<4x400xbf16>,
      %132 = vector.extract_strided_slice %113 {offsets = [0, 24], sizes = [4, 400], strides = [1, 1]} : vector<4x512xbf16> to vector<4x400xbf16>
      %c236 = arith.constant 236 : index
      %c0_73 = arith.constant 0 : index
      %133 = vector.load %arg5[%c236, %c0_73] : memref<500x400xbf16, #tpu.memory_space<vmem>>, vector<4x400xbf16>
      tpu.vector_store %arg5[%c236, %c0_73], %132 {strides = array<i32>} : memref<500x400xbf16, #tpu.memory_space<vmem>>, vector<4x400xbf16>,
      %134 = vector.extract_strided_slice %113 {offsets = [0, 40], sizes = [4, 400], strides = [1, 1]} : vector<4x512xbf16> to vector<4x400xbf16>
      %c240 = arith.constant 240 : index
      %c0_74 = arith.constant 0 : index
      %135 = vector.load %arg5[%c240, %c0_74] : memref<500x400xbf16, #tpu.memory_space<vmem>>, vector<4x400xbf16>
      tpu.vector_store %arg5[%c240, %c0_74], %134 {strides = array<i32>} : memref<500x400xbf16, #tpu.memory_space<vmem>>, vector<4x400xbf16>,
      %136 = vector.extract_strided_slice %113 {offsets = [0, 41], sizes = [4, 400], strides = [1, 1]} : vector<4x512xbf16> to vector<4x400xbf16>
      %c244 = arith.constant 244 : index
      %c0_75 = arith.constant 0 : index
      %137 = vector.load %arg5[%c244, %c0_75] : memref<500x400xbf16, #tpu.memory_space<vmem>>, vector<4x400xbf16>
      tpu.vector_store %arg5[%c244, %c0_75], %136 {strides = array<i32>} : memref<500x400xbf16, #tpu.memory_space<vmem>>, vector<4x400xbf16>,
      %138 = vector.extract_strided_slice %113 {offsets = [0, 42], sizes = [4, 400], strides = [1, 1]} : vector<4x512xbf16> to vector<4x400xbf16>
      %c248 = arith.constant 248 : index
      %c0_76 = arith.constant 0 : index
      %139 = vector.load %arg5[%c248, %c0_76] : memref<500x400xbf16, #tpu.memory_space<vmem>>, vector<4x400xbf16>
      tpu.vector_store %arg5[%c248, %c0_76], %138 {strides = array<i32>} : memref<500x400xbf16, #tpu.memory_space<vmem>>, vector<4x400xbf16>,
      %140 = vector.extract_strided_slice %113 {offsets = [0, 43], sizes = [4, 400], strides = [1, 1]} : vector<4x512xbf16> to vector<4x400xbf16>
      %c252 = arith.constant 252 : index
      %c0_77 = arith.constant 0 : index
      %141 = vector.load %arg5[%c252, %c0_77] : memref<500x400xbf16, #tpu.memory_space<vmem>>, vector<4x400xbf16>
      tpu.vector_store %arg5[%c252, %c0_77], %140 {strides = array<i32>} : memref<500x400xbf16, #tpu.memory_space<vmem>>, vector<4x400xbf16>,
      %142 = vector.extract_strided_slice %113 {offsets = [0, 44], sizes = [4, 400], strides = [1, 1]} : vector<4x512xbf16> to vector<4x400xbf16>
      %c256 = arith.constant 256 : index
      %c0_78 = arith.constant 0 : index
      %143 = vector.load %arg5[%c256, %c0_78] : memref<500x400xbf16, #tpu.memory_space<vmem>>, vector<4x400xbf16>
      tpu.vector_store %arg5[%c256, %c0_78], %142 {strides = array<i32>} : memref<500x400xbf16, #tpu.memory_space<vmem>>, vector<4x400xbf16>,
      %144 = vector.extract_strided_slice %113 {offsets = [0, 60], sizes = [4, 400], strides = [1, 1]} : vector<4x512xbf16> to vector<4x400xbf16>
      %c260 = arith.constant 260 : index
      %c0_79 = arith.constant 0 : index
      %145 = vector.load %arg5[%c260, %c0_79] : memref<500x400xbf16, #tpu.memory_space<vmem>>, vector<4x400xbf16>
      tpu.vector_store %arg5[%c260, %c0_79], %144 {strides = array<i32>} : memref<500x400xbf16, #tpu.memory_space<vmem>>, vector<4x400xbf16>,
      %146 = vector.extract_strided_slice %113 {offsets = [0, 61], sizes = [4, 400], strides = [1, 1]} : vector<4x512xbf16> to vector<4x400xbf16>
      %c264 = arith.constant 264 : index
      %c0_80 = arith.constant 0 : index
      %147 = vector.load %arg5[%c264, %c0_80] : memref<500x400xbf16, #tpu.memory_space<vmem>>, vector<4x400xbf16>
      tpu.vector_store %arg5[%c264, %c0_80], %146 {strides = array<i32>} : memref<500x400xbf16, #tpu.memory_space<vmem>>, vector<4x400xbf16>,
      %148 = vector.extract_strided_slice %113 {offsets = [0, 62], sizes = [4, 400], strides = [1, 1]} : vector<4x512xbf16> to vector<4x400xbf16>
      %c268 = arith.constant 268 : index
      %c0_81 = arith.constant 0 : index
      %149 = vector.load %arg5[%c268, %c0_81] : memref<500x400xbf16, #tpu.memory_space<vmem>>, vector<4x400xbf16>
      tpu.vector_store %arg5[%c268, %c0_81], %148 {strides = array<i32>} : memref<500x400xbf16, #tpu.memory_space<vmem>>, vector<4x400xbf16>,
      %150 = vector.extract_strided_slice %113 {offsets = [0, 63], sizes = [4, 400], strides = [1, 1]} : vector<4x512xbf16> to vector<4x400xbf16>
      %c272 = arith.constant 272 : index
      %c0_82 = arith.constant 0 : index
      %151 = vector.load %arg5[%c272, %c0_82] : memref<500x400xbf16, #tpu.memory_space<vmem>>, vector<4x400xbf16>
      tpu.vector_store %arg5[%c272, %c0_82], %150 {strides = array<i32>} : memref<500x400xbf16, #tpu.memory_space<vmem>>, vector<4x400xbf16>,
      %152 = vector.extract_strided_slice %113 {offsets = [0, 64], sizes = [4, 400], strides = [1, 1]} : vector<4x512xbf16> to vector<4x400xbf16>
      %c276 = arith.constant 276 : index
      %c0_83 = arith.constant 0 : index
      %153 = vector.load %arg5[%c276, %c0_83] : memref<500x400xbf16, #tpu.memory_space<vmem>>, vector<4x400xbf16>
      tpu.vector_store %arg5[%c276, %c0_83], %152 {strides = array<i32>} : memref<500x400xbf16, #tpu.memory_space<vmem>>, vector<4x400xbf16>,
      %154 = vector.extract_strided_slice %113 {offsets = [0, 80], sizes = [4, 400], strides = [1, 1]} : vector<4x512xbf16> to vector<4x400xbf16>
      %c280 = arith.constant 280 : index
      %c0_84 = arith.constant 0 : index
      %155 = vector.load %arg5[%c280, %c0_84] : memref<500x400xbf16, #tpu.memory_space<vmem>>, vector<4x400xbf16>
      tpu.vector_store %arg5[%c280, %c0_84], %154 {strides = array<i32>} : memref<500x400xbf16, #tpu.memory_space<vmem>>, vector<4x400xbf16>,
      %156 = vector.extract_strided_slice %113 {offsets = [0, 81], sizes = [4, 400], strides = [1, 1]} : vector<4x512xbf16> to vector<4x400xbf16>
      %c284 = arith.constant 284 : index
      %c0_85 = arith.constant 0 : index
      %157 = vector.load %arg5[%c284, %c0_85] : memref<500x400xbf16, #tpu.memory_space<vmem>>, vector<4x400xbf16>
      tpu.vector_store %arg5[%c284, %c0_85], %156 {strides = array<i32>} : memref<500x400xbf16, #tpu.memory_space<vmem>>, vector<4x400xbf16>,
      %158 = vector.extract_strided_slice %113 {offsets = [0, 82], sizes = [4, 400], strides = [1, 1]} : vector<4x512xbf16> to vector<4x400xbf16>
      %c288 = arith.constant 288 : index
      %c0_86 = arith.constant 0 : index
      %159 = vector.load %arg5[%c288, %c0_86] : memref<500x400xbf16, #tpu.memory_space<vmem>>, vector<4x400xbf16>
      tpu.vector_store %arg5[%c288, %c0_86], %158 {strides = array<i32>} : memref<500x400xbf16, #tpu.memory_space<vmem>>, vector<4x400xbf16>,
      %160 = vector.extract_strided_slice %113 {offsets = [0, 83], sizes = [4, 400], strides = [1, 1]} : vector<4x512xbf16> to vector<4x400xbf16>
      %c292 = arith.constant 292 : index
      %c0_87 = arith.constant 0 : index
      %161 = vector.load %arg5[%c292, %c0_87] : memref<500x400xbf16, #tpu.memory_space<vmem>>, vector<4x400xbf16>
      tpu.vector_store %arg5[%c292, %c0_87], %160 {strides = array<i32>} : memref<500x400xbf16, #tpu.memory_space<vmem>>, vector<4x400xbf16>,
      %162 = vector.extract_strided_slice %113 {offsets = [0, 84], sizes = [4, 400], strides = [1, 1]} : vector<4x512xbf16> to vector<4x400xbf16>
      %c296 = arith.constant 296 : index
      %c0_88 = arith.constant 0 : index
      %163 = vector.load %arg5[%c296, %c0_88] : memref<500x400xbf16, #tpu.memory_space<vmem>>, vector<4x400xbf16>
      tpu.vector_store %arg5[%c296, %c0_88], %162 {strides = array<i32>} : memref<500x400xbf16, #tpu.memory_space<vmem>>, vector<4x400xbf16>,
      %c3_i32 = arith.constant 3 : i32
      %164 = arith.addi %arg6, %c3_i32 : i32
      %c0_89 = arith.constant 0 : index
      %165 = arith.index_cast %164 : i32 to index
      %c0_90 = arith.constant 0 : index
      %c0_91 = arith.constant 0 : index
      %166 = vector.load %arg1[%c0_89, %165, %c0_90, %c0_91] : memref<1x20x4x512xbf16, #tpu.memory_space<vmem>>, vector<1x1x4x512xbf16>
      %167 = vector.shape_cast %166 : vector<1x1x4x512xbf16> to vector<4x512xbf16>
      %168 = vector.extract_strided_slice %167 {offsets = [0, 0], sizes = [4, 400], strides = [1, 1]} : vector<4x512xbf16> to vector<4x400xbf16>
      %c300 = arith.constant 300 : index
      %c0_92 = arith.constant 0 : index
      %169 = vector.load %arg5[%c300, %c0_92] : memref<500x400xbf16, #tpu.memory_space<vmem>>, vector<4x400xbf16>
      tpu.vector_store %arg5[%c300, %c0_92], %168 {strides = array<i32>} : memref<500x400xbf16, #tpu.memory_space<vmem>>, vector<4x400xbf16>,
      %170 = vector.extract_strided_slice %167 {offsets = [0, 1], sizes = [4, 400], strides = [1, 1]} : vector<4x512xbf16> to vector<4x400xbf16>
      %c304 = arith.constant 304 : index
      %c0_93 = arith.constant 0 : index
      %171 = vector.load %arg5[%c304, %c0_93] : memref<500x400xbf16, #tpu.memory_space<vmem>>, vector<4x400xbf16>
      tpu.vector_store %arg5[%c304, %c0_93], %170 {strides = array<i32>} : memref<500x400xbf16, #tpu.memory_space<vmem>>, vector<4x400xbf16>,
      %172 = vector.extract_strided_slice %167 {offsets = [0, 2], sizes = [4, 400], strides = [1, 1]} : vector<4x512xbf16> to vector<4x400xbf16>
      %c308 = arith.constant 308 : index
      %c0_94 = arith.constant 0 : index
      %173 = vector.load %arg5[%c308, %c0_94] : memref<500x400xbf16, #tpu.memory_space<vmem>>, vector<4x400xbf16>
      tpu.vector_store %arg5[%c308, %c0_94], %172 {strides = array<i32>} : memref<500x400xbf16, #tpu.memory_space<vmem>>, vector<4x400xbf16>,
      %174 = vector.extract_strided_slice %167 {offsets = [0, 3], sizes = [4, 400], strides = [1, 1]} : vector<4x512xbf16> to vector<4x400xbf16>
      %c312 = arith.constant 312 : index
      %c0_95 = arith.constant 0 : index
      %175 = vector.load %arg5[%c312, %c0_95] : memref<500x400xbf16, #tpu.memory_space<vmem>>, vector<4x400xbf16>
      tpu.vector_store %arg5[%c312, %c0_95], %174 {strides = array<i32>} : memref<500x400xbf16, #tpu.memory_space<vmem>>, vector<4x400xbf16>,
      %176 = vector.extract_strided_slice %167 {offsets = [0, 4], sizes = [4, 400], strides = [1, 1]} : vector<4x512xbf16> to vector<4x400xbf16>
      %c316 = arith.constant 316 : index
      %c0_96 = arith.constant 0 : index
      %177 = vector.load %arg5[%c316, %c0_96] : memref<500x400xbf16, #tpu.memory_space<vmem>>, vector<4x400xbf16>
      tpu.vector_store %arg5[%c316, %c0_96], %176 {strides = array<i32>} : memref<500x400xbf16, #tpu.memory_space<vmem>>, vector<4x400xbf16>,
      %178 = vector.extract_strided_slice %167 {offsets = [0, 20], sizes = [4, 400], strides = [1, 1]} : vector<4x512xbf16> to vector<4x400xbf16>
      %c320 = arith.constant 320 : index
      %c0_97 = arith.constant 0 : index
      %179 = vector.load %arg5[%c320, %c0_97] : memref<500x400xbf16, #tpu.memory_space<vmem>>, vector<4x400xbf16>
      tpu.vector_store %arg5[%c320, %c0_97], %178 {strides = array<i32>} : memref<500x400xbf16, #tpu.memory_space<vmem>>, vector<4x400xbf16>,
      %180 = vector.extract_strided_slice %167 {offsets = [0, 21], sizes = [4, 400], strides = [1, 1]} : vector<4x512xbf16> to vector<4x400xbf16>
      %c324 = arith.constant 324 : index
      %c0_98 = arith.constant 0 : index
      %181 = vector.load %arg5[%c324, %c0_98] : memref<500x400xbf16, #tpu.memory_space<vmem>>, vector<4x400xbf16>
      tpu.vector_store %arg5[%c324, %c0_98], %180 {strides = array<i32>} : memref<500x400xbf16, #tpu.memory_space<vmem>>, vector<4x400xbf16>,
      %182 = vector.extract_strided_slice %167 {offsets = [0, 22], sizes = [4, 400], strides = [1, 1]} : vector<4x512xbf16> to vector<4x400xbf16>
      %c328 = arith.constant 328 : index
      %c0_99 = arith.constant 0 : index
      %183 = vector.load %arg5[%c328, %c0_99] : memref<500x400xbf16, #tpu.memory_space<vmem>>, vector<4x400xbf16>
      tpu.vector_store %arg5[%c328, %c0_99], %182 {strides = array<i32>} : memref<500x400xbf16, #tpu.memory_space<vmem>>, vector<4x400xbf16>,
      %184 = vector.extract_strided_slice %167 {offsets = [0, 23], sizes = [4, 400], strides = [1, 1]} : vector<4x512xbf16> to vector<4x400xbf16>
      %c332 = arith.constant 332 : index
      %c0_100 = arith.constant 0 : index
      %185 = vector.load %arg5[%c332, %c0_100] : memref<500x400xbf16, #tpu.memory_space<vmem>>, vector<4x400xbf16>
      tpu.vector_store %arg5[%c332, %c0_100], %184 {strides = array<i32>} : memref<500x400xbf16, #tpu.memory_space<vmem>>, vector<4x400xbf16>,
      %186 = vector.extract_strided_slice %167 {offsets = [0, 24], sizes = [4, 400], strides = [1, 1]} : vector<4x512xbf16> to vector<4x400xbf16>
      %c336 = arith.constant 336 : index
      %c0_101 = arith.constant 0 : index
      %187 = vector.load %arg5[%c336, %c0_101] : memref<500x400xbf16, #tpu.memory_space<vmem>>, vector<4x400xbf16>
      tpu.vector_store %arg5[%c336, %c0_101], %186 {strides = array<i32>} : memref<500x400xbf16, #tpu.memory_space<vmem>>, vector<4x400xbf16>,
      %188 = vector.extract_strided_slice %167 {offsets = [0, 40], sizes = [4, 400], strides = [1, 1]} : vector<4x512xbf16> to vector<4x400xbf16>
      %c340 = arith.constant 340 : index
      %c0_102 = arith.constant 0 : index
      %189 = vector.load %arg5[%c340, %c0_102] : memref<500x400xbf16, #tpu.memory_space<vmem>>, vector<4x400xbf16>
      tpu.vector_store %arg5[%c340, %c0_102], %188 {strides = array<i32>} : memref<500x400xbf16, #tpu.memory_space<vmem>>, vector<4x400xbf16>,
      %190 = vector.extract_strided_slice %167 {offsets = [0, 41], sizes = [4, 400], strides = [1, 1]} : vector<4x512xbf16> to vector<4x400xbf16>
      %c344 = arith.constant 344 : index
      %c0_103 = arith.constant 0 : index
      %191 = vector.load %arg5[%c344, %c0_103] : memref<500x400xbf16, #tpu.memory_space<vmem>>, vector<4x400xbf16>
      tpu.vector_store %arg5[%c344, %c0_103], %190 {strides = array<i32>} : memref<500x400xbf16, #tpu.memory_space<vmem>>, vector<4x400xbf16>,
      %192 = vector.extract_strided_slice %167 {offsets = [0, 42], sizes = [4, 400], strides = [1, 1]} : vector<4x512xbf16> to vector<4x400xbf16>
      %c348 = arith.constant 348 : index
      %c0_104 = arith.constant 0 : index
      %193 = vector.load %arg5[%c348, %c0_104] : memref<500x400xbf16, #tpu.memory_space<vmem>>, vector<4x400xbf16>
      tpu.vector_store %arg5[%c348, %c0_104], %192 {strides = array<i32>} : memref<500x400xbf16, #tpu.memory_space<vmem>>, vector<4x400xbf16>,
      %194 = vector.extract_strided_slice %167 {offsets = [0, 43], sizes = [4, 400], strides = [1, 1]} : vector<4x512xbf16> to vector<4x400xbf16>
      %c352 = arith.constant 352 : index
      %c0_105 = arith.constant 0 : index
      %195 = vector.load %arg5[%c352, %c0_105] : memref<500x400xbf16, #tpu.memory_space<vmem>>, vector<4x400xbf16>
      tpu.vector_store %arg5[%c352, %c0_105], %194 {strides = array<i32>} : memref<500x400xbf16, #tpu.memory_space<vmem>>, vector<4x400xbf16>,
      %196 = vector.extract_strided_slice %167 {offsets = [0, 44], sizes = [4, 400], strides = [1, 1]} : vector<4x512xbf16> to vector<4x400xbf16>
      %c356 = arith.constant 356 : index
      %c0_106 = arith.constant 0 : index
      %197 = vector.load %arg5[%c356, %c0_106] : memref<500x400xbf16, #tpu.memory_space<vmem>>, vector<4x400xbf16>
      tpu.vector_store %arg5[%c356, %c0_106], %196 {strides = array<i32>} : memref<500x400xbf16, #tpu.memory_space<vmem>>, vector<4x400xbf16>,
      %198 = vector.extract_strided_slice %167 {offsets = [0, 60], sizes = [4, 400], strides = [1, 1]} : vector<4x512xbf16> to vector<4x400xbf16>
      %c360 = arith.constant 360 : index
      %c0_107 = arith.constant 0 : index
      %199 = vector.load %arg5[%c360, %c0_107] : memref<500x400xbf16, #tpu.memory_space<vmem>>, vector<4x400xbf16>
      tpu.vector_store %arg5[%c360, %c0_107], %198 {strides = array<i32>} : memref<500x400xbf16, #tpu.memory_space<vmem>>, vector<4x400xbf16>,
      %200 = vector.extract_strided_slice %167 {offsets = [0, 61], sizes = [4, 400], strides = [1, 1]} : vector<4x512xbf16> to vector<4x400xbf16>
      %c364 = arith.constant 364 : index
      %c0_108 = arith.constant 0 : index
      %201 = vector.load %arg5[%c364, %c0_108] : memref<500x400xbf16, #tpu.memory_space<vmem>>, vector<4x400xbf16>
      tpu.vector_store %arg5[%c364, %c0_108], %200 {strides = array<i32>} : memref<500x400xbf16, #tpu.memory_space<vmem>>, vector<4x400xbf16>,
      %202 = vector.extract_strided_slice %167 {offsets = [0, 62], sizes = [4, 400], strides = [1, 1]} : vector<4x512xbf16> to vector<4x400xbf16>
      %c368 = arith.constant 368 : index
      %c0_109 = arith.constant 0 : index
      %203 = vector.load %arg5[%c368, %c0_109] : memref<500x400xbf16, #tpu.memory_space<vmem>>, vector<4x400xbf16>
      tpu.vector_store %arg5[%c368, %c0_109], %202 {strides = array<i32>} : memref<500x400xbf16, #tpu.memory_space<vmem>>, vector<4x400xbf16>,
      %204 = vector.extract_strided_slice %167 {offsets = [0, 63], sizes = [4, 400], strides = [1, 1]} : vector<4x512xbf16> to vector<4x400xbf16>
      %c372 = arith.constant 372 : index
      %c0_110 = arith.constant 0 : index
      %205 = vector.load %arg5[%c372, %c0_110] : memref<500x400xbf16, #tpu.memory_space<vmem>>, vector<4x400xbf16>
      tpu.vector_store %arg5[%c372, %c0_110], %204 {strides = array<i32>} : memref<500x400xbf16, #tpu.memory_space<vmem>>, vector<4x400xbf16>,
      %206 = vector.extract_strided_slice %167 {offsets = [0, 64], sizes = [4, 400], strides = [1, 1]} : vector<4x512xbf16> to vector<4x400xbf16>
      %c376 = arith.constant 376 : index
      %c0_111 = arith.constant 0 : index
      %207 = vector.load %arg5[%c376, %c0_111] : memref<500x400xbf16, #tpu.memory_space<vmem>>, vector<4x400xbf16>
      tpu.vector_store %arg5[%c376, %c0_111], %206 {strides = array<i32>} : memref<500x400xbf16, #tpu.memory_space<vmem>>, vector<4x400xbf16>,
      %208 = vector.extract_strided_slice %167 {offsets = [0, 80], sizes = [4, 400], strides = [1, 1]} : vector<4x512xbf16> to vector<4x400xbf16>
      %c380 = arith.constant 380 : index
      %c0_112 = arith.constant 0 : index
      %209 = vector.load %arg5[%c380, %c0_112] : memref<500x400xbf16, #tpu.memory_space<vmem>>, vector<4x400xbf16>
      tpu.vector_store %arg5[%c380, %c0_112], %208 {strides = array<i32>} : memref<500x400xbf16, #tpu.memory_space<vmem>>, vector<4x400xbf16>,
      %210 = vector.extract_strided_slice %167 {offsets = [0, 81], sizes = [4, 400], strides = [1, 1]} : vector<4x512xbf16> to vector<4x400xbf16>
      %c384 = arith.constant 384 : index
      %c0_113 = arith.constant 0 : index
      %211 = vector.load %arg5[%c384, %c0_113] : memref<500x400xbf16, #tpu.memory_space<vmem>>, vector<4x400xbf16>
      tpu.vector_store %arg5[%c384, %c0_113], %210 {strides = array<i32>} : memref<500x400xbf16, #tpu.memory_space<vmem>>, vector<4x400xbf16>,
      %212 = vector.extract_strided_slice %167 {offsets = [0, 82], sizes = [4, 400], strides = [1, 1]} : vector<4x512xbf16> to vector<4x400xbf16>
      %c388 = arith.constant 388 : index
      %c0_114 = arith.constant 0 : index
      %213 = vector.load %arg5[%c388, %c0_114] : memref<500x400xbf16, #tpu.memory_space<vmem>>, vector<4x400xbf16>
      tpu.vector_store %arg5[%c388, %c0_114], %212 {strides = array<i32>} : memref<500x400xbf16, #tpu.memory_space<vmem>>, vector<4x400xbf16>,
      %214 = vector.extract_strided_slice %167 {offsets = [0, 83], sizes = [4, 400], strides = [1, 1]} : vector<4x512xbf16> to vector<4x400xbf16>
      %c392 = arith.constant 392 : index
      %c0_115 = arith.constant 0 : index
      %215 = vector.load %arg5[%c392, %c0_115] : memref<500x400xbf16, #tpu.memory_space<vmem>>, vector<4x400xbf16>
      tpu.vector_store %arg5[%c392, %c0_115], %214 {strides = array<i32>} : memref<500x400xbf16, #tpu.memory_space<vmem>>, vector<4x400xbf16>,
      %216 = vector.extract_strided_slice %167 {offsets = [0, 84], sizes = [4, 400], strides = [1, 1]} : vector<4x512xbf16> to vector<4x400xbf16>
      %c396 = arith.constant 396 : index
      %c0_116 = arith.constant 0 : index
      %217 = vector.load %arg5[%c396, %c0_116] : memref<500x400xbf16, #tpu.memory_space<vmem>>, vector<4x400xbf16>
      tpu.vector_store %arg5[%c396, %c0_116], %216 {strides = array<i32>} : memref<500x400xbf16, #tpu.memory_space<vmem>>, vector<4x400xbf16>,
      %c4_i32 = arith.constant 4 : i32
      %218 = arith.addi %arg6, %c4_i32 : i32
      %c0_117 = arith.constant 0 : index
      %219 = arith.index_cast %218 : i32 to index
      %c0_118 = arith.constant 0 : index
      %c0_119 = arith.constant 0 : index
      %220 = vector.load %arg1[%c0_117, %219, %c0_118, %c0_119] : memref<1x20x4x512xbf16, #tpu.memory_space<vmem>>, vector<1x1x4x512xbf16>
      %221 = vector.shape_cast %220 : vector<1x1x4x512xbf16> to vector<4x512xbf16>
      %222 = vector.extract_strided_slice %221 {offsets = [0, 0], sizes = [4, 400], strides = [1, 1]} : vector<4x512xbf16> to vector<4x400xbf16>
      %c400 = arith.constant 400 : index
      %c0_120 = arith.constant 0 : index
      %223 = vector.load %arg5[%c400, %c0_120] : memref<500x400xbf16, #tpu.memory_space<vmem>>, vector<4x400xbf16>
      tpu.vector_store %arg5[%c400, %c0_120], %222 {strides = array<i32>} : memref<500x400xbf16, #tpu.memory_space<vmem>>, vector<4x400xbf16>,
      %224 = vector.extract_strided_slice %221 {offsets = [0, 1], sizes = [4, 400], strides = [1, 1]} : vector<4x512xbf16> to vector<4x400xbf16>
      %c404 = arith.constant 404 : index
      %c0_121 = arith.constant 0 : index
      %225 = vector.load %arg5[%c404, %c0_121] : memref<500x400xbf16, #tpu.memory_space<vmem>>, vector<4x400xbf16>
      tpu.vector_store %arg5[%c404, %c0_121], %224 {strides = array<i32>} : memref<500x400xbf16, #tpu.memory_space<vmem>>, vector<4x400xbf16>,
      %226 = vector.extract_strided_slice %221 {offsets = [0, 2], sizes = [4, 400], strides = [1, 1]} : vector<4x512xbf16> to vector<4x400xbf16>
      %c408 = arith.constant 408 : index
      %c0_122 = arith.constant 0 : index
      %227 = vector.load %arg5[%c408, %c0_122] : memref<500x400xbf16, #tpu.memory_space<vmem>>, vector<4x400xbf16>
      tpu.vector_store %arg5[%c408, %c0_122], %226 {strides = array<i32>} : memref<500x400xbf16, #tpu.memory_space<vmem>>, vector<4x400xbf16>,
      %228 = vector.extract_strided_slice %221 {offsets = [0, 3], sizes = [4, 400], strides = [1, 1]} : vector<4x512xbf16> to vector<4x400xbf16>
      %c412 = arith.constant 412 : index
      %c0_123 = arith.constant 0 : index
      %229 = vector.load %arg5[%c412, %c0_123] : memref<500x400xbf16, #tpu.memory_space<vmem>>, vector<4x400xbf16>
      tpu.vector_store %arg5[%c412, %c0_123], %228 {strides = array<i32>} : memref<500x400xbf16, #tpu.memory_space<vmem>>, vector<4x400xbf16>,
      %230 = vector.extract_strided_slice %221 {offsets = [0, 4], sizes = [4, 400], strides = [1, 1]} : vector<4x512xbf16> to vector<4x400xbf16>
      %c416 = arith.constant 416 : index
      %c0_124 = arith.constant 0 : index
      %231 = vector.load %arg5[%c416, %c0_124] : memref<500x400xbf16, #tpu.memory_space<vmem>>, vector<4x400xbf16>
      tpu.vector_store %arg5[%c416, %c0_124], %230 {strides = array<i32>} : memref<500x400xbf16, #tpu.memory_space<vmem>>, vector<4x400xbf16>,
      %232 = vector.extract_strided_slice %221 {offsets = [0, 20], sizes = [4, 400], strides = [1, 1]} : vector<4x512xbf16> to vector<4x400xbf16>
      %c420 = arith.constant 420 : index
      %c0_125 = arith.constant 0 : index
      %233 = vector.load %arg5[%c420, %c0_125] : memref<500x400xbf16, #tpu.memory_space<vmem>>, vector<4x400xbf16>
      tpu.vector_store %arg5[%c420, %c0_125], %232 {strides = array<i32>} : memref<500x400xbf16, #tpu.memory_space<vmem>>, vector<4x400xbf16>,
      %234 = vector.extract_strided_slice %221 {offsets = [0, 21], sizes = [4, 400], strides = [1, 1]} : vector<4x512xbf16> to vector<4x400xbf16>
      %c424 = arith.constant 424 : index
      %c0_126 = arith.constant 0 : index
      %235 = vector.load %arg5[%c424, %c0_126] : memref<500x400xbf16, #tpu.memory_space<vmem>>, vector<4x400xbf16>
      tpu.vector_store %arg5[%c424, %c0_126], %234 {strides = array<i32>} : memref<500x400xbf16, #tpu.memory_space<vmem>>, vector<4x400xbf16>,
      %236 = vector.extract_strided_slice %221 {offsets = [0, 22], sizes = [4, 400], strides = [1, 1]} : vector<4x512xbf16> to vector<4x400xbf16>
      %c428 = arith.constant 428 : index
      %c0_127 = arith.constant 0 : index
      %237 = vector.load %arg5[%c428, %c0_127] : memref<500x400xbf16, #tpu.memory_space<vmem>>, vector<4x400xbf16>
      tpu.vector_store %arg5[%c428, %c0_127], %236 {strides = array<i32>} : memref<500x400xbf16, #tpu.memory_space<vmem>>, vector<4x400xbf16>,
      %238 = vector.extract_strided_slice %221 {offsets = [0, 23], sizes = [4, 400], strides = [1, 1]} : vector<4x512xbf16> to vector<4x400xbf16>
      %c432 = arith.constant 432 : index
      %c0_128 = arith.constant 0 : index
      %239 = vector.load %arg5[%c432, %c0_128] : memref<500x400xbf16, #tpu.memory_space<vmem>>, vector<4x400xbf16>
      tpu.vector_store %arg5[%c432, %c0_128], %238 {strides = array<i32>} : memref<500x400xbf16, #tpu.memory_space<vmem>>, vector<4x400xbf16>,
      %240 = vector.extract_strided_slice %221 {offsets = [0, 24], sizes = [4, 400], strides = [1, 1]} : vector<4x512xbf16> to vector<4x400xbf16>
      %c436 = arith.constant 436 : index
      %c0_129 = arith.constant 0 : index
      %241 = vector.load %arg5[%c436, %c0_129] : memref<500x400xbf16, #tpu.memory_space<vmem>>, vector<4x400xbf16>
      tpu.vector_store %arg5[%c436, %c0_129], %240 {strides = array<i32>} : memref<500x400xbf16, #tpu.memory_space<vmem>>, vector<4x400xbf16>,
      %242 = vector.extract_strided_slice %221 {offsets = [0, 40], sizes = [4, 400], strides = [1, 1]} : vector<4x512xbf16> to vector<4x400xbf16>
      %c440 = arith.constant 440 : index
      %c0_130 = arith.constant 0 : index
      %243 = vector.load %arg5[%c440, %c0_130] : memref<500x400xbf16, #tpu.memory_space<vmem>>, vector<4x400xbf16>
      tpu.vector_store %arg5[%c440, %c0_130], %242 {strides = array<i32>} : memref<500x400xbf16, #tpu.memory_space<vmem>>, vector<4x400xbf16>,
      %244 = vector.extract_strided_slice %221 {offsets = [0, 41], sizes = [4, 400], strides = [1, 1]} : vector<4x512xbf16> to vector<4x400xbf16>
      %c444 = arith.constant 444 : index
      %c0_131 = arith.constant 0 : index
      %245 = vector.load %arg5[%c444, %c0_131] : memref<500x400xbf16, #tpu.memory_space<vmem>>, vector<4x400xbf16>
      tpu.vector_store %arg5[%c444, %c0_131], %244 {strides = array<i32>} : memref<500x400xbf16, #tpu.memory_space<vmem>>, vector<4x400xbf16>,
      %246 = vector.extract_strided_slice %221 {offsets = [0, 42], sizes = [4, 400], strides = [1, 1]} : vector<4x512xbf16> to vector<4x400xbf16>
      %c448 = arith.constant 448 : index
      %c0_132 = arith.constant 0 : index
      %247 = vector.load %arg5[%c448, %c0_132] : memref<500x400xbf16, #tpu.memory_space<vmem>>, vector<4x400xbf16>
      tpu.vector_store %arg5[%c448, %c0_132], %246 {strides = array<i32>} : memref<500x400xbf16, #tpu.memory_space<vmem>>, vector<4x400xbf16>,
      %248 = vector.extract_strided_slice %221 {offsets = [0, 43], sizes = [4, 400], strides = [1, 1]} : vector<4x512xbf16> to vector<4x400xbf16>
      %c452 = arith.constant 452 : index
      %c0_133 = arith.constant 0 : index
      %249 = vector.load %arg5[%c452, %c0_133] : memref<500x400xbf16, #tpu.memory_space<vmem>>, vector<4x400xbf16>
      tpu.vector_store %arg5[%c452, %c0_133], %248 {strides = array<i32>} : memref<500x400xbf16, #tpu.memory_space<vmem>>, vector<4x400xbf16>,
      %250 = vector.extract_strided_slice %221 {offsets = [0, 44], sizes = [4, 400], strides = [1, 1]} : vector<4x512xbf16> to vector<4x400xbf16>
      %c456 = arith.constant 456 : index
      %c0_134 = arith.constant 0 : index
      %251 = vector.load %arg5[%c456, %c0_134] : memref<500x400xbf16, #tpu.memory_space<vmem>>, vector<4x400xbf16>
      tpu.vector_store %arg5[%c456, %c0_134], %250 {strides = array<i32>} : memref<500x400xbf16, #tpu.memory_space<vmem>>, vector<4x400xbf16>,
      %252 = vector.extract_strided_slice %221 {offsets = [0, 60], sizes = [4, 400], strides = [1, 1]} : vector<4x512xbf16> to vector<4x400xbf16>
      %c460 = arith.constant 460 : index
      %c0_135 = arith.constant 0 : index
      %253 = vector.load %arg5[%c460, %c0_135] : memref<500x400xbf16, #tpu.memory_space<vmem>>, vector<4x400xbf16>
      tpu.vector_store %arg5[%c460, %c0_135], %252 {strides = array<i32>} : memref<500x400xbf16, #tpu.memory_space<vmem>>, vector<4x400xbf16>,
      %254 = vector.extract_strided_slice %221 {offsets = [0, 61], sizes = [4, 400], strides = [1, 1]} : vector<4x512xbf16> to vector<4x400xbf16>
      %c464 = arith.constant 464 : index
      %c0_136 = arith.constant 0 : index
      %255 = vector.load %arg5[%c464, %c0_136] : memref<500x400xbf16, #tpu.memory_space<vmem>>, vector<4x400xbf16>
      tpu.vector_store %arg5[%c464, %c0_136], %254 {strides = array<i32>} : memref<500x400xbf16, #tpu.memory_space<vmem>>, vector<4x400xbf16>,
      %256 = vector.extract_strided_slice %221 {offsets = [0, 62], sizes = [4, 400], strides = [1, 1]} : vector<4x512xbf16> to vector<4x400xbf16>
      %c468 = arith.constant 468 : index
      %c0_137 = arith.constant 0 : index
      %257 = vector.load %arg5[%c468, %c0_137] : memref<500x400xbf16, #tpu.memory_space<vmem>>, vector<4x400xbf16>
      tpu.vector_store %arg5[%c468, %c0_137], %256 {strides = array<i32>} : memref<500x400xbf16, #tpu.memory_space<vmem>>, vector<4x400xbf16>,
      %258 = vector.extract_strided_slice %221 {offsets = [0, 63], sizes = [4, 400], strides = [1, 1]} : vector<4x512xbf16> to vector<4x400xbf16>
      %c472 = arith.constant 472 : index
      %c0_138 = arith.constant 0 : index
      %259 = vector.load %arg5[%c472, %c0_138] : memref<500x400xbf16, #tpu.memory_space<vmem>>, vector<4x400xbf16>
      tpu.vector_store %arg5[%c472, %c0_138], %258 {strides = array<i32>} : memref<500x400xbf16, #tpu.memory_space<vmem>>, vector<4x400xbf16>,
      %260 = vector.extract_strided_slice %221 {offsets = [0, 64], sizes = [4, 400], strides = [1, 1]} : vector<4x512xbf16> to vector<4x400xbf16>
      %c476 = arith.constant 476 : index
      %c0_139 = arith.constant 0 : index
      %261 = vector.load %arg5[%c476, %c0_139] : memref<500x400xbf16, #tpu.memory_space<vmem>>, vector<4x400xbf16>
      tpu.vector_store %arg5[%c476, %c0_139], %260 {strides = array<i32>} : memref<500x400xbf16, #tpu.memory_space<vmem>>, vector<4x400xbf16>,
      %262 = vector.extract_strided_slice %221 {offsets = [0, 80], sizes = [4, 400], strides = [1, 1]} : vector<4x512xbf16> to vector<4x400xbf16>
      %c480 = arith.constant 480 : index
      %c0_140 = arith.constant 0 : index
      %263 = vector.load %arg5[%c480, %c0_140] : memref<500x400xbf16, #tpu.memory_space<vmem>>, vector<4x400xbf16>
      tpu.vector_store %arg5[%c480, %c0_140], %262 {strides = array<i32>} : memref<500x400xbf16, #tpu.memory_space<vmem>>, vector<4x400xbf16>,
      %264 = vector.extract_strided_slice %221 {offsets = [0, 81], sizes = [4, 400], strides = [1, 1]} : vector<4x512xbf16> to vector<4x400xbf16>
      %c484 = arith.constant 484 : index
      %c0_141 = arith.constant 0 : index
      %265 = vector.load %arg5[%c484, %c0_141] : memref<500x400xbf16, #tpu.memory_space<vmem>>, vector<4x400xbf16>
      tpu.vector_store %arg5[%c484, %c0_141], %264 {strides = array<i32>} : memref<500x400xbf16, #tpu.memory_space<vmem>>, vector<4x400xbf16>,
      %266 = vector.extract_strided_slice %221 {offsets = [0, 82], sizes = [4, 400], strides = [1, 1]} : vector<4x512xbf16> to vector<4x400xbf16>
      %c488 = arith.constant 488 : index
      %c0_142 = arith.constant 0 : index
      %267 = vector.load %arg5[%c488, %c0_142] : memref<500x400xbf16, #tpu.memory_space<vmem>>, vector<4x400xbf16>
      tpu.vector_store %arg5[%c488, %c0_142], %266 {strides = array<i32>} : memref<500x400xbf16, #tpu.memory_space<vmem>>, vector<4x400xbf16>,
      %268 = vector.extract_strided_slice %221 {offsets = [0, 83], sizes = [4, 400], strides = [1, 1]} : vector<4x512xbf16> to vector<4x400xbf16>
      %c492 = arith.constant 492 : index
      %c0_143 = arith.constant 0 : index
      %269 = vector.load %arg5[%c492, %c0_143] : memref<500x400xbf16, #tpu.memory_space<vmem>>, vector<4x400xbf16>
      tpu.vector_store %arg5[%c492, %c0_143], %268 {strides = array<i32>} : memref<500x400xbf16, #tpu.memory_space<vmem>>, vector<4x400xbf16>,
      %270 = vector.extract_strided_slice %221 {offsets = [0, 84], sizes = [4, 400], strides = [1, 1]} : vector<4x512xbf16> to vector<4x400xbf16>
      %c496 = arith.constant 496 : index
      %c0_144 = arith.constant 0 : index
      %271 = vector.load %arg5[%c496, %c0_144] : memref<500x400xbf16, #tpu.memory_space<vmem>>, vector<4x400xbf16>
      tpu.vector_store %arg5[%c496, %c0_144], %270 {strides = array<i32>} : memref<500x400xbf16, #tpu.memory_space<vmem>>, vector<4x400xbf16>,
      %c0_145 = arith.constant 0 : index
      %c0_146 = arith.constant 0 : index
      %272 = vector.load %arg2[%c0_145, %c0_146] : memref<8x500xbf16, #tpu.memory_space<vmem>>, vector<8x500xbf16>
      %c0_147 = arith.constant 0 : index
      %c0_148 = arith.constant 0 : index
      %273 = vector.load %arg5[%c0_147, %c0_148] : memref<500x400xbf16, #tpu.memory_space<vmem>>, vector<500x400xbf16>
      %cst = arith.constant dense<0.000000e+00> : vector<8x400xf32>
      %274 = tpu.matmul %272, %273, %cst {dimension_numbers = #tpu.dot_dimension_numbers<[1], [0], [0], [1], [0, 0, 1, 1], [], []>} : vector<8x500xbf16>, vector<500x400xbf16>, vector<8x400xf32> -> vector<8x400xf32>
      %275 = vector.broadcast %0 : vector<8x1xf32> to vector<8x400xf32>
      %276 = arith.addf %274, %275 : vector<8x400xf32>
      %cst_149 = arith.constant 0.000000e+00 : f32
      %277 = vector.broadcast %cst_149 : f32 to vector<8x400xf32>
      %278 = arith.maximumf %276, %277 : vector<8x400xf32>
      %279 = vector.extract_strided_slice %278 {offsets = [0, 0], sizes = [8, 16], strides = [1, 1]} : vector<8x400xf32> to vector<8x16xf32>
      %280 = vector.extract_strided_slice %278 {offsets = [0, 20], sizes = [8, 16], strides = [1, 1]} : vector<8x400xf32> to vector<8x16xf32>
      %281 = vector.extract_strided_slice %278 {offsets = [0, 40], sizes = [8, 16], strides = [1, 1]} : vector<8x400xf32> to vector<8x16xf32>
      %282 = vector.extract_strided_slice %278 {offsets = [0, 60], sizes = [8, 16], strides = [1, 1]} : vector<8x400xf32> to vector<8x16xf32>
      %283 = vector.extract_strided_slice %278 {offsets = [0, 80], sizes = [8, 16], strides = [1, 1]} : vector<8x400xf32> to vector<8x16xf32>
      %284 = vector.extract_strided_slice %278 {offsets = [0, 100], sizes = [8, 16], strides = [1, 1]} : vector<8x400xf32> to vector<8x16xf32>
      %285 = vector.extract_strided_slice %278 {offsets = [0, 120], sizes = [8, 16], strides = [1, 1]} : vector<8x400xf32> to vector<8x16xf32>
      %286 = vector.extract_strided_slice %278 {offsets = [0, 140], sizes = [8, 16], strides = [1, 1]} : vector<8x400xf32> to vector<8x16xf32>
      %287 = vector.extract_strided_slice %278 {offsets = [0, 160], sizes = [8, 16], strides = [1, 1]} : vector<8x400xf32> to vector<8x16xf32>
      %288 = vector.extract_strided_slice %278 {offsets = [0, 180], sizes = [8, 16], strides = [1, 1]} : vector<8x400xf32> to vector<8x16xf32>
      %289 = vector.extract_strided_slice %278 {offsets = [0, 200], sizes = [8, 16], strides = [1, 1]} : vector<8x400xf32> to vector<8x16xf32>
      %290 = vector.extract_strided_slice %278 {offsets = [0, 220], sizes = [8, 16], strides = [1, 1]} : vector<8x400xf32> to vector<8x16xf32>
      %291 = vector.extract_strided_slice %278 {offsets = [0, 240], sizes = [8, 16], strides = [1, 1]} : vector<8x400xf32> to vector<8x16xf32>
      %292 = vector.extract_strided_slice %278 {offsets = [0, 260], sizes = [8, 16], strides = [1, 1]} : vector<8x400xf32> to vector<8x16xf32>
      %293 = vector.extract_strided_slice %278 {offsets = [0, 280], sizes = [8, 16], strides = [1, 1]} : vector<8x400xf32> to vector<8x16xf32>
      %294 = vector.extract_strided_slice %278 {offsets = [0, 300], sizes = [8, 16], strides = [1, 1]} : vector<8x400xf32> to vector<8x16xf32>
      %295 = tpu.concatenate %279, %280, %281, %282, %283, %284, %285, %286, %287, %288, %289, %290, %291, %292, %293, %294 in 1 : vector<8x16xf32>, vector<8x16xf32>, vector<8x16xf32>, vector<8x16xf32>, vector<8x16xf32>, vector<8x16xf32>, vector<8x16xf32>, vector<8x16xf32>, vector<8x16xf32>, vector<8x16xf32>, vector<8x16xf32>, vector<8x16xf32>, vector<8x16xf32>, vector<8x16xf32>, vector<8x16xf32>, vector<8x16xf32> -> vector<8x256xf32>
      %c256_i32 = arith.constant 256 : i32
      %296 = arith.muli %arg6, %c256_i32 : i32
      %297 = tpu.assume_multiple %296, 256 : i32
      %c0_150 = arith.constant 0 : index
      %c0_151 = arith.constant 0 : index
      %298 = arith.index_cast %297 : i32 to index
      %299 = vector.load %arg4[%c0_150, %c0_151, %298] : memref<1x8x4096xf32, #tpu.memory_space<vmem>>, vector<1x8x256xf32>
      %300 = vector.shape_cast %299 : vector<1x8x256xf32> to vector<8x256xf32>
      %301 = vector.shape_cast %295 : vector<8x256xf32> to vector<1x8x256xf32>
      tpu.vector_store %arg4[%c0_150, %c0_151, %298], %301 {strides = array<i32>} : memref<1x8x4096xf32, #tpu.memory_space<vmem>>, vector<1x8x256xf32>,
    }
    %c16_i32_1 = arith.constant 16 : i32
    return
  }
  func.func @transform_0(%arg0: i32) -> (i32, i32, i32, i32) {
    %c0_i32 = arith.constant 0 : i32
    %c0_i32_0 = arith.constant 0 : i32
    %c0_i32_1 = arith.constant 0 : i32
    %c0_i32_2 = arith.constant 0 : i32
    return %arg0, %c0_i32, %c0_i32_0, %c0_i32_1 : i32, i32, i32, i32
  }
  func.func @transform_1(%arg0: i32) -> (i32, i32) {
    %c0_i32 = arith.constant 0 : i32
    %c0_i32_0 = arith.constant 0 : i32
    %c0_i32_1 = arith.constant 0 : i32
    return %c0_i32, %c0_i32_0 : i32, i32
  }
  func.func @transform_2(%arg0: i32) -> (i32, i32) {
    %c0_i32 = arith.constant 0 : i32
    %c0_i32_0 = arith.constant 0 : i32
    %c0_i32_1 = arith.constant 0 : i32
    return %c0_i32, %c0_i32_0 : i32, i32
  }
  func.func @transform_3(%arg0: i32) -> (i32, i32, i32) {
    %c0_i32 = arith.constant 0 : i32
    %c0_i32_0 = arith.constant 0 : i32
    %c0_i32_1 = arith.constant 0 : i32
    return %arg0, %c0_i32, %c0_i32_0 : i32, i32, i32
  }
}

</mosaic_0001>

<llo_original>
// kernel: input_block_forward.1
$region0: #{input_block_forward.1}
  #allocation0 [shape = 'u32[]', space=smem, size = 0x4, offset = 0x4, fixed_abs, tag = 'smem constant byte address 0x4 - core index']
  #allocation1 [shape = 'u32[144,128]{1,0:T(1,128)}', space=vmem, size = 0x12000, scoped, tag = 'internal scratch']
  #allocation2 [shape = 'bf16[500,400]{1,0:T(8,128)(2,1)}', space=vmem, size = 0x7e000, scoped, tag = 'scratch operand']
  %s0 = inlined_call_operand.vmem [shape: bf16[2,20,4,512], index: 0, kind: input, shape index: {}]
  %s1 = inlined_call_operand.vmem [shape: bf16[8,500], index: 1, kind: input, shape index: {}]
  %s2 = inlined_call_operand.vmem [shape: f32[8,1], index: 2, kind: input, shape index: {}]
  %s3 = inlined_call_operand.vmem [shape: f32[2,8,4096], index: 3, kind: output, shape index: {}]
  %s4 = sld [smem:[#allocation0]]
  $region52: #{input_block_forward.1} parent=0
    _
  %s6 = ssub.s32 1, %s4
  %s7 = scalar_select 0, %s6, %s4
  loop: start=0, step=1, limit=4
  $region2: #{input_block_forward.1} parent=0 // loop_pre_header
    _
  $region3: #{input_block_forward.1} parent=0 // loop_header
    %s9 = sphi 0, %s13
    %p10 = scmp.ge.s32.totalorder %s9, 4
    %s19 = sphi 0, %s21
    %s22 = sphi 0, %s19
    %s23 = sphi 0, %s22
    %s39 = sphi 0, %s23
    %s43 = sphi 0, %s43
    %s45 = sphi 0, %s43
    %s46 = sphi 0, %s45
    %s60 = sphi 0, %s46
    %s64 = sphi 0, %s64
    %s66 = sphi 0, %s64
    %s67 = sphi 0, %s66
    %s81 = sphi 0, %s67
    %s87 = sphi 0, %s89
    %s90 = sphi 0, %s87
    %s91 = sphi 0, %s90
    %s107 = sphi 0, %s91
  $region4: #{input_block_forward.1} parent=0 // loop_header_branch
    %12 = sbr.rel (%p10) target = $region8
  $region5: #{input_block_forward.1} parent=0 // loop_body
    %s14 = ssub.s32 %s9, 1
    %s15 = ssub.s32 %s9, 2
    %s16 = sadd.s32 %s9, 1
    %s17 = ssub.s32 %s9, %s16
    %p18 = scmp.eq.s32.totalorder %s17, 0
    %s20 = sadd.s32 %s19, 1
    %s21 = scalar_select %p18, %s19, %s20
    %p24 = pneg %p18
    %p25 = scmp.eq.s32.totalorder %s9, 1
    %p26 = por %p24, %p25
    %p27 = scmp.ne.s32.totalorder %s19, %s22
    %p28 = scmp.eq.s32.totalorder %s9, 0
    %p29 = por %p27, %p28
    %p30 = scmp.ne.s32.totalorder %s19, %s22
    %p31 = scmp.eq.s32.totalorder %s14, 1
    %p32 = por %p30, %p31
    %p33 = scmp.ne.s32.totalorder %s22, %s23
    %p34 = scmp.eq.s32.totalorder %s14, 0
    %p35 = por %p33, %p34
    %p36 = scmp.ne.s32.totalorder %s22, %s23
    %p37 = scmp.eq.s32.totalorder %s15, 1
    %p38 = por %p36, %p37
    %p40 = scmp.ne.s32.totalorder %s23, %s39
    %p41 = scmp.eq.s32.totalorder %s15, 0
    %p42 = por %p40, %p41
    %s44 = sadd.s32 %s43, 1
    %p47 = scmp.eq.s32.totalorder %s9, 1
    %p48 = scmp.ne.s32.totalorder %s43, %s45
    %p49 = scmp.eq.s32.totalorder %s9, 0
    %p50 = por %p48, %p49
    %p51 = scmp.ne.s32.totalorder %s43, %s45
    %p52 = scmp.eq.s32.totalorder %s14, 1
    %p53 = por %p51, %p52
    %p54 = scmp.ne.s32.totalorder %s45, %s46
    %p55 = scmp.eq.s32.totalorder %s14, 0
    %p56 = por %p54, %p55
    %p57 = scmp.ne.s32.totalorder %s45, %s46
    %p58 = scmp.eq.s32.totalorder %s15, 1
    %p59 = por %p57, %p58
    %p61 = scmp.ne.s32.totalorder %s46, %s60
    %p62 = scmp.eq.s32.totalorder %s15, 0
    %p63 = por %p61, %p62
    %s65 = sadd.s32 %s64, 1
    %p68 = scmp.eq.s32.totalorder %s9, 1
    %p69 = scmp.ne.s32.totalorder %s64, %s66
    %p70 = scmp.eq.s32.totalorder %s9, 0
    %p71 = por %p69, %p70
    %p72 = scmp.ne.s32.totalorder %s64, %s66
    %p73 = scmp.eq.s32.totalorder %s14, 1
    %p74 = por %p72, %p73
    %p75 = scmp.ne.s32.totalorder %s66, %s67
    %p76 = scmp.eq.s32.totalorder %s14, 0
    %p77 = por %p75, %p76
    %p78 = scmp.ne.s32.totalorder %s66, %s67
    %p79 = scmp.eq.s32.totalorder %s15, 1
    %p80 = por %p78, %p79
    %p82 = scmp.ne.s32.totalorder %s67, %s81
    %p83 = scmp.eq.s32.totalorder %s15, 0
    %p84 = por %p82, %p83
    %s85 = ssub.s32 %s9, %s16
    %p86 = scmp.eq.s32.totalorder %s85, 0
    %s88 = sadd.s32 %s87, 1
    %s89 = scalar_select %p86, %s87, %s88
    %p92 = pneg %p86
    %p93 = scmp.eq.s32.totalorder %s9, 1
    %p94 = por %p92, %p93
    %p95 = scmp.ne.s32.totalorder %s87, %s90
    %p96 = scmp.eq.s32.totalorder %s9, 0
    %p97 = por %p95, %p96
    %p98 = scmp.ne.s32.totalorder %s87, %s90
    %p99 = scmp.eq.s32.totalorder %s14, 1
    %p100 = por %p98, %p99
    %p101 = scmp.ne.s32.totalorder %s90, %s91
    %p102 = scmp.eq.s32.totalorder %s14, 0
    %p103 = por %p101, %p102
    %p104 = scmp.ne.s32.totalorder %s90, %s91
    %p105 = scmp.eq.s32.totalorder %s15, 1
    %p106 = por %p104, %p105
    %p108 = scmp.ne.s32.totalorder %s91, %s107
    %p109 = scmp.eq.s32.totalorder %s15, 0
    %p110 = por %p108, %p109
    %p111 = scmp.le.s32.totalorder 1, %s9
    %p112 = scmp.lt.s32.totalorder %s9, 3
    %p113 = pnand %p111, %p112
    %p114 = pneg %p113
    // Predicated region
    $region9: #{input_block_forward.1} parent=5 // pred_check
      _
    $region10: #{input_block_forward.1} parent=5 // pred_check_branch
      %116 = sbr.rel (%p113) target = $region12
    $region11: #{input_block_forward.1} parent=5 // pred_region
      %s117 = ssub.s32 %s9, 1
      // Predicated region
      $region13: #{input_block_forward.1} parent=11 // pred_check
        %p118 = pneg %p56
      $region14: #{input_block_forward.1} parent=11 // pred_check_branch
        %120 = sbr.rel (%p118) target = $region16
      $region15: #{input_block_forward.1} parent=11 // pred_region
        _
      $region16: #{input_block_forward.1} parent=11 // pred_fallthru
        _
      // Predicated region
      $region17: #{input_block_forward.1} parent=11 // pred_check
        %p121 = pneg %p77
      $region18: #{input_block_forward.1} parent=11 // pred_check_branch
        %123 = sbr.rel (%p121) target = $region20
      $region19: #{input_block_forward.1} parent=11 // pred_region
        _
      $region20: #{input_block_forward.1} parent=11 // pred_fallthru
        _
    $region12: #{input_block_forward.1} parent=5 // pred_fallthru
      _
    %p124 = scmp.lt.s32.totalorder %s9, 2
    // Predicated region
    $region21: #{input_block_forward.1} parent=5 // pred_check
      %p125 = pneg %p124
    $region22: #{input_block_forward.1} parent=5 // pred_check_branch
      %127 = sbr.rel (%p125) target = $region24
    $region23: #{input_block_forward.1} parent=5 // pred_region
      // Predicated region
      $region25: #{input_block_forward.1} parent=23 // pred_check
        %p128 = pneg %p29
      $region26: #{input_block_forward.1} parent=23 // pred_check_branch
        %130 = sbr.rel (%p128) target = $region28
      $region27: #{input_block_forward.1} parent=23 // pred_region
        %p131 = scmp.lt.s32.totalorder %s9, 1
        %s132 = scalar_select %p131, %s9, 1
        %s133 = smul.addr %s132, 80
        %s134 = smul.addr %s133, 2
        %s135 = scalar_lea.vmem %s0, %s134
      $region28: #{input_block_forward.1} parent=23 // pred_fallthru
        _
    $region24: #{input_block_forward.1} parent=5 // pred_fallthru
      _
    %p136 = scmp.le.s32.totalorder 1, %s9
    %p137 = scmp.lt.s32.totalorder %s9, 3
    %p138 = pnand %p136, %p137
    %p139 = pneg %p138
    // Predicated region
    $region29: #{input_block_forward.1} parent=5 // pred_check
      _
    $region30: #{input_block_forward.1} parent=5 // pred_check_branch
      %141 = sbr.rel (%p138) target = $region32
    $region31: #{input_block_forward.1} parent=5 // pred_region
      %s142 = ssub.s32 %s9, 1
      %p143 = scmp.lt.s32.totalorder %s14, 1
      %s144 = scalar_select %p143, %s14, 1
      %s145 = smul.addr %s144, 80
      %s146 = smul.addr %s145, 2
      %s147 = scalar_lea.vmem %s0, %s146
      %p148 = pneg %p35
      %p149 = pneg %p32
      %p150 = pneg %p56
      %p151 = pneg %p53
      %p152 = pneg %p77
      %p153 = pneg %p74
      %p154 = pneg %p103
      %p155 = pneg %p100
      %p156 = scmp.lt.s32.totalorder %s14, 1
      %s157 = scalar_select %p156, %s14, 1
      %s158 = smul.addr %s157, 32
      %s159 = smul.addr %s158, 8
      %s160 = scalar_lea.vmem %s3, %s159
      %p161 = scmp.lt.s32.totalorder %s14, 1
      %s162 = scalar_select %p161, %s14, 1
      %s163 = smul.addr %s162, 80
      %s164 = smul.addr %s163, 2
      %s165 = scalar_lea.vmem %s0, %s164
      %p166 = scmp.lt.s32.totalorder %s14, 1
      %s167 = scalar_select %p166, %s14, 1
      %s168 = smul.addr %s167, 32
      %s169 = smul.addr %s168, 8
      %s170 = scalar_lea.vmem %s3, %s169
      %v171 = vld [vmem:[%s2] sm:$0xff]
      loop: start=0, step=1, limit=16
      $region33: #{input_block_forward.1} parent=31 // loop_pre_header
        _
      $region34: #{input_block_forward.1} parent=31 // loop_header
        %s173 = sphi 0, %s177
        %p174 = scmp.ge.s32.totalorder %s173, 16
      $region35: #{input_block_forward.1} parent=31 // loop_header_branch
        %176 = sbr.rel (%p174) target = $region39
      $region36: #{input_block_forward.1} parent=31 // loop_body
        %s178 = smul.u32 %s173, 4
        %s179 = smul.addr %s178, 2
        %s180 = scalar_lea.vmem %s165, %s179
        %v181 = vld [vmem:[%s180] sm:$0xff]
        %v183 = vcombine.high %v181, %v181
        %v185 = vunpack.c.l.s4 1983009808
        %v186 = vunpack.c.0.s8 %v185
        %v187 = vlaneseq
        %v188 = vshrl.u32 %v187, 7
        %v189 = vsub.s32 %v186, %v188
        %v190 = vrot.slane %v181, %v189
        %v192 = vunpack.c.l.s4 1983009808
        %v193 = vunpack.c.0.s8 %v192
        %v194 = vlaneseq
        %v195 = vshrl.u32 %v194, 7
        %v196 = vsub.s32 %v193, %v195
        %v197 = vrot.slane %v183, %v196
        %200 = vst [vmem:[#allocation2] sm:$0x33] %v190
        %vm201 = vcmask 1041408
        %vm202 = vcmask 128004
        %vm203 = vmor %vm202, %vm201
        %204 = vst.msk [vmem:[#allocation2 + $0x8] sm:$0x33] %vm203, %v197
        %v205 = vcombine.low %v181, %v181
        %v207 = vunpack.c.l.s4 1983009808
        %v208 = vunpack.c.0.s8 %v207
        %v209 = vlaneseq
        %v210 = vshrl.u32 %v209, 7
        %v211 = vsub.s32 %v208, %v210
        %v212 = vrot.slane %v205, %v211
        %213 = vrot.lane.b32.xlu0 %v212, 127
        %v214 = vpop.permute.xlu0 %213
        %215 = vrot.lane.b32.xlu0 %v190, 127
        %v216 = vpop.permute.xlu0 %215
        %v217 = vrot.slane %v214, 4
        %v218 = vrot.slane %v216, 4
        %vm219 = vcmask 1043456
        %v220 = vsel %vm219, %v217, %v218
        %vm221 = vcmask 1039360
        %v222 = vsel %vm221, %v214, %v220
        %v223 = vsel %vm221, %v216, %v218
        %226 = vst [vmem:[#allocation2] sm:$0xcc] %v222
        %vm227 = vcmask 1043458
        %vm228 = vcmask 130054
        %vm229 = vmor %vm228, %vm227
        %230 = vst.msk [vmem:[#allocation2 + $0x8] sm:$0xcc] %vm229, %v223
        %231 = vrot.lane.b32.xlu0 %v190, 126
        %v232 = vpop.permute.xlu0 %231
        %233 = vrot.lane.b32.xlu0 %v197, 126
        %v234 = vpop.permute.xlu0 %233
        %v235 = vrot.slane %v232, 4
        %v236 = vrot.slane %v234, 4
        %v237 = vsel %vm219, %v235, %v236
        %vm238 = vcmask 1031168
        %v239 = vsel %vm238, %v232, %v237
        %v240 = vsel %vm238, %v234, %v236
        %243 = vst [vmem:[#allocation2 + $0x10] sm:$0x33] %v239
        %244 = vst.msk [vmem:[#allocation2 + $0x18] sm:$0x33] %vm203, %v240
        %245 = vrot.lane.b32.xlu0 %v212, 125
        %v246 = vpop.permute.xlu0 %245
        %247 = vrot.lane.b32.xlu0 %v190, 125
        %v248 = vpop.permute.xlu0 %247
        %v249 = vrot.slane %v246, 4
        %v250 = vrot.slane %v248, 4
        %v251 = vsel %vm219, %v249, %v250
        %vm252 = vcmask 1022976
        %v253 = vsel %vm252, %v246, %v251
        %v254 = vsel %vm252, %v248, %v250
        %257 = vst [vmem:[#allocation2 + $0x10] sm:$0xcc] %v253
        %258 = vst.msk [vmem:[#allocation2 + $0x18] sm:$0xcc] %vm229, %v254
        %259 = vrot.lane.b32.xlu0 %v190, 124
        %v260 = vpop.permute.xlu0 %259
        %261 = vrot.lane.b32.xlu0 %v197, 124
        %v262 = vpop.permute.xlu0 %261
        %v263 = vrot.slane %v260, 4
        %v264 = vrot.slane %v262, 4
        %v265 = vsel %vm219, %v263, %v264
        %vm266 = vcmask 1014784
        %v267 = vsel %vm266, %v260, %v265
        %v268 = vsel %vm266, %v262, %v264
        %271 = vst [vmem:[#allocation2 + $0x20] sm:$0x33] %v267
        %272 = vst.msk [vmem:[#allocation2 + $0x28] sm:$0x33] %vm203, %v268
        %273 = vrot.lane.b32.xlu0 %v212, 108
        %v274 = vpop.permute.xlu0 %273
        %275 = vrot.lane.b32.xlu0 %v190, 108
        %v276 = vpop.permute.xlu0 %275
        %v277 = vrot.slane %v274, 4
        %v278 = vrot.slane %v276, 4
        %v279 = vsel %vm219, %v277, %v278
        %vm280 = vcmask 883712
        %v281 = vsel %vm280, %v274, %v279
        %v282 = vsel %vm280, %v276, %v278
        %285 = vst [vmem:[#allocation2 + $0x20] sm:$0xcc] %v281
        %286 = vst.msk [vmem:[#allocation2 + $0x28] sm:$0xcc] %vm229, %v282
        %287 = vrot.lane.b32.xlu0 %v190, 107
        %v288 = vpop.permute.xlu0 %287
        %289 = vrot.lane.b32.xlu0 %v197, 107
        %v290 = vpop.permute.xlu0 %289
        %v291 = vrot.slane %v288, 4
        %v292 = vrot.slane %v290, 4
        %v293 = vsel %vm219, %v291, %v292
        %vm294 = vcmask 875520
        %v295 = vsel %vm294, %v288, %v293
        %v296 = vsel %vm294, %v290, %v292
        %299 = vst [vmem:[#allocation2 + $0x30] sm:$0x33] %v295
        %300 = vst.msk [vmem:[#allocation2 + $0x38] sm:$0x33] %vm203, %v296
        %301 = vrot.lane.b32.xlu0 %v212, 106
        %v302 = vpop.permute.xlu0 %301
        %303 = vrot.lane.b32.xlu0 %v190, 106
        %v304 = vpop.permute.xlu0 %303
        %v305 = vrot.slane %v302, 4
        %v306 = vrot.slane %v304, 4
        %v307 = vsel %vm219, %v305, %v306
        %vm308 = vcmask 867328
        %v309 = vsel %vm308, %v302, %v307
        %v310 = vsel %vm308, %v304, %v306
        %313 = vst [vmem:[#allocation2 + $0x30] sm:$0xcc] %v309
        %314 = vst.msk [vmem:[#allocation2 + $0x38] sm:$0xcc] %vm229, %v310
        %315 = vrot.lane.b32.xlu0 %v190, 105
        %v316 = vpop.permute.xlu0 %315
        %317 = vrot.lane.b32.xlu0 %v197, 105
        %v318 = vpop.permute.xlu0 %317
        %v319 = vrot.slane %v316, 4
        %v320 = vrot.slane %v318, 4
        %v321 = vsel %vm219, %v319, %v320
        %vm322 = vcmask 859136
        %v323 = vsel %vm322, %v316, %v321
        %v324 = vsel %vm322, %v318, %v320
        %327 = vst [vmem:[#allocation2 + $0x40] sm:$0x33] %v323
        %328 = vst.msk [vmem:[#allocation2 + $0x48] sm:$0x33] %vm203, %v324
        %329 = vrot.lane.b32.xlu0 %v212, 104
        %v330 = vpop.permute.xlu0 %329
        %331 = vrot.lane.b32.xlu0 %v190, 104
        %v332 = vpop.permute.xlu0 %331
        %v333 = vrot.slane %v330, 4
        %v334 = vrot.slane %v332, 4
        %v335 = vsel %vm219, %v333, %v334
        %vm336 = vcmask 850944
        %v337 = vsel %vm336, %v330, %v335
        %v338 = vsel %vm336, %v332, %v334
        %341 = vst [vmem:[#allocation2 + $0x40] sm:$0xcc] %v337
        %342 = vst.msk [vmem:[#allocation2 + $0x48] sm:$0xcc] %vm229, %v338
        %343 = vrot.lane.b32.xlu0 %v190, 88
        %v344 = vpop.permute.xlu0 %343
        %345 = vrot.lane.b32.xlu0 %v197, 88
        %v346 = vpop.permute.xlu0 %345
        %v347 = vrot.slane %v344, 4
        %v348 = vrot.slane %v346, 4
        %v349 = vsel %vm219, %v347, %v348
        %vm350 = vcmask 719872
        %v351 = vsel %vm350, %v344, %v349
        %v352 = vsel %vm350, %v346, %v348
        %355 = vst [vmem:[#allocation2 + $0x50] sm:$0x33] %v351
        %356 = vst.msk [vmem:[#allocation2 + $0x58] sm:$0x33] %vm203, %v352
        %357 = vrot.lane.b32.xlu0 %v212, 87
        %v358 = vpop.permute.xlu0 %357
        %359 = vrot.lane.b32.xlu0 %v190, 87
        %v360 = vpop.permute.xlu0 %359
        %v361 = vrot.slane %v358, 4
        %v362 = vrot.slane %v360, 4
        %v363 = vsel %vm219, %v361, %v362
        %vm364 = vcmask 711680
        %v365 = vsel %vm364, %v358, %v363
        %v366 = vsel %vm364, %v360, %v362
        %369 = vst [vmem:[#allocation2 + $0x50] sm:$0xcc] %v365
        %370 = vst.msk [vmem:[#allocation2 + $0x58] sm:$0xcc] %vm229, %v366
        %371 = vrot.lane.b32.xlu0 %v190, 86
        %v372 = vpop.permute.xlu0 %371
        %373 = vrot.lane.b32.xlu0 %v197, 86
        %v374 = vpop.permute.xlu0 %373
        %v375 = vrot.slane %v372, 4
        %v376 = vrot.slane %v374, 4
        %v377 = vsel %vm219, %v375, %v376
        %vm378 = vcmask 703488
        %v379 = vsel %vm378, %v372, %v377
        %v380 = vsel %vm378, %v374, %v376
        %383 = vst [vmem:[#allocation2 + $0x60] sm:$0x33] %v379
        %384 = vst.msk [vmem:[#allocation2 + $0x68] sm:$0x33] %vm203, %v380
        %385 = vrot.lane.b32.xlu0 %v212, 85
        %v386 = vpop.permute.xlu0 %385
        %387 = vrot.lane.b32.xlu0 %v190, 85
        %v388 = vpop.permute.xlu0 %387
        %v389 = vrot.slane %v386, 4
        %v390 = vrot.slane %v388, 4
        %v391 = vsel %vm219, %v389, %v390
        %vm392 = vcmask 695296
        %v393 = vsel %vm392, %v386, %v391
        %v394 = vsel %vm392, %v388, %v390
        %397 = vst [vmem:[#allocation2 + $0x60] sm:$0xcc] %v393
        %398 = vst.msk [vmem:[#allocation2 + $0x68] sm:$0xcc] %vm229, %v394
        %399 = vrot.lane.b32.xlu0 %v190, 84
        %v400 = vpop.permute.xlu0 %399
        %401 = vrot.lane.b32.xlu0 %v197, 84
        %v402 = vpop.permute.xlu0 %401
        %v403 = vrot.slane %v400, 4
        %v404 = vrot.slane %v402, 4
        %v405 = vsel %vm219, %v403, %v404
        %vm406 = vcmask 687104
        %v407 = vsel %vm406, %v400, %v405
        %v408 = vsel %vm406, %v402, %v404
        %411 = vst [vmem:[#allocation2 + $0x70] sm:$0x33] %v407
        %412 = vst.msk [vmem:[#allocation2 + $0x78] sm:$0x33] %vm203, %v408
        %413 = vrot.lane.b32.xlu0 %v212, 68
        %v414 = vpop.permute.xlu0 %413
        %415 = vrot.lane.b32.xlu0 %v190, 68
        %v416 = vpop.permute.xlu0 %415
        %v417 = vrot.slane %v414, 4
        %v418 = vrot.slane %v416, 4
        %v419 = vsel %vm219, %v417, %v418
        %vm420 = vcmask 556032
        %v421 = vsel %vm420, %v414, %v419
        %v422 = vsel %vm420, %v416, %v418
        %425 = vst [vmem:[#allocation2 + $0x70] sm:$0xcc] %v421
        %426 = vst.msk [vmem:[#allocation2 + $0x78] sm:$0xcc] %vm229, %v422
        %427 = vrot.lane.b32.xlu0 %v190, 67
        %v428 = vpop.permute.xlu0 %427
        %429 = vrot.lane.b32.xlu0 %v197, 67
        %v430 = vpop.permute.xlu0 %429
        %v431 = vrot.slane %v428, 4
        %v432 = vrot.slane %v430, 4
        %v433 = vsel %vm219, %v431, %v432
        %vm434 = vcmask 547840
        %v435 = vsel %vm434, %v428, %v433
        %v436 = vsel %vm434, %v430, %v432
        %439 = vst [vmem:[#allocation2 + $0x80] sm:$0x33] %v435
        %440 = vst.msk [vmem:[#allocation2 + $0x88] sm:$0x33] %vm203, %v436
        %441 = vrot.lane.b32.xlu0 %v212, 66
        %v442 = vpop.permute.xlu0 %441
        %443 = vrot.lane.b32.xlu0 %v190, 66
        %v444 = vpop.permute.xlu0 %443
        %v445 = vrot.slane %v442, 4
        %v446 = vrot.slane %v444, 4
        %v447 = vsel %vm219, %v445, %v446
        %vm448 = vcmask 539648
        %v449 = vsel %vm448, %v442, %v447
        %v450 = vsel %vm448, %v444, %v446
        %453 = vst [vmem:[#allocation2 + $0x80] sm:$0xcc] %v449
        %454 = vst.msk [vmem:[#allocation2 + $0x88] sm:$0xcc] %vm229, %v450
        %455 = vrot.lane.b32.xlu0 %v190, 65
        %v456 = vpop.permute.xlu0 %455
        %457 = vrot.lane.b32.xlu0 %v197, 65
        %v458 = vpop.permute.xlu0 %457
        %v459 = vrot.slane %v456, 4
        %v460 = vrot.slane %v458, 4
        %v461 = vsel %vm219, %v459, %v460
        %vm462 = vcmask 531456
        %v463 = vsel %vm462, %v456, %v461
        %v464 = vsel %vm462, %v458, %v460
        %467 = vst [vmem:[#allocation2 + $0x90] sm:$0x33] %v463
        %468 = vst.msk [vmem:[#allocation2 + $0x98] sm:$0x33] %vm203, %v464
        %469 = vrot.lane.b32.xlu0 %v212, 64
        %v470 = vpop.permute.xlu0 %469
        %471 = vrot.lane.b32.xlu0 %v190, 64
        %v472 = vpop.permute.xlu0 %471
        %v473 = vrot.slane %v470, 4
        %v474 = vrot.slane %v472, 4
        %v475 = vsel %vm219, %v473, %v474
        %vm476 = vcmask 523264
        %v477 = vsel %vm476, %v470, %v475
        %v478 = vsel %vm476, %v472, %v474
        %481 = vst [vmem:[#allocation2 + $0x90] sm:$0xcc] %v477
        %482 = vst.msk [vmem:[#allocation2 + $0x98] sm:$0xcc] %vm229, %v478
        %483 = vrot.lane.b32.xlu0 %v190, 48
        %v484 = vpop.permute.xlu0 %483
        %485 = vrot.lane.b32.xlu0 %v197, 48
        %v486 = vpop.permute.xlu0 %485
        %v487 = vrot.slane %v484, 4
        %v488 = vrot.slane %v486, 4
        %v489 = vsel %vm219, %v487, %v488
        %vm490 = vcmask 392192
        %v491 = vsel %vm490, %v484, %v489
        %v492 = vsel %vm490, %v486, %v488
        %495 = vst [vmem:[#allocation2 + $0xa0] sm:$0x33] %v491
        %496 = vst.msk [vmem:[#allocation2 + $0xa8] sm:$0x33] %vm203, %v492
        %497 = vrot.lane.b32.xlu0 %v212, 47
        %v498 = vpop.permute.xlu0 %497
        %499 = vrot.lane.b32.xlu0 %v190, 47
        %v500 = vpop.permute.xlu0 %499
        %v501 = vrot.slane %v498, 4
        %v502 = vrot.slane %v500, 4
        %v503 = vsel %vm219, %v501, %v502
        %vm504 = vcmask 384000
        %v505 = vsel %vm504, %v498, %v503
        %v506 = vsel %vm504, %v500, %v502
        %509 = vst [vmem:[#allocation2 + $0xa0] sm:$0xcc] %v505
        %510 = vst.msk [vmem:[#allocation2 + $0xa8] sm:$0xcc] %vm229, %v506
        %511 = vrot.lane.b32.xlu0 %v190, 46
        %v512 = vpop.permute.xlu0 %511
        %513 = vrot.lane.b32.xlu0 %v197, 46
        %v514 = vpop.permute.xlu0 %513
        %v515 = vrot.slane %v512, 4
        %v516 = vrot.slane %v514, 4
        %v517 = vsel %vm219, %v515, %v516
        %vm518 = vcmask 375808
        %v519 = vsel %vm518, %v512, %v517
        %v520 = vsel %vm518, %v514, %v516
        %523 = vst [vmem:[#allocation2 + $0xb0] sm:$0x33] %v519
        %524 = vst.msk [vmem:[#allocation2 + $0xb8] sm:$0x33] %vm203, %v520
        %525 = vrot.lane.b32.xlu0 %v212, 45
        %v526 = vpop.permute.xlu0 %525
        %527 = vrot.lane.b32.xlu0 %v190, 45
        %v528 = vpop.permute.xlu0 %527
        %v529 = vrot.slane %v526, 4
        %v530 = vrot.slane %v528, 4
        %v531 = vsel %vm219, %v529, %v530
        %vm532 = vcmask 367616
        %v533 = vsel %vm532, %v526, %v531
        %v534 = vsel %vm532, %v528, %v530
        %537 = vst [vmem:[#allocation2 + $0xb0] sm:$0xcc] %v533
        %538 = vst.msk [vmem:[#allocation2 + $0xb8] sm:$0xcc] %vm229, %v534
        %539 = vrot.lane.b32.xlu0 %v190, 44
        %v540 = vpop.permute.xlu0 %539
        %541 = vrot.lane.b32.xlu0 %v197, 44
        %v542 = vpop.permute.xlu0 %541
        %v543 = vrot.slane %v540, 4
        %v544 = vrot.slane %v542, 4
        %v545 = vsel %vm219, %v543, %v544
        %vm546 = vcmask 359424
        %v547 = vsel %vm546, %v540, %v545
        %v548 = vsel %vm546, %v542, %v544
        %551 = vst [vmem:[#allocation2 + $0xc0] sm:$0x33] %v547
        %552 = vst.msk [vmem:[#allocation2 + $0xc8] sm:$0x33] %vm203, %v548
        %s553 = sadd.s32 %s173, 1
        %s554 = smul.u32 %s553, 4
        %s555 = smul.addr %s554, 2
        %s556 = scalar_lea.vmem %s165, %s555
        %v557 = vld [vmem:[%s556] sm:$0xff]
        %v559 = vcombine.low %v557, %v557
        %v561 = vunpack.c.l.s4 1983009808
        %v562 = vunpack.c.0.s8 %v561
        %v563 = vlaneseq
        %v564 = vshrl.u32 %v563, 7
        %v565 = vsub.s32 %v562, %v564
        %v566 = vrot.slane %v559, %v565
        %v568 = vunpack.c.l.s4 1983009808
        %v569 = vunpack.c.0.s8 %v568
        %v570 = vlaneseq
        %v571 = vshrl.u32 %v570, 7
        %v572 = vsub.s32 %v569, %v571
        %v573 = vrot.slane %v557, %v572
        %576 = vst [vmem:[#allocation2 + $0xc0] sm:$0xcc] %v566
        %577 = vst.msk [vmem:[#allocation2 + $0xc8] sm:$0xcc] %vm229, %v573
        %v578 = vcombine.high %v557, %v557
        %v580 = vunpack.c.l.s4 1983009808
        %v581 = vunpack.c.0.s8 %v580
        %v582 = vlaneseq
        %v583 = vshrl.u32 %v582, 7
        %v584 = vsub.s32 %v581, %v583
        %v585 = vrot.slane %v578, %v584
        %586 = vrot.lane.b32.xlu0 %v573, 127
        %v587 = vpop.permute.xlu0 %586
        %588 = vrot.lane.b32.xlu0 %v585, 127
        %v589 = vpop.permute.xlu0 %588
        %v590 = vrot.slane %v587, 4
        %v591 = vrot.slane %v589, 4
        %v592 = vsel %vm219, %v590, %v591
        %v593 = vsel %vm221, %v587, %v592
        %v594 = vsel %vm221, %v589, %v591
        %597 = vst [vmem:[#allocation2 + $0xd0] sm:$0x33] %v593
        %598 = vst.msk [vmem:[#allocation2 + $0xd8] sm:$0x33] %vm203, %v594
        %599 = vrot.lane.b32.xlu0 %v566, 126
        %v600 = vpop.permute.xlu0 %599
        %601 = vrot.lane.b32.xlu0 %v573, 126
        %v602 = vpop.permute.xlu0 %601
        %v603 = vrot.slane %v600, 4
        %v604 = vrot.slane %v602, 4
        %v605 = vsel %vm219, %v603, %v604
        %v606 = vsel %vm238, %v600, %v605
        %v607 = vsel %vm238, %v602, %v604
        %610 = vst [vmem:[#allocation2 + $0xd0] sm:$0xcc] %v606
        %611 = vst.msk [vmem:[#allocation2 + $0xd8] sm:$0xcc] %vm229, %v607
        %612 = vrot.lane.b32.xlu0 %v573, 125
        %v613 = vpop.permute.xlu0 %612
        %614 = vrot.lane.b32.xlu0 %v585, 125
        %v615 = vpop.permute.xlu0 %614
        %v616 = vrot.slane %v613, 4
        %v617 = vrot.slane %v615, 4
        %v618 = vsel %vm219, %v616, %v617
        %v619 = vsel %vm252, %v613, %v618
        %v620 = vsel %vm252, %v615, %v617
        %623 = vst [vmem:[#allocation2 + $0xe0] sm:$0x33] %v619
        %624 = vst.msk [vmem:[#allocation2 + $0xe8] sm:$0x33] %vm203, %v620
        %625 = vrot.lane.b32.xlu0 %v566, 124
        %v626 = vpop.permute.xlu0 %625
        %627 = vrot.lane.b32.xlu0 %v573, 124
        %v628 = vpop.permute.xlu0 %627
        %v629 = vrot.slane %v626, 4
        %v630 = vrot.slane %v628, 4
        %v631 = vsel %vm219, %v629, %v630
        %v632 = vsel %vm266, %v626, %v631
        %v633 = vsel %vm266, %v628, %v630
        %636 = vst [vmem:[#allocation2 + $0xe0] sm:$0xcc] %v632
        %637 = vst.msk [vmem:[#allocation2 + $0xe8] sm:$0xcc] %vm229, %v633
        %638 = vrot.lane.b32.xlu0 %v573, 108
        %v639 = vpop.permute.xlu0 %638
        %640 = vrot.lane.b32.xlu0 %v585, 108
        %v641 = vpop.permute.xlu0 %640
        %v642 = vrot.slane %v639, 4
        %v643 = vrot.slane %v641, 4
        %v644 = vsel %vm219, %v642, %v643
        %v645 = vsel %vm280, %v639, %v644
        %v646 = vsel %vm280, %v641, %v643
        %649 = vst [vmem:[#allocation2 + $0xf0] sm:$0x33] %v645
        %650 = vst.msk [vmem:[#allocation2 + $0xf8] sm:$0x33] %vm203, %v646
        %651 = vrot.lane.b32.xlu0 %v566, 107
        %v652 = vpop.permute.xlu0 %651
        %653 = vrot.lane.b32.xlu0 %v573, 107
        %v654 = vpop.permute.xlu0 %653
        %v655 = vrot.slane %v652, 4
        %v656 = vrot.slane %v654, 4
        %v657 = vsel %vm219, %v655, %v656
        %v658 = vsel %vm294, %v652, %v657
        %v659 = vsel %vm294, %v654, %v656
        %662 = vst [vmem:[#allocation2 + $0xf0] sm:$0xcc] %v658
        %663 = vst.msk [vmem:[#allocation2 + $0xf8] sm:$0xcc] %vm229, %v659
        %664 = vrot.lane.b32.xlu0 %v573, 106
        %v665 = vpop.permute.xlu0 %664
        %666 = vrot.lane.b32.xlu0 %v585, 106
        %v667 = vpop.permute.xlu0 %666
        %v668 = vrot.slane %v665, 4
        %v669 = vrot.slane %v667, 4
        %v670 = vsel %vm219, %v668, %v669
        %v671 = vsel %vm308, %v665, %v670
        %v672 = vsel %vm308, %v667, %v669
        %675 = vst [vmem:[#allocation2 + $0x100] sm:$0x33] %v671
        %676 = vst.msk [vmem:[#allocation2 + $0x108] sm:$0x33] %vm203, %v672
        %677 = vrot.lane.b32.xlu0 %v566, 105
        %v678 = vpop.permute.xlu0 %677
        %679 = vrot.lane.b32.xlu0 %v573, 105
        %v680 = vpop.permute.xlu0 %679
        %v681 = vrot.slane %v678, 4
        %v682 = vrot.slane %v680, 4
        %v683 = vsel %vm219, %v681, %v682
        %v684 = vsel %vm322, %v678, %v683
        %v685 = vsel %vm322, %v680, %v682
        %688 = vst [vmem:[#allocation2 + $0x100] sm:$0xcc] %v684
        %689 = vst.msk [vmem:[#allocation2 + $0x108] sm:$0xcc] %vm229, %v685
        %690 = vrot.lane.b32.xlu0 %v573, 104
        %v691 = vpop.permute.xlu0 %690
        %692 = vrot.lane.b32.xlu0 %v585, 104
        %v693 = vpop.permute.xlu0 %692
        %v694 = vrot.slane %v691, 4
        %v695 = vrot.slane %v693, 4
        %v696 = vsel %vm219, %v694, %v695
        %v697 = vsel %vm336, %v691, %v696
        %v698 = vsel %vm336, %v693, %v695
        %701 = vst [vmem:[#allocation2 + $0x110] sm:$0x33] %v697
        %702 = vst.msk [vmem:[#allocation2 + $0x118] sm:$0x33] %vm203, %v698
        %703 = vrot.lane.b32.xlu0 %v566, 88
        %v704 = vpop.permute.xlu0 %703
        %705 = vrot.lane.b32.xlu0 %v573, 88
        %v706 = vpop.permute.xlu0 %705
        %v707 = vrot.slane %v704, 4
        %v708 = vrot.slane %v706, 4
        %v709 = vsel %vm219, %v707, %v708
        %v710 = vsel %vm350, %v704, %v709
        %v711 = vsel %vm350, %v706, %v708
        %714 = vst [vmem:[#allocation2 + $0x110] sm:$0xcc] %v710
        %715 = vst.msk [vmem:[#allocation2 + $0x118] sm:$0xcc] %vm229, %v711
        %716 = vrot.lane.b32.xlu0 %v573, 87
        %v717 = vpop.permute.xlu0 %716
        %718 = vrot.lane.b32.xlu0 %v585, 87
        %v719 = vpop.permute.xlu0 %718
        %v720 = vrot.slane %v717, 4
        %v721 = vrot.slane %v719, 4
        %v722 = vsel %vm219, %v720, %v721
        %v723 = vsel %vm364, %v717, %v722
        %v724 = vsel %vm364, %v719, %v721
        %727 = vst [vmem:[#allocation2 + $0x120] sm:$0x33] %v723
        %728 = vst.msk [vmem:[#allocation2 + $0x128] sm:$0x33] %vm203, %v724
        %729 = vrot.lane.b32.xlu0 %v566, 86
        %v730 = vpop.permute.xlu0 %729
        %731 = vrot.lane.b32.xlu0 %v573, 86
        %v732 = vpop.permute.xlu0 %731
        %v733 = vrot.slane %v730, 4
        %v734 = vrot.slane %v732, 4
        %v735 = vsel %vm219, %v733, %v734
        %v736 = vsel %vm378, %v730, %v735
        %v737 = vsel %vm378, %v732, %v734
        %740 = vst [vmem:[#allocation2 + $0x120] sm:$0xcc] %v736
        %741 = vst.msk [vmem:[#allocation2 + $0x128] sm:$0xcc] %vm229, %v737
        %742 = vrot.lane.b32.xlu0 %v573, 85
        %v743 = vpop.permute.xlu0 %742
        %744 = vrot.lane.b32.xlu0 %v585, 85
        %v745 = vpop.permute.xlu0 %744
        %v746 = vrot.slane %v743, 4
        %v747 = vrot.slane %v745, 4
        %v748 = vsel %vm219, %v746, %v747
        %v749 = vsel %vm392, %v743, %v748
        %v750 = vsel %vm392, %v745, %v747
        %753 = vst [vmem:[#allocation2 + $0x130] sm:$0x33] %v749
        %754 = vst.msk [vmem:[#allocation2 + $0x138] sm:$0x33] %vm203, %v750
        %755 = vrot.lane.b32.xlu0 %v566, 84
        %v756 = vpop.permute.xlu0 %755
        %757 = vrot.lane.b32.xlu0 %v573, 84
        %v758 = vpop.permute.xlu0 %757
        %v759 = vrot.slane %v756, 4
        %v760 = vrot.slane %v758, 4
        %v761 = vsel %vm219, %v759, %v760
        %v762 = vsel %vm406, %v756, %v761
        %v763 = vsel %vm406, %v758, %v760
        %766 = vst [vmem:[#allocation2 + $0x130] sm:$0xcc] %v762
        %767 = vst.msk [vmem:[#allocation2 + $0x138] sm:$0xcc] %vm229, %v763
        %768 = vrot.lane.b32.xlu0 %v573, 68
        %v769 = vpop.permute.xlu0 %768
        %770 = vrot.lane.b32.xlu0 %v585, 68
        %v771 = vpop.permute.xlu0 %770
        %v772 = vrot.slane %v769, 4
        %v773 = vrot.slane %v771, 4
        %v774 = vsel %vm219, %v772, %v773
        %v775 = vsel %vm420, %v769, %v774
        %v776 = vsel %vm420, %v771, %v773
        %779 = vst [vmem:[#allocation2 + $0x140] sm:$0x33] %v775
        %780 = vst.msk [vmem:[#allocation2 + $0x148] sm:$0x33] %vm203, %v776
        %781 = vrot.lane.b32.xlu0 %v566, 67
        %v782 = vpop.permute.xlu0 %781
        %783 = vrot.lane.b32.xlu0 %v573, 67
        %v784 = vpop.permute.xlu0 %783
        %v785 = vrot.slane %v782, 4
        %v786 = vrot.slane %v784, 4
        %v787 = vsel %vm219, %v785, %v786
        %v788 = vsel %vm434, %v782, %v787
        %v789 = vsel %vm434, %v784, %v786
        %792 = vst [vmem:[#allocation2 + $0x140] sm:$0xcc] %v788
        %793 = vst.msk [vmem:[#allocation2 + $0x148] sm:$0xcc] %vm229, %v789
        %794 = vrot.lane.b32.xlu0 %v573, 66
        %v795 = vpop.permute.xlu0 %794
        %796 = vrot.lane.b32.xlu0 %v585, 66
        %v797 = vpop.permute.xlu0 %796
        %v798 = vrot.slane %v795, 4
        %v799 = vrot.slane %v797, 4
        %v800 = vsel %vm219, %v798, %v799
        %v801 = vsel %vm448, %v795, %v800
        %v802 = vsel %vm448, %v797, %v799
        %805 = vst [vmem:[#allocation2 + $0x150] sm:$0x33] %v801
        %806 = vst.msk [vmem:[#allocation2 + $0x158] sm:$0x33] %vm203, %v802
        %807 = vrot.lane.b32.xlu0 %v566, 65
        %v808 = vpop.permute.xlu0 %807
        %809 = vrot.lane.b32.xlu0 %v573, 65
        %v810 = vpop.permute.xlu0 %809
        %v811 = vrot.slane %v808, 4
        %v812 = vrot.slane %v810, 4
        %v813 = vsel %vm219, %v811, %v812
        %v814 = vsel %vm462, %v808, %v813
        %v815 = vsel %vm462, %v810, %v812
        %818 = vst [vmem:[#allocation2 + $0x150] sm:$0xcc] %v814
        %819 = vst.msk [vmem:[#allocation2 + $0x158] sm:$0xcc] %vm229, %v815
        %820 = vrot.lane.b32.xlu0 %v573, 64
        %v821 = vpop.permute.xlu0 %820
        %822 = vrot.lane.b32.xlu0 %v585, 64
        %v823 = vpop.permute.xlu0 %822
        %v824 = vrot.slane %v821, 4
        %v825 = vrot.slane %v823, 4
        %v826 = vsel %vm219, %v824, %v825
        %v827 = vsel %vm476, %v821, %v826
        %v828 = vsel %vm476, %v823, %v825
        %831 = vst [vmem:[#allocation2 + $0x160] sm:$0x33] %v827
        %832 = vst.msk [vmem:[#allocation2 + $0x168] sm:$0x33] %vm203, %v828
        %833 = vrot.lane.b32.xlu0 %v566, 48
        %v834 = vpop.permute.xlu0 %833
        %835 = vrot.lane.b32.xlu0 %v573, 48
        %v836 = vpop.permute.xlu0 %835
        %v837 = vrot.slane %v834, 4
        %v838 = vrot.slane %v836, 4
        %v839 = vsel %vm219, %v837, %v838
        %v840 = vsel %vm490, %v834, %v839
        %v841 = vsel %vm490, %v836, %v838
        %844 = vst [vmem:[#allocation2 + $0x160] sm:$0xcc] %v840
        %845 = vst.msk [vmem:[#allocation2 + $0x168] sm:$0xcc] %vm229, %v841
        %846 = vrot.lane.b32.xlu0 %v573, 47
        %v847 = vpop.permute.xlu0 %846
        %848 = vrot.lane.b32.xlu0 %v585, 47
        %v849 = vpop.permute.xlu0 %848
        %v850 = vrot.slane %v847, 4
        %v851 = vrot.slane %v849, 4
        %v852 = vsel %vm219, %v850, %v851
        %v853 = vsel %vm504, %v847, %v852
        %v854 = vsel %vm504, %v849, %v851
        %857 = vst [vmem:[#allocation2 + $0x170] sm:$0x33] %v853
        %858 = vst.msk [vmem:[#allocation2 + $0x178] sm:$0x33] %vm203, %v854
        %859 = vrot.lane.b32.xlu0 %v566, 46
        %v860 = vpop.permute.xlu0 %859
        %861 = vrot.lane.b32.xlu0 %v573, 46
        %v862 = vpop.permute.xlu0 %861
        %v863 = vrot.slane %v860, 4
        %v864 = vrot.slane %v862, 4
        %v865 = vsel %vm219, %v863, %v864
        %v866 = vsel %vm518, %v860, %v865
        %v867 = vsel %vm518, %v862, %v864
        %870 = vst [vmem:[#allocation2 + $0x170] sm:$0xcc] %v866
        %871 = vst.msk [vmem:[#allocation2 + $0x178] sm:$0xcc] %vm229, %v867
        %872 = vrot.lane.b32.xlu0 %v573, 45
        %v873 = vpop.permute.xlu0 %872
        %874 = vrot.lane.b32.xlu0 %v585, 45
        %v875 = vpop.permute.xlu0 %874
        %v876 = vrot.slane %v873, 4
        %v877 = vrot.slane %v875, 4
        %v878 = vsel %vm219, %v876, %v877
        %v879 = vsel %vm532, %v873, %v878
        %v880 = vsel %vm532, %v875, %v877
        %883 = vst [vmem:[#allocation2 + $0x180] sm:$0x33] %v879
        %884 = vst.msk [vmem:[#allocation2 + $0x188] sm:$0x33] %vm203, %v880
        %885 = vrot.lane.b32.xlu0 %v566, 44
        %v886 = vpop.permute.xlu0 %885
        %887 = vrot.lane.b32.xlu0 %v573, 44
        %v888 = vpop.permute.xlu0 %887
        %v889 = vrot.slane %v886, 4
        %v890 = vrot.slane %v888, 4
        %v891 = vsel %vm219, %v889, %v890
        %v892 = vsel %vm546, %v886, %v891
        %v893 = vsel %vm546, %v888, %v890
        %896 = vst [vmem:[#allocation2 + $0x180] sm:$0xcc] %v892
        %897 = vst.msk [vmem:[#allocation2 + $0x188] sm:$0xcc] %vm229, %v893
        %s898 = sadd.s32 %s173, 2
        %s899 = smul.u32 %s898, 4
        %s900 = smul.addr %s899, 2
        %s901 = scalar_lea.vmem %s165, %s900
        %v902 = vld [vmem:[%s901] sm:$0xff]
        %v904 = vcombine.high %v902, %v902
        %v906 = vunpack.c.l.s4 1983009808
        %v907 = vunpack.c.0.s8 %v906
        %v908 = vlaneseq
        %v909 = vshrl.u32 %v908, 7
        %v910 = vsub.s32 %v907, %v909
        %v911 = vrot.slane %v902, %v910
        %v913 = vunpack.c.l.s4 1983009808
        %v914 = vunpack.c.0.s8 %v913
        %v915 = vlaneseq
        %v916 = vshrl.u32 %v915, 7
        %v917 = vsub.s32 %v914, %v916
        %v918 = vrot.slane %v904, %v917
        %921 = vst [vmem:[#allocation2 + $0x190] sm:$0x33] %v911
        %922 = vst.msk [vmem:[#allocation2 + $0x198] sm:$0x33] %vm203, %v918
        %v923 = vcombine.low %v902, %v902
        %v925 = vunpack.c.l.s4 1983009808
        %v926 = vunpack.c.0.s8 %v925
        %v927 = vlaneseq
        %v928 = vshrl.u32 %v927, 7
        %v929 = vsub.s32 %v926, %v928
        %v930 = vrot.slane %v923, %v929
        %931 = vrot.lane.b32.xlu0 %v930, 127
        %v932 = vpop.permute.xlu0 %931
        %933 = vrot.lane.b32.xlu0 %v911, 127
        %v934 = vpop.permute.xlu0 %933
        %v935 = vrot.slane %v932, 4
        %v936 = vrot.slane %v934, 4
        %v937 = vsel %vm219, %v935, %v936
        %v938 = vsel %vm221, %v932, %v937
        %v939 = vsel %vm221, %v934, %v936
        %942 = vst [vmem:[#allocation2 + $0x190] sm:$0xcc] %v938
        %943 = vst.msk [vmem:[#allocation2 + $0x198] sm:$0xcc] %vm229, %v939
        %944 = vrot.lane.b32.xlu0 %v911, 126
        %v945 = vpop.permute.xlu0 %944
        %946 = vrot.lane.b32.xlu0 %v918, 126
        %v947 = vpop.permute.xlu0 %946
        %v948 = vrot.slane %v945, 4
        %v949 = vrot.slane %v947, 4
        %v950 = vsel %vm219, %v948, %v949
        %v951 = vsel %vm238, %v945, %v950
        %v952 = vsel %vm238, %v947, %v949
        %955 = vst [vmem:[#allocation2 + $0x1a0] sm:$0x33] %v951
        %956 = vst.msk [vmem:[#allocation2 + $0x1a8] sm:$0x33] %vm203, %v952
        %957 = vrot.lane.b32.xlu0 %v930, 125
        %v958 = vpop.permute.xlu0 %957
        %959 = vrot.lane.b32.xlu0 %v911, 125
        %v960 = vpop.permute.xlu0 %959
        %v961 = vrot.slane %v958, 4
        %v962 = vrot.slane %v960, 4
        %v963 = vsel %vm219, %v961, %v962
        %v964 = vsel %vm252, %v958, %v963
        %v965 = vsel %vm252, %v960, %v962
        %968 = vst [vmem:[#allocation2 + $0x1a0] sm:$0xcc] %v964
        %969 = vst.msk [vmem:[#allocation2 + $0x1a8] sm:$0xcc] %vm229, %v965
        %970 = vrot.lane.b32.xlu0 %v911, 124
        %v971 = vpop.permute.xlu0 %970
        %972 = vrot.lane.b32.xlu0 %v918, 124
        %v973 = vpop.permute.xlu0 %972
        %v974 = vrot.slane %v971, 4
        %v975 = vrot.slane %v973, 4
        %v976 = vsel %vm219, %v974, %v975
        %v977 = vsel %vm266, %v971, %v976
        %v978 = vsel %vm266, %v973, %v975
        %981 = vst [vmem:[#allocation2 + $0x1b0] sm:$0x33] %v977
        %982 = vst.msk [vmem:[#allocation2 + $0x1b8] sm:$0x33] %vm203, %v978
        %983 = vrot.lane.b32.xlu0 %v930, 108
        %v984 = vpop.permute.xlu0 %983
        %985 = vrot.lane.b32.xlu0 %v911, 108
        %v986 = vpop.permute.xlu0 %985
        %v987 = vrot.slane %v984, 4
        %v988 = vrot.slane %v986, 4
        %v989 = vsel %vm219, %v987, %v988
        %v990 = vsel %vm280, %v984, %v989
        %v991 = vsel %vm280, %v986, %v988
        %994 = vst [vmem:[#allocation2 + $0x1b0] sm:$0xcc] %v990
        %995 = vst.msk [vmem:[#allocation2 + $0x1b8] sm:$0xcc] %vm229, %v991
        %996 = vrot.lane.b32.xlu0 %v911, 107
        %v997 = vpop.permute.xlu0 %996
        %998 = vrot.lane.b32.xlu0 %v918, 107
        %v999 = vpop.permute.xlu0 %998
        %v1000 = vrot.slane %v997, 4
        %v1001 = vrot.slane %v999, 4
        %v1002 = vsel %vm219, %v1000, %v1001
        %v1003 = vsel %vm294, %v997, %v1002
        %v1004 = vsel %vm294, %v999, %v1001
        %1007 = vst [vmem:[#allocation2 + $0x1c0] sm:$0x33] %v1003
        %1008 = vst.msk [vmem:[#allocation2 + $0x1c8] sm:$0x33] %vm203, %v1004
        %1009 = vrot.lane.b32.xlu0 %v930, 106
        %v1010 = vpop.permute.xlu0 %1009
        %1011 = vrot.lane.b32.xlu0 %v911, 106
        %v1012 = vpop.permute.xlu0 %1011
        %v1013 = vrot.slane %v1010, 4
        %v1014 = vrot.slane %v1012, 4
        %v1015 = vsel %vm219, %v1013, %v1014
        %v1016 = vsel %vm308, %v1010, %v1015
        %v1017 = vsel %vm308, %v1012, %v1014
        %1020 = vst [vmem:[#allocation2 + $0x1c0] sm:$0xcc] %v1016
        %1021 = vst.msk [vmem:[#allocation2 + $0x1c8] sm:$0xcc] %vm229, %v1017
        %1022 = vrot.lane.b32.xlu0 %v911, 105
        %v1023 = vpop.permute.xlu0 %1022
        %1024 = vrot.lane.b32.xlu0 %v918, 105
        %v1025 = vpop.permute.xlu0 %1024
        %v1026 = vrot.slane %v1023, 4
        %v1027 = vrot.slane %v1025, 4
        %v1028 = vsel %vm219, %v1026, %v1027
        %v1029 = vsel %vm322, %v1023, %v1028
        %v1030 = vsel %vm322, %v1025, %v1027
        %1033 = vst [vmem:[#allocation2 + $0x1d0] sm:$0x33] %v1029
        %1034 = vst.msk [vmem:[#allocation2 + $0x1d8] sm:$0x33] %vm203, %v1030
        %1035 = vrot.lane.b32.xlu0 %v930, 104
        %v1036 = vpop.permute.xlu0 %1035
        %1037 = vrot.lane.b32.xlu0 %v911, 104
        %v1038 = vpop.permute.xlu0 %1037
        %v1039 = vrot.slane %v1036, 4
        %v1040 = vrot.slane %v1038, 4
        %v1041 = vsel %vm219, %v1039, %v1040
        %v1042 = vsel %vm336, %v1036, %v1041
        %v1043 = vsel %vm336, %v1038, %v1040
        %1046 = vst [vmem:[#allocation2 + $0x1d0] sm:$0xcc] %v1042
        %1047 = vst.msk [vmem:[#allocation2 + $0x1d8] sm:$0xcc] %vm229, %v1043
        %1048 = vrot.lane.b32.xlu0 %v911, 88
        %v1049 = vpop.permute.xlu0 %1048
        %1050 = vrot.lane.b32.xlu0 %v918, 88
        %v1051 = vpop.permute.xlu0 %1050
        %v1052 = vrot.slane %v1049, 4
        %v1053 = vrot.slane %v1051, 4
        %v1054 = vsel %vm219, %v1052, %v1053
        %v1055 = vsel %vm350, %v1049, %v1054
        %v1056 = vsel %vm350, %v1051, %v1053
        %1059 = vst [vmem:[#allocation2 + $0x1e0] sm:$0x33] %v1055
        %1060 = vst.msk [vmem:[#allocation2 + $0x1e8] sm:$0x33] %vm203, %v1056
        %1061 = vrot.lane.b32.xlu0 %v930, 87
        %v1062 = vpop.permute.xlu0 %1061
        %1063 = vrot.lane.b32.xlu0 %v911, 87
        %v1064 = vpop.permute.xlu0 %1063
        %v1065 = vrot.slane %v1062, 4
        %v1066 = vrot.slane %v1064, 4
        %v1067 = vsel %vm219, %v1065, %v1066
        %v1068 = vsel %vm364, %v1062, %v1067
        %v1069 = vsel %vm364, %v1064, %v1066
        %1072 = vst [vmem:[#allocation2 + $0x1e0] sm:$0xcc] %v1068
        %1073 = vst.msk [vmem:[#allocation2 + $0x1e8] sm:$0xcc] %vm229, %v1069
        %1074 = vrot.lane.b32.xlu0 %v911, 86
        %v1075 = vpop.permute.xlu0 %1074
        %1076 = vrot.lane.b32.xlu0 %v918, 86
        %v1077 = vpop.permute.xlu0 %1076
        %v1078 = vrot.slane %v1075, 4
        %v1079 = vrot.slane %v1077, 4
        %v1080 = vsel %vm219, %v1078, %v1079
        %v1081 = vsel %vm378, %v1075, %v1080
        %v1082 = vsel %vm378, %v1077, %v1079
        %1085 = vst [vmem:[#allocation2 + $0x1f0] sm:$0x33] %v1081
        %1086 = vst.msk [vmem:[#allocation2 + $0x1f8] sm:$0x33] %vm203, %v1082
        %1087 = vrot.lane.b32.xlu0 %v930, 85
        %v1088 = vpop.permute.xlu0 %1087
        %1089 = vrot.lane.b32.xlu0 %v911, 85
        %v1090 = vpop.permute.xlu0 %1089
        %v1091 = vrot.slane %v1088, 4
        %v1092 = vrot.slane %v1090, 4
        %v1093 = vsel %vm219, %v1091, %v1092
        %v1094 = vsel %vm392, %v1088, %v1093
        %v1095 = vsel %vm392, %v1090, %v1092
        %1098 = vst [vmem:[#allocation2 + $0x1f0] sm:$0xcc] %v1094
        %1099 = vst.msk [vmem:[#allocation2 + $0x1f8] sm:$0xcc] %vm229, %v1095
        %1100 = vrot.lane.b32.xlu0 %v911, 84
        %v1101 = vpop.permute.xlu0 %1100
        %1102 = vrot.lane.b32.xlu0 %v918, 84
        %v1103 = vpop.permute.xlu0 %1102
        %v1104 = vrot.slane %v1101, 4
        %v1105 = vrot.slane %v1103, 4
        %v1106 = vsel %vm219, %v1104, %v1105
        %v1107 = vsel %vm406, %v1101, %v1106
        %v1108 = vsel %vm406, %v1103, %v1105
        %1111 = vst [vmem:[#allocation2 + $0x200] sm:$0x33] %v1107
        %1112 = vst.msk [vmem:[#allocation2 + $0x208] sm:$0x33] %vm203, %v1108
        %1113 = vrot.lane.b32.xlu0 %v930, 68
        %v1114 = vpop.permute.xlu0 %1113
        %1115 = vrot.lane.b32.xlu0 %v911, 68
        %v1116 = vpop.permute.xlu0 %1115
        %v1117 = vrot.slane %v1114, 4
        %v1118 = vrot.slane %v1116, 4
        %v1119 = vsel %vm219, %v1117, %v1118
        %v1120 = vsel %vm420, %v1114, %v1119
        %v1121 = vsel %vm420, %v1116, %v1118
        %1124 = vst [vmem:[#allocation2 + $0x200] sm:$0xcc] %v1120
        %1125 = vst.msk [vmem:[#allocation2 + $0x208] sm:$0xcc] %vm229, %v1121
        %1126 = vrot.lane.b32.xlu0 %v911, 67
        %v1127 = vpop.permute.xlu0 %1126
        %1128 = vrot.lane.b32.xlu0 %v918, 67
        %v1129 = vpop.permute.xlu0 %1128
        %v1130 = vrot.slane %v1127, 4
        %v1131 = vrot.slane %v1129, 4
        %v1132 = vsel %vm219, %v1130, %v1131
        %v1133 = vsel %vm434, %v1127, %v1132
        %v1134 = vsel %vm434, %v1129, %v1131
        %1137 = vst [vmem:[#allocation2 + $0x210] sm:$0x33] %v1133
        %1138 = vst.msk [vmem:[#allocation2 + $0x218] sm:$0x33] %vm203, %v1134
        %1139 = vrot.lane.b32.xlu0 %v930, 66
        %v1140 = vpop.permute.xlu0 %1139
        %1141 = vrot.lane.b32.xlu0 %v911, 66
        %v1142 = vpop.permute.xlu0 %1141
        %v1143 = vrot.slane %v1140, 4
        %v1144 = vrot.slane %v1142, 4
        %v1145 = vsel %vm219, %v1143, %v1144
        %v1146 = vsel %vm448, %v1140, %v1145
        %v1147 = vsel %vm448, %v1142, %v1144
        %1150 = vst [vmem:[#allocation2 + $0x210] sm:$0xcc] %v1146
        %1151 = vst.msk [vmem:[#allocation2 + $0x218] sm:$0xcc] %vm229, %v1147
        %1152 = vrot.lane.b32.xlu0 %v911, 65
        %v1153 = vpop.permute.xlu0 %1152
        %1154 = vrot.lane.b32.xlu0 %v918, 65
        %v1155 = vpop.permute.xlu0 %1154
        %v1156 = vrot.slane %v1153, 4
        %v1157 = vrot.slane %v1155, 4
        %v1158 = vsel %vm219, %v1156, %v1157
        %v1159 = vsel %vm462, %v1153, %v1158
        %v1160 = vsel %vm462, %v1155, %v1157
        %1163 = vst [vmem:[#allocation2 + $0x220] sm:$0x33] %v1159
        %1164 = vst.msk [vmem:[#allocation2 + $0x228] sm:$0x33] %vm203, %v1160
        %1165 = vrot.lane.b32.xlu0 %v930, 64
        %v1166 = vpop.permute.xlu0 %1165
        %1167 = vrot.lane.b32.xlu0 %v911, 64
        %v1168 = vpop.permute.xlu0 %1167
        %v1169 = vrot.slane %v1166, 4
        %v1170 = vrot.slane %v1168, 4
        %v1171 = vsel %vm219, %v1169, %v1170
        %v1172 = vsel %vm476, %v1166, %v1171
        %v1173 = vsel %vm476, %v1168, %v1170
        %1176 = vst [vmem:[#allocation2 + $0x220] sm:$0xcc] %v1172
        %1177 = vst.msk [vmem:[#allocation2 + $0x228] sm:$0xcc] %vm229, %v1173
        %1178 = vrot.lane.b32.xlu0 %v911, 48
        %v1179 = vpop.permute.xlu0 %1178
        %1180 = vrot.lane.b32.xlu0 %v918, 48
        %v1181 = vpop.permute.xlu0 %1180
        %v1182 = vrot.slane %v1179, 4
        %v1183 = vrot.slane %v1181, 4
        %v1184 = vsel %vm219, %v1182, %v1183
        %v1185 = vsel %vm490, %v1179, %v1184
        %v1186 = vsel %vm490, %v1181, %v1183
        %1189 = vst [vmem:[#allocation2 + $0x230] sm:$0x33] %v1185
        %1190 = vst.msk [vmem:[#allocation2 + $0x238] sm:$0x33] %vm203, %v1186
        %1191 = vrot.lane.b32.xlu0 %v930, 47
        %v1192 = vpop.permute.xlu0 %1191
        %1193 = vrot.lane.b32.xlu0 %v911, 47
        %v1194 = vpop.permute.xlu0 %1193
        %v1195 = vrot.slane %v1192, 4
        %v1196 = vrot.slane %v1194, 4
        %v1197 = vsel %vm219, %v1195, %v1196
        %v1198 = vsel %vm504, %v1192, %v1197
        %v1199 = vsel %vm504, %v1194, %v1196
        %1202 = vst [vmem:[#allocation2 + $0x230] sm:$0xcc] %v1198
        %1203 = vst.msk [vmem:[#allocation2 + $0x238] sm:$0xcc] %vm229, %v1199
        %1204 = vrot.lane.b32.xlu0 %v911, 46
        %v1205 = vpop.permute.xlu0 %1204
        %1206 = vrot.lane.b32.xlu0 %v918, 46
        %v1207 = vpop.permute.xlu0 %1206
        %v1208 = vrot.slane %v1205, 4
        %v1209 = vrot.slane %v1207, 4
        %v1210 = vsel %vm219, %v1208, %v1209
        %v1211 = vsel %vm518, %v1205, %v1210
        %v1212 = vsel %vm518, %v1207, %v1209
        %1215 = vst [vmem:[#allocation2 + $0x240] sm:$0x33] %v1211
        %1216 = vst.msk [vmem:[#allocation2 + $0x248] sm:$0x33] %vm203, %v1212
        %1217 = vrot.lane.b32.xlu0 %v930, 45
        %v1218 = vpop.permute.xlu0 %1217
        %1219 = vrot.lane.b32.xlu0 %v911, 45
        %v1220 = vpop.permute.xlu0 %1219
        %v1221 = vrot.slane %v1218, 4
        %v1222 = vrot.slane %v1220, 4
        %v1223 = vsel %vm219, %v1221, %v1222
        %v1224 = vsel %vm532, %v1218, %v1223
        %v1225 = vsel %vm532, %v1220, %v1222
        %1228 = vst [vmem:[#allocation2 + $0x240] sm:$0xcc] %v1224
        %1229 = vst.msk [vmem:[#allocation2 + $0x248] sm:$0xcc] %vm229, %v1225
        %1230 = vrot.lane.b32.xlu0 %v911, 44
        %v1231 = vpop.permute.xlu0 %1230
        %1232 = vrot.lane.b32.xlu0 %v918, 44
        %v1233 = vpop.permute.xlu0 %1232
        %v1234 = vrot.slane %v1231, 4
        %v1235 = vrot.slane %v1233, 4
        %v1236 = vsel %vm219, %v1234, %v1235
        %v1237 = vsel %vm546, %v1231, %v1236
        %v1238 = vsel %vm546, %v1233, %v1235
        %1241 = vst [vmem:[#allocation2 + $0x250] sm:$0x33] %v1237
        %1242 = vst.msk [vmem:[#allocation2 + $0x258] sm:$0x33] %vm203, %v1238
        %s1243 = sadd.s32 %s173, 3
        %s1244 = smul.u32 %s1243, 4
        %s1245 = smul.addr %s1244, 2
        %s1246 = scalar_lea.vmem %s165, %s1245
        %v1247 = vld [vmem:[%s1246] sm:$0xff]
        %v1249 = vcombine.low %v1247, %v1247
        %v1251 = vunpack.c.l.s4 1983009808
        %v1252 = vunpack.c.0.s8 %v1251
        %v1253 = vlaneseq
        %v1254 = vshrl.u32 %v1253, 7
        %v1255 = vsub.s32 %v1252, %v1254
        %v1256 = vrot.slane %v1249, %v1255
        %v1258 = vunpack.c.l.s4 1983009808
        %v1259 = vunpack.c.0.s8 %v1258
        %v1260 = vlaneseq
        %v1261 = vshrl.u32 %v1260, 7
        %v1262 = vsub.s32 %v1259, %v1261
        %v1263 = vrot.slane %v1247, %v1262
        %1266 = vst [vmem:[#allocation2 + $0x250] sm:$0xcc] %v1256
        %1267 = vst.msk [vmem:[#allocation2 + $0x258] sm:$0xcc] %vm229, %v1263
        %v1268 = vcombine.high %v1247, %v1247
        %v1270 = vunpack.c.l.s4 1983009808
        %v1271 = vunpack.c.0.s8 %v1270
        %v1272 = vlaneseq
        %v1273 = vshrl.u32 %v1272, 7
        %v1274 = vsub.s32 %v1271, %v1273
        %v1275 = vrot.slane %v1268, %v1274
        %1276 = vrot.lane.b32.xlu0 %v1263, 127
        %v1277 = vpop.permute.xlu0 %1276
        %1278 = vrot.lane.b32.xlu0 %v1275, 127
        %v1279 = vpop.permute.xlu0 %1278
        %v1280 = vrot.slane %v1277, 4
        %v1281 = vrot.slane %v1279, 4
        %v1282 = vsel %vm219, %v1280, %v1281
        %v1283 = vsel %vm221, %v1277, %v1282
        %v1284 = vsel %vm221, %v1279, %v1281
        %1287 = vst [vmem:[#allocation2 + $0x260] sm:$0x33] %v1283
        %1288 = vst.msk [vmem:[#allocation2 + $0x268] sm:$0x33] %vm203, %v1284
        %1289 = vrot.lane.b32.xlu0 %v1256, 126
        %v1290 = vpop.permute.xlu0 %1289
        %1291 = vrot.lane.b32.xlu0 %v1263, 126
        %v1292 = vpop.permute.xlu0 %1291
        %v1293 = vrot.slane %v1290, 4
        %v1294 = vrot.slane %v1292, 4
        %v1295 = vsel %vm219, %v1293, %v1294
        %v1296 = vsel %vm238, %v1290, %v1295
        %v1297 = vsel %vm238, %v1292, %v1294
        %1300 = vst [vmem:[#allocation2 + $0x260] sm:$0xcc] %v1296
        %1301 = vst.msk [vmem:[#allocation2 + $0x268] sm:$0xcc] %vm229, %v1297
        %1302 = vrot.lane.b32.xlu0 %v1263, 125
        %v1303 = vpop.permute.xlu0 %1302
        %1304 = vrot.lane.b32.xlu0 %v1275, 125
        %v1305 = vpop.permute.xlu0 %1304
        %v1306 = vrot.slane %v1303, 4
        %v1307 = vrot.slane %v1305, 4
        %v1308 = vsel %vm219, %v1306, %v1307
        %v1309 = vsel %vm252, %v1303, %v1308
        %v1310 = vsel %vm252, %v1305, %v1307
        %1313 = vst [vmem:[#allocation2 + $0x270] sm:$0x33] %v1309
        %1314 = vst.msk [vmem:[#allocation2 + $0x278] sm:$0x33] %vm203, %v1310
        %1315 = vrot.lane.b32.xlu0 %v1256, 124
        %v1316 = vpop.permute.xlu0 %1315
        %1317 = vrot.lane.b32.xlu0 %v1263, 124
        %v1318 = vpop.permute.xlu0 %1317
        %v1319 = vrot.slane %v1316, 4
        %v1320 = vrot.slane %v1318, 4
        %v1321 = vsel %vm219, %v1319, %v1320
        %v1322 = vsel %vm266, %v1316, %v1321
        %v1323 = vsel %vm266, %v1318, %v1320
        %1326 = vst [vmem:[#allocation2 + $0x270] sm:$0xcc] %v1322
        %1327 = vst.msk [vmem:[#allocation2 + $0x278] sm:$0xcc] %vm229, %v1323
        %1328 = vrot.lane.b32.xlu0 %v1263, 108
        %v1329 = vpop.permute.xlu0 %1328
        %1330 = vrot.lane.b32.xlu0 %v1275, 108
        %v1331 = vpop.permute.xlu0 %1330
        %v1332 = vrot.slane %v1329, 4
        %v1333 = vrot.slane %v1331, 4
        %v1334 = vsel %vm219, %v1332, %v1333
        %v1335 = vsel %vm280, %v1329, %v1334
        %v1336 = vsel %vm280, %v1331, %v1333
        %1339 = vst [vmem:[#allocation2 + $0x280] sm:$0x33] %v1335
        %1340 = vst.msk [vmem:[#allocation2 + $0x288] sm:$0x33] %vm203, %v1336
        %1341 = vrot.lane.b32.xlu0 %v1256, 107
        %v1342 = vpop.permute.xlu0 %1341
        %1343 = vrot.lane.b32.xlu0 %v1263, 107
        %v1344 = vpop.permute.xlu0 %1343
        %v1345 = vrot.slane %v1342, 4
        %v1346 = vrot.slane %v1344, 4
        %v1347 = vsel %vm219, %v1345, %v1346
        %v1348 = vsel %vm294, %v1342, %v1347
        %v1349 = vsel %vm294, %v1344, %v1346
        %1352 = vst [vmem:[#allocation2 + $0x280] sm:$0xcc] %v1348
        %1353 = vst.msk [vmem:[#allocation2 + $0x288] sm:$0xcc] %vm229, %v1349
        %1354 = vrot.lane.b32.xlu0 %v1263, 106
        %v1355 = vpop.permute.xlu0 %1354
        %1356 = vrot.lane.b32.xlu0 %v1275, 106
        %v1357 = vpop.permute.xlu0 %1356
        %v1358 = vrot.slane %v1355, 4
        %v1359 = vrot.slane %v1357, 4
        %v1360 = vsel %vm219, %v1358, %v1359
        %v1361 = vsel %vm308, %v1355, %v1360
        %v1362 = vsel %vm308, %v1357, %v1359
        %1365 = vst [vmem:[#allocation2 + $0x290] sm:$0x33] %v1361
        %1366 = vst.msk [vmem:[#allocation2 + $0x298] sm:$0x33] %vm203, %v1362
        %1367 = vrot.lane.b32.xlu0 %v1256, 105
        %v1368 = vpop.permute.xlu0 %1367
        %1369 = vrot.lane.b32.xlu0 %v1263, 105
        %v1370 = vpop.permute.xlu0 %1369
        %v1371 = vrot.slane %v1368, 4
        %v1372 = vrot.slane %v1370, 4
        %v1373 = vsel %vm219, %v1371, %v1372
        %v1374 = vsel %vm322, %v1368, %v1373
        %v1375 = vsel %vm322, %v1370, %v1372
        %1378 = vst [vmem:[#allocation2 + $0x290] sm:$0xcc] %v1374
        %1379 = vst.msk [vmem:[#allocation2 + $0x298] sm:$0xcc] %vm229, %v1375
        %1380 = vrot.lane.b32.xlu0 %v1263, 104
        %v1381 = vpop.permute.xlu0 %1380
        %1382 = vrot.lane.b32.xlu0 %v1275, 104
        %v1383 = vpop.permute.xlu0 %1382
        %v1384 = vrot.slane %v1381, 4
        %v1385 = vrot.slane %v1383, 4
        %v1386 = vsel %vm219, %v1384, %v1385
        %v1387 = vsel %vm336, %v1381, %v1386
        %v1388 = vsel %vm336, %v1383, %v1385
        %1391 = vst [vmem:[#allocation2 + $0x2a0] sm:$0x33] %v1387
        %1392 = vst.msk [vmem:[#allocation2 + $0x2a8] sm:$0x33] %vm203, %v1388
        %1393 = vrot.lane.b32.xlu0 %v1256, 88
        %v1394 = vpop.permute.xlu0 %1393
        %1395 = vrot.lane.b32.xlu0 %v1263, 88
        %v1396 = vpop.permute.xlu0 %1395
        %v1397 = vrot.slane %v1394, 4
        %v1398 = vrot.slane %v1396, 4
        %v1399 = vsel %vm219, %v1397, %v1398
        %v1400 = vsel %vm350, %v1394, %v1399
        %v1401 = vsel %vm350, %v1396, %v1398
        %1404 = vst [vmem:[#allocation2 + $0x2a0] sm:$0xcc] %v1400
        %1405 = vst.msk [vmem:[#allocation2 + $0x2a8] sm:$0xcc] %vm229, %v1401
        %1406 = vrot.lane.b32.xlu0 %v1263, 87
        %v1407 = vpop.permute.xlu0 %1406
        %1408 = vrot.lane.b32.xlu0 %v1275, 87
        %v1409 = vpop.permute.xlu0 %1408
        %v1410 = vrot.slane %v1407, 4
        %v1411 = vrot.slane %v1409, 4
        %v1412 = vsel %vm219, %v1410, %v1411
        %v1413 = vsel %vm364, %v1407, %v1412
        %v1414 = vsel %vm364, %v1409, %v1411
        %1417 = vst [vmem:[#allocation2 + $0x2b0] sm:$0x33] %v1413
        %1418 = vst.msk [vmem:[#allocation2 + $0x2b8] sm:$0x33] %vm203, %v1414
        %1419 = vrot.lane.b32.xlu0 %v1256, 86
        %v1420 = vpop.permute.xlu0 %1419
        %1421 = vrot.lane.b32.xlu0 %v1263, 86
        %v1422 = vpop.permute.xlu0 %1421
        %v1423 = vrot.slane %v1420, 4
        %v1424 = vrot.slane %v1422, 4
        %v1425 = vsel %vm219, %v1423, %v1424
        %v1426 = vsel %vm378, %v1420, %v1425
        %v1427 = vsel %vm378, %v1422, %v1424
        %1430 = vst [vmem:[#allocation2 + $0x2b0] sm:$0xcc] %v1426
        %1431 = vst.msk [vmem:[#allocation2 + $0x2b8] sm:$0xcc] %vm229, %v1427
        %1432 = vrot.lane.b32.xlu0 %v1263, 85
        %v1433 = vpop.permute.xlu0 %1432
        %1434 = vrot.lane.b32.xlu0 %v1275, 85
        %v1435 = vpop.permute.xlu0 %1434
        %v1436 = vrot.slane %v1433, 4
        %v1437 = vrot.slane %v1435, 4
        %v1438 = vsel %vm219, %v1436, %v1437
        %v1439 = vsel %vm392, %v1433, %v1438
        %v1440 = vsel %vm392, %v1435, %v1437
        %1443 = vst [vmem:[#allocation2 + $0x2c0] sm:$0x33] %v1439
        %1444 = vst.msk [vmem:[#allocation2 + $0x2c8] sm:$0x33] %vm203, %v1440
        %1445 = vrot.lane.b32.xlu0 %v1256, 84
        %v1446 = vpop.permute.xlu0 %1445
        %1447 = vrot.lane.b32.xlu0 %v1263, 84
        %v1448 = vpop.permute.xlu0 %1447
        %v1449 = vrot.slane %v1446, 4
        %v1450 = vrot.slane %v1448, 4
        %v1451 = vsel %vm219, %v1449, %v1450
        %v1452 = vsel %vm406, %v1446, %v1451
        %v1453 = vsel %vm406, %v1448, %v1450
        %1456 = vst [vmem:[#allocation2 + $0x2c0] sm:$0xcc] %v1452
        %1457 = vst.msk [vmem:[#allocation2 + $0x2c8] sm:$0xcc] %vm229, %v1453
        %1458 = vrot.lane.b32.xlu0 %v1263, 68
        %v1459 = vpop.permute.xlu0 %1458
        %1460 = vrot.lane.b32.xlu0 %v1275, 68
        %v1461 = vpop.permute.xlu0 %1460
        %v1462 = vrot.slane %v1459, 4
        %v1463 = vrot.slane %v1461, 4
        %v1464 = vsel %vm219, %v1462, %v1463
        %v1465 = vsel %vm420, %v1459, %v1464
        %v1466 = vsel %vm420, %v1461, %v1463
        %1469 = vst [vmem:[#allocation2 + $0x2d0] sm:$0x33] %v1465
        %1470 = vst.msk [vmem:[#allocation2 + $0x2d8] sm:$0x33] %vm203, %v1466
        %1471 = vrot.lane.b32.xlu0 %v1256, 67
        %v1472 = vpop.permute.xlu0 %1471
        %1473 = vrot.lane.b32.xlu0 %v1263, 67
        %v1474 = vpop.permute.xlu0 %1473
        %v1475 = vrot.slane %v1472, 4
        %v1476 = vrot.slane %v1474, 4
        %v1477 = vsel %vm219, %v1475, %v1476
        %v1478 = vsel %vm434, %v1472, %v1477
        %v1479 = vsel %vm434, %v1474, %v1476
        %1482 = vst [vmem:[#allocation2 + $0x2d0] sm:$0xcc] %v1478
        %1483 = vst.msk [vmem:[#allocation2 + $0x2d8] sm:$0xcc] %vm229, %v1479
        %1484 = vrot.lane.b32.xlu0 %v1263, 66
        %v1485 = vpop.permute.xlu0 %1484
        %1486 = vrot.lane.b32.xlu0 %v1275, 66
        %v1487 = vpop.permute.xlu0 %1486
        %v1488 = vrot.slane %v1485, 4
        %v1489 = vrot.slane %v1487, 4
        %v1490 = vsel %vm219, %v1488, %v1489
        %v1491 = vsel %vm448, %v1485, %v1490
        %v1492 = vsel %vm448, %v1487, %v1489
        %1495 = vst [vmem:[#allocation2 + $0x2e0] sm:$0x33] %v1491
        %1496 = vst.msk [vmem:[#allocation2 + $0x2e8] sm:$0x33] %vm203, %v1492
        %1497 = vrot.lane.b32.xlu0 %v1256, 65
        %v1498 = vpop.permute.xlu0 %1497
        %1499 = vrot.lane.b32.xlu0 %v1263, 65
        %v1500 = vpop.permute.xlu0 %1499
        %v1501 = vrot.slane %v1498, 4
        %v1502 = vrot.slane %v1500, 4
        %v1503 = vsel %vm219, %v1501, %v1502
        %v1504 = vsel %vm462, %v1498, %v1503
        %v1505 = vsel %vm462, %v1500, %v1502
        %1508 = vst [vmem:[#allocation2 + $0x2e0] sm:$0xcc] %v1504
        %1509 = vst.msk [vmem:[#allocation2 + $0x2e8] sm:$0xcc] %vm229, %v1505
        %1510 = vrot.lane.b32.xlu0 %v1263, 64
        %v1511 = vpop.permute.xlu0 %1510
        %1512 = vrot.lane.b32.xlu0 %v1275, 64
        %v1513 = vpop.permute.xlu0 %1512
        %v1514 = vrot.slane %v1511, 4
        %v1515 = vrot.slane %v1513, 4
        %v1516 = vsel %vm219, %v1514, %v1515
        %v1517 = vsel %vm476, %v1511, %v1516
        %v1518 = vsel %vm476, %v1513, %v1515
        %1521 = vst [vmem:[#allocation2 + $0x2f0] sm:$0x33] %v1517
        %1522 = vst.msk [vmem:[#allocation2 + $0x2f8] sm:$0x33] %vm203, %v1518
        %1523 = vrot.lane.b32.xlu0 %v1256, 48
        %v1524 = vpop.permute.xlu0 %1523
        %1525 = vrot.lane.b32.xlu0 %v1263, 48
        %v1526 = vpop.permute.xlu0 %1525
        %v1527 = vrot.slane %v1524, 4
        %v1528 = vrot.slane %v1526, 4
        %v1529 = vsel %vm219, %v1527, %v1528
        %v1530 = vsel %vm490, %v1524, %v1529
        %v1531 = vsel %vm490, %v1526, %v1528
        %1534 = vst [vmem:[#allocation2 + $0x2f0] sm:$0xcc] %v1530
        %1535 = vst.msk [vmem:[#allocation2 + $0x2f8] sm:$0xcc] %vm229, %v1531
        %1536 = vrot.lane.b32.xlu0 %v1263, 47
        %v1537 = vpop.permute.xlu0 %1536
        %1538 = vrot.lane.b32.xlu0 %v1275, 47
        %v1539 = vpop.permute.xlu0 %1538
        %v1540 = vrot.slane %v1537, 4
        %v1541 = vrot.slane %v1539, 4
        %v1542 = vsel %vm219, %v1540, %v1541
        %v1543 = vsel %vm504, %v1537, %v1542
        %v1544 = vsel %vm504, %v1539, %v1541
        %1547 = vst [vmem:[#allocation2 + $0x300] sm:$0x33] %v1543
        %1548 = vst.msk [vmem:[#allocation2 + $0x308] sm:$0x33] %vm203, %v1544
        %1549 = vrot.lane.b32.xlu0 %v1256, 46
        %v1550 = vpop.permute.xlu0 %1549
        %1551 = vrot.lane.b32.xlu0 %v1263, 46
        %v1552 = vpop.permute.xlu0 %1551
        %v1553 = vrot.slane %v1550, 4
        %v1554 = vrot.slane %v1552, 4
        %v1555 = vsel %vm219, %v1553, %v1554
        %v1556 = vsel %vm518, %v1550, %v1555
        %v1557 = vsel %vm518, %v1552, %v1554
        %1560 = vst [vmem:[#allocation2 + $0x300] sm:$0xcc] %v1556
        %1561 = vst.msk [vmem:[#allocation2 + $0x308] sm:$0xcc] %vm229, %v1557
        %1562 = vrot.lane.b32.xlu0 %v1263, 45
        %v1563 = vpop.permute.xlu0 %1562
        %1564 = vrot.lane.b32.xlu0 %v1275, 45
        %v1565 = vpop.permute.xlu0 %1564
        %v1566 = vrot.slane %v1563, 4
        %v1567 = vrot.slane %v1565, 4
        %v1568 = vsel %vm219, %v1566, %v1567
        %v1569 = vsel %vm532, %v1563, %v1568
        %v1570 = vsel %vm532, %v1565, %v1567
        %1573 = vst [vmem:[#allocation2 + $0x310] sm:$0x33] %v1569
        %1574 = vst.msk [vmem:[#allocation2 + $0x318] sm:$0x33] %vm203, %v1570
        %1575 = vrot.lane.b32.xlu0 %v1256, 44
        %v1576 = vpop.permute.xlu0 %1575
        %1577 = vrot.lane.b32.xlu0 %v1263, 44
        %v1578 = vpop.permute.xlu0 %1577
        %v1579 = vrot.slane %v1576, 4
        %v1580 = vrot.slane %v1578, 4
        %v1581 = vsel %vm219, %v1579, %v1580
        %v1582 = vsel %vm546, %v1576, %v1581
        %v1583 = vsel %vm546, %v1578, %v1580
        %1586 = vst [vmem:[#allocation2 + $0x310] sm:$0xcc] %v1582
        %1587 = vst.msk [vmem:[#allocation2 + $0x318] sm:$0xcc] %vm229, %v1583
        %s1588 = sadd.s32 %s173, 4
        %s1589 = smul.u32 %s1588, 4
        %s1590 = smul.addr %s1589, 2
        %s1591 = scalar_lea.vmem %s165, %s1590
        %v1592 = vld [vmem:[%s1591] sm:$0xff]
        %v1594 = vcombine.high %v1592, %v1592
        %v1596 = vunpack.c.l.s4 1983009808
        %v1597 = vunpack.c.0.s8 %v1596
        %v1598 = vlaneseq
        %v1599 = vshrl.u32 %v1598, 7
        %v1600 = vsub.s32 %v1597, %v1599
        %v1601 = vrot.slane %v1592, %v1600
        %v1603 = vunpack.c.l.s4 1983009808
        %v1604 = vunpack.c.0.s8 %v1603
        %v1605 = vlaneseq
        %v1606 = vshrl.u32 %v1605, 7
        %v1607 = vsub.s32 %v1604, %v1606
        %v1608 = vrot.slane %v1594, %v1607
        %1611 = vst [vmem:[#allocation2 + $0x320] sm:$0x33] %v1601
        %1612 = vst.msk [vmem:[#allocation2 + $0x328] sm:$0x33] %vm203, %v1608
        %v1613 = vcombine.low %v1592, %v1592
        %v1615 = vunpack.c.l.s4 1983009808
        %v1616 = vunpack.c.0.s8 %v1615
        %v1617 = vlaneseq
        %v1618 = vshrl.u32 %v1617, 7
        %v1619 = vsub.s32 %v1616, %v1618
        %v1620 = vrot.slane %v1613, %v1619
        %1621 = vrot.lane.b32.xlu0 %v1620, 127
        %v1622 = vpop.permute.xlu0 %1621
        %1623 = vrot.lane.b32.xlu0 %v1601, 127
        %v1624 = vpop.permute.xlu0 %1623
        %v1625 = vrot.slane %v1622, 4
        %v1626 = vrot.slane %v1624, 4
        %v1627 = vsel %vm219, %v1625, %v1626
        %v1628 = vsel %vm221, %v1622, %v1627
        %v1629 = vsel %vm221, %v1624, %v1626
        %1632 = vst [vmem:[#allocation2 + $0x320] sm:$0xcc] %v1628
        %1633 = vst.msk [vmem:[#allocation2 + $0x328] sm:$0xcc] %vm229, %v1629
        %1634 = vrot.lane.b32.xlu0 %v1601, 126
        %v1635 = vpop.permute.xlu0 %1634
        %1636 = vrot.lane.b32.xlu0 %v1608, 126
        %v1637 = vpop.permute.xlu0 %1636
        %v1638 = vrot.slane %v1635, 4
        %v1639 = vrot.slane %v1637, 4
        %v1640 = vsel %vm219, %v1638, %v1639
        %v1641 = vsel %vm238, %v1635, %v1640
        %v1642 = vsel %vm238, %v1637, %v1639
        %1645 = vst [vmem:[#allocation2 + $0x330] sm:$0x33] %v1641
        %1646 = vst.msk [vmem:[#allocation2 + $0x338] sm:$0x33] %vm203, %v1642
        %1647 = vrot.lane.b32.xlu0 %v1620, 125
        %v1648 = vpop.permute.xlu0 %1647
        %1649 = vrot.lane.b32.xlu0 %v1601, 125
        %v1650 = vpop.permute.xlu0 %1649
        %v1651 = vrot.slane %v1648, 4
        %v1652 = vrot.slane %v1650, 4
        %v1653 = vsel %vm219, %v1651, %v1652
        %v1654 = vsel %vm252, %v1648, %v1653
        %v1655 = vsel %vm252, %v1650, %v1652
        %1658 = vst [vmem:[#allocation2 + $0x330] sm:$0xcc] %v1654
        %1659 = vst.msk [vmem:[#allocation2 + $0x338] sm:$0xcc] %vm229, %v1655
        %1660 = vrot.lane.b32.xlu0 %v1601, 124
        %v1661 = vpop.permute.xlu0 %1660
        %1662 = vrot.lane.b32.xlu0 %v1608, 124
        %v1663 = vpop.permute.xlu0 %1662
        %v1664 = vrot.slane %v1661, 4
        %v1665 = vrot.slane %v1663, 4
        %v1666 = vsel %vm219, %v1664, %v1665
        %v1667 = vsel %vm266, %v1661, %v1666
        %v1668 = vsel %vm266, %v1663, %v1665
        %1671 = vst [vmem:[#allocation2 + $0x340] sm:$0x33] %v1667
        %1672 = vst.msk [vmem:[#allocation2 + $0x348] sm:$0x33] %vm203, %v1668
        %1673 = vrot.lane.b32.xlu0 %v1620, 108
        %v1674 = vpop.permute.xlu0 %1673
        %1675 = vrot.lane.b32.xlu0 %v1601, 108
        %v1676 = vpop.permute.xlu0 %1675
        %v1677 = vrot.slane %v1674, 4
        %v1678 = vrot.slane %v1676, 4
        %v1679 = vsel %vm219, %v1677, %v1678
        %v1680 = vsel %vm280, %v1674, %v1679
        %v1681 = vsel %vm280, %v1676, %v1678
        %1684 = vst [vmem:[#allocation2 + $0x340] sm:$0xcc] %v1680
        %1685 = vst.msk [vmem:[#allocation2 + $0x348] sm:$0xcc] %vm229, %v1681
        %1686 = vrot.lane.b32.xlu0 %v1601, 107
        %v1687 = vpop.permute.xlu0 %1686
        %1688 = vrot.lane.b32.xlu0 %v1608, 107
        %v1689 = vpop.permute.xlu0 %1688
        %v1690 = vrot.slane %v1687, 4
        %v1691 = vrot.slane %v1689, 4
        %v1692 = vsel %vm219, %v1690, %v1691
        %v1693 = vsel %vm294, %v1687, %v1692
        %v1694 = vsel %vm294, %v1689, %v1691
        %1697 = vst [vmem:[#allocation2 + $0x350] sm:$0x33] %v1693
        %1698 = vst.msk [vmem:[#allocation2 + $0x358] sm:$0x33] %vm203, %v1694
        %1699 = vrot.lane.b32.xlu0 %v1620, 106
        %v1700 = vpop.permute.xlu0 %1699
        %1701 = vrot.lane.b32.xlu0 %v1601, 106
        %v1702 = vpop.permute.xlu0 %1701
        %v1703 = vrot.slane %v1700, 4
        %v1704 = vrot.slane %v1702, 4
        %v1705 = vsel %vm219, %v1703, %v1704
        %v1706 = vsel %vm308, %v1700, %v1705
        %v1707 = vsel %vm308, %v1702, %v1704
        %1710 = vst [vmem:[#allocation2 + $0x350] sm:$0xcc] %v1706
        %1711 = vst.msk [vmem:[#allocation2 + $0x358] sm:$0xcc] %vm229, %v1707
        %1712 = vrot.lane.b32.xlu0 %v1601, 105
        %v1713 = vpop.permute.xlu0 %1712
        %1714 = vrot.lane.b32.xlu0 %v1608, 105
        %v1715 = vpop.permute.xlu0 %1714
        %v1716 = vrot.slane %v1713, 4
        %v1717 = vrot.slane %v1715, 4
        %v1718 = vsel %vm219, %v1716, %v1717
        %v1719 = vsel %vm322, %v1713, %v1718
        %v1720 = vsel %vm322, %v1715, %v1717
        %1723 = vst [vmem:[#allocation2 + $0x360] sm:$0x33] %v1719
        %1724 = vst.msk [vmem:[#allocation2 + $0x368] sm:$0x33] %vm203, %v1720
        %1725 = vrot.lane.b32.xlu0 %v1620, 104
        %v1726 = vpop.permute.xlu0 %1725
        %1727 = vrot.lane.b32.xlu0 %v1601, 104
        %v1728 = vpop.permute.xlu0 %1727
        %v1729 = vrot.slane %v1726, 4
        %v1730 = vrot.slane %v1728, 4
        %v1731 = vsel %vm219, %v1729, %v1730
        %v1732 = vsel %vm336, %v1726, %v1731
        %v1733 = vsel %vm336, %v1728, %v1730
        %1736 = vst [vmem:[#allocation2 + $0x360] sm:$0xcc] %v1732
        %1737 = vst.msk [vmem:[#allocation2 + $0x368] sm:$0xcc] %vm229, %v1733
        %1738 = vrot.lane.b32.xlu0 %v1601, 88
        %v1739 = vpop.permute.xlu0 %1738
        %1740 = vrot.lane.b32.xlu0 %v1608, 88
        %v1741 = vpop.permute.xlu0 %1740
        %v1742 = vrot.slane %v1739, 4
        %v1743 = vrot.slane %v1741, 4
        %v1744 = vsel %vm219, %v1742, %v1743
        %v1745 = vsel %vm350, %v1739, %v1744
        %v1746 = vsel %vm350, %v1741, %v1743
        %1749 = vst [vmem:[#allocation2 + $0x370] sm:$0x33] %v1745
        %1750 = vst.msk [vmem:[#allocation2 + $0x378] sm:$0x33] %vm203, %v1746
        %1751 = vrot.lane.b32.xlu0 %v1620, 87
        %v1752 = vpop.permute.xlu0 %1751
        %1753 = vrot.lane.b32.xlu0 %v1601, 87
        %v1754 = vpop.permute.xlu0 %1753
        %v1755 = vrot.slane %v1752, 4
        %v1756 = vrot.slane %v1754, 4
        %v1757 = vsel %vm219, %v1755, %v1756
        %v1758 = vsel %vm364, %v1752, %v1757
        %v1759 = vsel %vm364, %v1754, %v1756
        %1762 = vst [vmem:[#allocation2 + $0x370] sm:$0xcc] %v1758
        %1763 = vst.msk [vmem:[#allocation2 + $0x378] sm:$0xcc] %vm229, %v1759
        %1764 = vrot.lane.b32.xlu0 %v1601, 86
        %v1765 = vpop.permute.xlu0 %1764
        %1766 = vrot.lane.b32.xlu0 %v1608, 86
        %v1767 = vpop.permute.xlu0 %1766
        %v1768 = vrot.slane %v1765, 4
        %v1769 = vrot.slane %v1767, 4
        %v1770 = vsel %vm219, %v1768, %v1769
        %v1771 = vsel %vm378, %v1765, %v1770
        %v1772 = vsel %vm378, %v1767, %v1769
        %1775 = vst [vmem:[#allocation2 + $0x380] sm:$0x33] %v1771
        %1776 = vst.msk [vmem:[#allocation2 + $0x388] sm:$0x33] %vm203, %v1772
        %1777 = vrot.lane.b32.xlu0 %v1620, 85
        %v1778 = vpop.permute.xlu0 %1777
        %1779 = vrot.lane.b32.xlu0 %v1601, 85
        %v1780 = vpop.permute.xlu0 %1779
        %v1781 = vrot.slane %v1778, 4
        %v1782 = vrot.slane %v1780, 4
        %v1783 = vsel %vm219, %v1781, %v1782
        %v1784 = vsel %vm392, %v1778, %v1783
        %v1785 = vsel %vm392, %v1780, %v1782
        %1788 = vst [vmem:[#allocation2 + $0x380] sm:$0xcc] %v1784
        %1789 = vst.msk [vmem:[#allocation2 + $0x388] sm:$0xcc] %vm229, %v1785
        %1790 = vrot.lane.b32.xlu0 %v1601, 84
        %v1791 = vpop.permute.xlu0 %1790
        %1792 = vrot.lane.b32.xlu0 %v1608, 84
        %v1793 = vpop.permute.xlu0 %1792
        %v1794 = vrot.slane %v1791, 4
        %v1795 = vrot.slane %v1793, 4
        %v1796 = vsel %vm219, %v1794, %v1795
        %v1797 = vsel %vm406, %v1791, %v1796
        %v1798 = vsel %vm406, %v1793, %v1795
        %1801 = vst [vmem:[#allocation2 + $0x390] sm:$0x33] %v1797
        %1802 = vst.msk [vmem:[#allocation2 + $0x398] sm:$0x33] %vm203, %v1798
        %1803 = vrot.lane.b32.xlu0 %v1620, 68
        %v1804 = vpop.permute.xlu0 %1803
        %1805 = vrot.lane.b32.xlu0 %v1601, 68
        %v1806 = vpop.permute.xlu0 %1805
        %v1807 = vrot.slane %v1804, 4
        %v1808 = vrot.slane %v1806, 4
        %v1809 = vsel %vm219, %v1807, %v1808
        %v1810 = vsel %vm420, %v1804, %v1809
        %v1811 = vsel %vm420, %v1806, %v1808
        %1814 = vst [vmem:[#allocation2 + $0x390] sm:$0xcc] %v1810
        %1815 = vst.msk [vmem:[#allocation2 + $0x398] sm:$0xcc] %vm229, %v1811
        %1816 = vrot.lane.b32.xlu0 %v1601, 67
        %v1817 = vpop.permute.xlu0 %1816
        %1818 = vrot.lane.b32.xlu0 %v1608, 67
        %v1819 = vpop.permute.xlu0 %1818
        %v1820 = vrot.slane %v1817, 4
        %v1821 = vrot.slane %v1819, 4
        %v1822 = vsel %vm219, %v1820, %v1821
        %v1823 = vsel %vm434, %v1817, %v1822
        %v1824 = vsel %vm434, %v1819, %v1821
        %1827 = vst [vmem:[#allocation2 + $0x3a0] sm:$0x33] %v1823
        %1828 = vst.msk [vmem:[#allocation2 + $0x3a8] sm:$0x33] %vm203, %v1824
        %1829 = vrot.lane.b32.xlu0 %v1620, 66
        %v1830 = vpop.permute.xlu0 %1829
        %1831 = vrot.lane.b32.xlu0 %v1601, 66
        %v1832 = vpop.permute.xlu0 %1831
        %v1833 = vrot.slane %v1830, 4
        %v1834 = vrot.slane %v1832, 4
        %v1835 = vsel %vm219, %v1833, %v1834
        %v1836 = vsel %vm448, %v1830, %v1835
        %v1837 = vsel %vm448, %v1832, %v1834
        %1840 = vst [vmem:[#allocation2 + $0x3a0] sm:$0xcc] %v1836
        %1841 = vst.msk [vmem:[#allocation2 + $0x3a8] sm:$0xcc] %vm229, %v1837
        %1842 = vrot.lane.b32.xlu0 %v1601, 65
        %v1843 = vpop.permute.xlu0 %1842
        %1844 = vrot.lane.b32.xlu0 %v1608, 65
        %v1845 = vpop.permute.xlu0 %1844
        %v1846 = vrot.slane %v1843, 4
        %v1847 = vrot.slane %v1845, 4
        %v1848 = vsel %vm219, %v1846, %v1847
        %v1849 = vsel %vm462, %v1843, %v1848
        %v1850 = vsel %vm462, %v1845, %v1847
        %1853 = vst [vmem:[#allocation2 + $0x3b0] sm:$0x33] %v1849
        %1854 = vst.msk [vmem:[#allocation2 + $0x3b8] sm:$0x33] %vm203, %v1850
        %1855 = vrot.lane.b32.xlu0 %v1620, 64
        %v1856 = vpop.permute.xlu0 %1855
        %1857 = vrot.lane.b32.xlu0 %v1601, 64
        %v1858 = vpop.permute.xlu0 %1857
        %v1859 = vrot.slane %v1856, 4
        %v1860 = vrot.slane %v1858, 4
        %v1861 = vsel %vm219, %v1859, %v1860
        %v1862 = vsel %vm476, %v1856, %v1861
        %v1863 = vsel %vm476, %v1858, %v1860
        %1866 = vst [vmem:[#allocation2 + $0x3b0] sm:$0xcc] %v1862
        %1867 = vst.msk [vmem:[#allocation2 + $0x3b8] sm:$0xcc] %vm229, %v1863
        %1868 = vrot.lane.b32.xlu0 %v1601, 48
        %v1869 = vpop.permute.xlu0 %1868
        %1870 = vrot.lane.b32.xlu0 %v1608, 48
        %v1871 = vpop.permute.xlu0 %1870
        %v1872 = vrot.slane %v1869, 4
        %v1873 = vrot.slane %v1871, 4
        %v1874 = vsel %vm219, %v1872, %v1873
        %v1875 = vsel %vm490, %v1869, %v1874
        %v1876 = vsel %vm490, %v1871, %v1873
        %1879 = vst [vmem:[#allocation2 + $0x3c0] sm:$0x33] %v1875
        %1880 = vst.msk [vmem:[#allocation2 + $0x3c8] sm:$0x33] %vm203, %v1876
        %1881 = vrot.lane.b32.xlu0 %v1620, 47
        %v1882 = vpop.permute.xlu0 %1881
        %1883 = vrot.lane.b32.xlu0 %v1601, 47
        %v1884 = vpop.permute.xlu0 %1883
        %v1885 = vrot.slane %v1882, 4
        %v1886 = vrot.slane %v1884, 4
        %v1887 = vsel %vm219, %v1885, %v1886
        %v1888 = vsel %vm504, %v1882, %v1887
        %v1889 = vsel %vm504, %v1884, %v1886
        %1892 = vst [vmem:[#allocation2 + $0x3c0] sm:$0xcc] %v1888
        %1893 = vst.msk [vmem:[#allocation2 + $0x3c8] sm:$0xcc] %vm229, %v1889
        %1894 = vrot.lane.b32.xlu0 %v1601, 46
        %v1895 = vpop.permute.xlu0 %1894
        %1896 = vrot.lane.b32.xlu0 %v1608, 46
        %v1897 = vpop.permute.xlu0 %1896
        %v1898 = vrot.slane %v1895, 4
        %v1899 = vrot.slane %v1897, 4
        %v1900 = vsel %vm219, %v1898, %v1899
        %v1901 = vsel %vm518, %v1895, %v1900
        %v1902 = vsel %vm518, %v1897, %v1899
        %1905 = vst [vmem:[#allocation2 + $0x3d0] sm:$0x33] %v1901
        %1906 = vst.msk [vmem:[#allocation2 + $0x3d8] sm:$0x33] %vm203, %v1902
        %1907 = vrot.lane.b32.xlu0 %v1620, 45
        %v1908 = vpop.permute.xlu0 %1907
        %1909 = vrot.lane.b32.xlu0 %v1601, 45
        %v1910 = vpop.permute.xlu0 %1909
        %v1911 = vrot.slane %v1908, 4
        %v1912 = vrot.slane %v1910, 4
        %v1913 = vsel %vm219, %v1911, %v1912
        %v1914 = vsel %vm532, %v1908, %v1913
        %v1915 = vsel %vm532, %v1910, %v1912
        %1918 = vst [vmem:[#allocation2 + $0x3d0] sm:$0xcc] %v1914
        %1919 = vst.msk [vmem:[#allocation2 + $0x3d8] sm:$0xcc] %vm229, %v1915
        %1920 = vrot.lane.b32.xlu0 %v1601, 44
        %v1921 = vpop.permute.xlu0 %1920
        %1922 = vrot.lane.b32.xlu0 %v1608, 44
        %v1923 = vpop.permute.xlu0 %1922
        %v1924 = vrot.slane %v1921, 4
        %v1925 = vrot.slane %v1923, 4
        %v1926 = vsel %vm219, %v1924, %v1925
        %v1927 = vsel %vm546, %v1921, %v1926
        %v1928 = vsel %vm546, %v1923, %v1925
        %1931 = vst [vmem:[#allocation2 + $0x3e0] sm:$0x33] %v1927
        %1932 = vst.msk [vmem:[#allocation2 + $0x3e8] sm:$0x33] %vm203, %v1928
        %v1933 = vld [vmem:[%s1] sm:$0xff]
        %v1934 = vld [vmem:[%s1 + $0x8] sm:$0xff]
        %v1935 = vld [vmem:[#allocation2] sm:$0xff]
        %v1936 = vld [vmem:[#allocation2 + $0x8] sm:$0xff]
        %v1937 = vld [vmem:[#allocation2 + $0x10] sm:$0xff]
        %v1938 = vld [vmem:[#allocation2 + $0x18] sm:$0xff]
        %v1939 = vld [vmem:[#allocation2 + $0x20] sm:$0xff]
        %v1940 = vld [vmem:[#allocation2 + $0x28] sm:$0xff]
        %v1941 = vld [vmem:[#allocation2 + $0x30] sm:$0xff]
        %v1942 = vld [vmem:[#allocation2 + $0x38] sm:$0xff]
        %v1943 = vld [vmem:[#allocation2 + $0x40] sm:$0xff]
        %v1944 = vld [vmem:[#allocation2 + $0x48] sm:$0xff]
        %v1945 = vld [vmem:[#allocation2 + $0x50] sm:$0xff]
        %v1946 = vld [vmem:[#allocation2 + $0x58] sm:$0xff]
        %v1947 = vld [vmem:[#allocation2 + $0x60] sm:$0xff]
        %v1948 = vld [vmem:[#allocation2 + $0x68] sm:$0xff]
        %v1949 = vld [vmem:[#allocation2 + $0x70] sm:$0xff]
        %v1950 = vld [vmem:[#allocation2 + $0x78] sm:$0xff]
        %v1951 = vld [vmem:[#allocation2 + $0x80] sm:$0xff]
        %v1952 = vld [vmem:[#allocation2 + $0x88] sm:$0xff]
        %v1953 = vld [vmem:[#allocation2 + $0x90] sm:$0xff]
        %v1954 = vld [vmem:[#allocation2 + $0x98] sm:$0xff]
        %v1955 = vld [vmem:[#allocation2 + $0xa0] sm:$0xff]
        %v1956 = vld [vmem:[#allocation2 + $0xa8] sm:$0xff]
        %v1957 = vld [vmem:[#allocation2 + $0xb0] sm:$0xff]
        %v1958 = vld [vmem:[#allocation2 + $0xb8] sm:$0xff]
        %v1959 = vld [vmem:[#allocation2 + $0xc0] sm:$0xff]
        %v1960 = vld [vmem:[#allocation2 + $0xc8] sm:$0xff]
        %v1961 = vld [vmem:[#allocation2 + $0xd0] sm:$0xff]
        %v1962 = vld [vmem:[#allocation2 + $0xd8] sm:$0xff]
        %v1963 = vld [vmem:[#allocation2 + $0xe0] sm:$0xff]
        %v1964 = vld [vmem:[#allocation2 + $0xe8] sm:$0xff]
        %v1965 = vld [vmem:[#allocation2 + $0xf0] sm:$0xff]
        %v1966 = vld [vmem:[#allocation2 + $0xf8] sm:$0xff]
        %v1967 = vld [vmem:[#allocation2 + $0x100] sm:$0xff]
        %v1968 = vld [vmem:[#allocation2 + $0x108] sm:$0xff]
        %v1969 = vld [vmem:[#allocation2 + $0x110] sm:$0xff]
        %v1970 = vld [vmem:[#allocation2 + $0x118] sm:$0xff]
        %v1971 = vld [vmem:[#allocation2 + $0x120] sm:$0xff]
        %v1972 = vld [vmem:[#allocation2 + $0x128] sm:$0xff]
        %v1973 = vld [vmem:[#allocation2 + $0x130] sm:$0xff]
        %v1974 = vld [vmem:[#allocation2 + $0x138] sm:$0xff]
        %v1975 = vld [vmem:[#allocation2 + $0x140] sm:$0xff]
        %v1976 = vld [vmem:[#allocation2 + $0x148] sm:$0xff]
        %v1977 = vld [vmem:[#allocation2 + $0x150] sm:$0xff]
        %v1978 = vld [vmem:[#allocation2 + $0x158] sm:$0xff]
        %v1979 = vld [vmem:[#allocation2 + $0x160] sm:$0xff]
        %v1980 = vld [vmem:[#allocation2 + $0x168] sm:$0xff]
        %v1981 = vld [vmem:[#allocation2 + $0x170] sm:$0xff]
        %v1982 = vld [vmem:[#allocation2 + $0x178] sm:$0xff]
        %v1983 = vld [vmem:[#allocation2 + $0x180] sm:$0xff]
        %v1984 = vld [vmem:[#allocation2 + $0x188] sm:$0xff]
        %v1985 = vld [vmem:[#allocation2 + $0x190] sm:$0xff]
        %v1986 = vld [vmem:[#allocation2 + $0x198] sm:$0xff]
        %v1987 = vld [vmem:[#allocation2 + $0x1a0] sm:$0xff]
        %v1988 = vld [vmem:[#allocation2 + $0x1a8] sm:$0xff]
        %v1989 = vld [vmem:[#allocation2 + $0x1b0] sm:$0xff]
        %v1990 = vld [vmem:[#allocation2 + $0x1b8] sm:$0xff]
        %v1991 = vld [vmem:[#allocation2 + $0x1c0] sm:$0xff]
        %v1992 = vld [vmem:[#allocation2 + $0x1c8] sm:$0xff]
        %v1993 = vld [vmem:[#allocation2 + $0x1d0] sm:$0xff]
        %v1994 = vld [vmem:[#allocation2 + $0x1d8] sm:$0xff]
        %v1995 = vld [vmem:[#allocation2 + $0x1e0] sm:$0xff]
        %v1996 = vld [vmem:[#allocation2 + $0x1e8] sm:$0xff]
        %v1997 = vld [vmem:[#allocation2 + $0x1f0] sm:$0xff]
        %v1998 = vld [vmem:[#allocation2 + $0x1f8] sm:$0xff]
        %v1999 = vld [vmem:[#allocation2 + $0x200] sm:$0xff]
        %v2000 = vld [vmem:[#allocation2 + $0x208] sm:$0xff]
        %v2001 = vld [vmem:[#allocation2 + $0x210] sm:$0xff]
        %v2002 = vld [vmem:[#allocation2 + $0x218] sm:$0xff]
        %v2003 = vld [vmem:[#allocation2 + $0x220] sm:$0xff]
        %v2004 = vld [vmem:[#allocation2 + $0x228] sm:$0xff]
        %v2005 = vld [vmem:[#allocation2 + $0x230] sm:$0xff]
        %v2006 = vld [vmem:[#allocation2 + $0x238] sm:$0xff]
        %v2007 = vld [vmem:[#allocation2 + $0x240] sm:$0xff]
        %v2008 = vld [vmem:[#allocation2 + $0x248] sm:$0xff]
        %v2009 = vld [vmem:[#allocation2 + $0x250] sm:$0xff]
        %v2010 = vld [vmem:[#allocation2 + $0x258] sm:$0xff]
        %v2011 = vld [vmem:[#allocation2 + $0x260] sm:$0xff]
        %v2012 = vld [vmem:[#allocation2 + $0x268] sm:$0xff]
        %v2013 = vld [vmem:[#allocation2 + $0x270] sm:$0xff]
        %v2014 = vld [vmem:[#allocation2 + $0x278] sm:$0xff]
        %v2015 = vld [vmem:[#allocation2 + $0x280] sm:$0xff]
        %v2016 = vld [vmem:[#allocation2 + $0x288] sm:$0xff]
        %v2017 = vld [vmem:[#allocation2 + $0x290] sm:$0xff]
        %v2018 = vld [vmem:[#allocation2 + $0x298] sm:$0xff]
        %v2019 = vld [vmem:[#allocation2 + $0x2a0] sm:$0xff]
        %v2020 = vld [vmem:[#allocation2 + $0x2a8] sm:$0xff]
        %v2021 = vld [vmem:[#allocation2 + $0x2b0] sm:$0xff]
        %v2022 = vld [vmem:[#allocation2 + $0x2b8] sm:$0xff]
        %v2023 = vld [vmem:[#allocation2 + $0x2c0] sm:$0xff]
        %v2024 = vld [vmem:[#allocation2 + $0x2c8] sm:$0xff]
        %v2025 = vld [vmem:[#allocation2 + $0x2d0] sm:$0xff]
        %v2026 = vld [vmem:[#allocation2 + $0x2d8] sm:$0xff]
        %v2027 = vld [vmem:[#allocation2 + $0x2e0] sm:$0xff]
        %v2028 = vld [vmem:[#allocation2 + $0x2e8] sm:$0xff]
        %v2029 = vld [vmem:[#allocation2 + $0x2f0] sm:$0xff]
        %v2030 = vld [vmem:[#allocation2 + $0x2f8] sm:$0xff]
        %v2031 = vld [vmem:[#allocation2 + $0x300] sm:$0xff]
        %v2032 = vld [vmem:[#allocation2 + $0x308] sm:$0xff]
        %v2033 = vld [vmem:[#allocation2 + $0x310] sm:$0xff]
        %v2034 = vld [vmem:[#allocation2 + $0x318] sm:$0xff]
        %v2035 = vld [vmem:[#allocation2 + $0x320] sm:$0xff]
        %v2036 = vld [vmem:[#allocation2 + $0x328] sm:$0xff]
        %v2037 = vld [vmem:[#allocation2 + $0x330] sm:$0xff]
        %v2038 = vld [vmem:[#allocation2 + $0x338] sm:$0xff]
        %v2039 = vld [vmem:[#allocation2 + $0x340] sm:$0xff]
        %v2040 = vld [vmem:[#allocation2 + $0x348] sm:$0xff]
        %v2041 = vld [vmem:[#allocation2 + $0x350] sm:$0xff]
        %v2042 = vld [vmem:[#allocation2 + $0x358] sm:$0xff]
        %v2043 = vld [vmem:[#allocation2 + $0x360] sm:$0xff]
        %v2044 = vld [vmem:[#allocation2 + $0x368] sm:$0xff]
        %v2045 = vld [vmem:[#allocation2 + $0x370] sm:$0xff]
        %v2046 = vld [vmem:[#allocation2 + $0x378] sm:$0xff]
        %v2047 = vld [vmem:[#allocation2 + $0x380] sm:$0xff]
        %v2048 = vld [vmem:[#allocation2 + $0x388] sm:$0xff]
        %v2049 = vld [vmem:[#allocation2 + $0x390] sm:$0xff]
        %v2050 = vld [vmem:[#allocation2 + $0x398] sm:$0xff]
        %v2051 = vld [vmem:[#allocation2 + $0x3a0] sm:$0xff]
        %v2052 = vld [vmem:[#allocation2 + $0x3a8] sm:$0xff]
        %v2053 = vld [vmem:[#allocation2 + $0x3b0] sm:$0xff]
        %v2054 = vld [vmem:[#allocation2 + $0x3b8] sm:$0xff]
        %v2055 = vld [vmem:[#allocation2 + $0x3c0] sm:$0xff]
        %v2056 = vld [vmem:[#allocation2 + $0x3c8] sm:$0xff]
        %v2057 = vld [vmem:[#allocation2 + $0x3d0] sm:$0xff]
        %v2058 = vld [vmem:[#allocation2 + $0x3d8] sm:$0xff]
        %v2059 = vld [vmem:[#allocation2 + $0x3e0] sm:$0x33]
        %v2060 = vld [vmem:[#allocation2 + $0x3e8] sm:$0x33]
        %2062 = vset.pattern.permute.xlu0 0
        %2063 = vperm.xlu0 %2062, %v171
        %v2064 = vpop.permute.xlu0 %2063
        %v2068 = vunpack.c.l.b16 %v1933
        %v2069 = vunpack.c.h.b16 %v1933
        %v2070 = vunpack.c.l.b16 %v1934
        %v2071 = vunpack.c.h.b16 %v1934
        %v2072 = vpack.c.b16 %v2068, %v2068
        %v2073 = vpack.c.b16 %v2069, %v2069
        %v2074 = vpack.c.b16 %v2070, %v2070
        %v2075 = vpack.c.b16 %v2071, %v2071
        %v2205 = vunpack.c.l.b16 %v1935
        %v2206 = vunpack.c.h.b16 %v1935
        %v2207 = vunpack.c.l.b16 %v1936
        %v2208 = vunpack.c.h.b16 %v1936
        %v2209 = vunpack.c.l.b16 %v1937
        %v2210 = vunpack.c.h.b16 %v1937
        %v2211 = vunpack.c.l.b16 %v1938
        %v2212 = vunpack.c.h.b16 %v1938
        %v2213 = vunpack.c.l.b16 %v1939
        %v2214 = vunpack.c.h.b16 %v1939
        %v2215 = vunpack.c.l.b16 %v1940
        %v2216 = vunpack.c.h.b16 %v1940
        %v2217 = vunpack.c.l.b16 %v1941
        %v2218 = vunpack.c.h.b16 %v1941
        %v2219 = vunpack.c.l.b16 %v1942
        %v2220 = vunpack.c.h.b16 %v1942
        %v2221 = vunpack.c.l.b16 %v1943
        %v2222 = vunpack.c.h.b16 %v1943
        %v2223 = vunpack.c.l.b16 %v1944
        %v2224 = vunpack.c.h.b16 %v1944
        %v2225 = vunpack.c.l.b16 %v1945
        %v2226 = vunpack.c.h.b16 %v1945
        %v2227 = vunpack.c.l.b16 %v1946
        %v2228 = vunpack.c.h.b16 %v1946
        %v2229 = vunpack.c.l.b16 %v1947
        %v2230 = vunpack.c.h.b16 %v1947
        %v2231 = vunpack.c.l.b16 %v1948
        %v2232 = vunpack.c.h.b16 %v1948
        %v2233 = vunpack.c.l.b16 %v1949
        %v2234 = vunpack.c.h.b16 %v1949
        %v2235 = vunpack.c.l.b16 %v1950
        %v2236 = vunpack.c.h.b16 %v1950
        %v2237 = vunpack.c.l.b16 %v1951
        %v2238 = vunpack.c.h.b16 %v1951
        %v2239 = vunpack.c.l.b16 %v1952
        %v2240 = vunpack.c.h.b16 %v1952
        %v2241 = vunpack.c.l.b16 %v1953
        %v2242 = vunpack.c.h.b16 %v1953
        %v2243 = vunpack.c.l.b16 %v1954
        %v2244 = vunpack.c.h.b16 %v1954
        %v2245 = vunpack.c.l.b16 %v1955
        %v2246 = vunpack.c.h.b16 %v1955
        %v2247 = vunpack.c.l.b16 %v1956
        %v2248 = vunpack.c.h.b16 %v1956
        %v2249 = vunpack.c.l.b16 %v1957
        %v2250 = vunpack.c.h.b16 %v1957
        %v2251 = vunpack.c.l.b16 %v1958
        %v2252 = vunpack.c.h.b16 %v1958
        %v2253 = vunpack.c.l.b16 %v1959
        %v2254 = vunpack.c.h.b16 %v1959
        %v2255 = vunpack.c.l.b16 %v1960
        %v2256 = vunpack.c.h.b16 %v1960
        %v2257 = vunpack.c.l.b16 %v1961
        %v2258 = vunpack.c.h.b16 %v1961
        %v2259 = vunpack.c.l.b16 %v1962
        %v2260 = vunpack.c.h.b16 %v1962
        %v2261 = vunpack.c.l.b16 %v1963
        %v2262 = vunpack.c.h.b16 %v1963
        %v2263 = vunpack.c.l.b16 %v1964
        %v2264 = vunpack.c.h.b16 %v1964
        %v2265 = vunpack.c.l.b16 %v1965
        %v2266 = vunpack.c.h.b16 %v1965
        %v2267 = vunpack.c.l.b16 %v1966
        %v2268 = vunpack.c.h.b16 %v1966
        %v2269 = vunpack.c.l.b16 %v1967
        %v2270 = vunpack.c.h.b16 %v1967
        %v2271 = vunpack.c.l.b16 %v1968
        %v2272 = vunpack.c.h.b16 %v1968
        %v2273 = vunpack.c.l.b16 %v1969
        %v2274 = vunpack.c.h.b16 %v1969
        %v2275 = vunpack.c.l.b16 %v1970
        %v2276 = vunpack.c.h.b16 %v1970
        %v2277 = vunpack.c.l.b16 %v1971
        %v2278 = vunpack.c.h.b16 %v1971
        %v2279 = vunpack.c.l.b16 %v1972
        %v2280 = vunpack.c.h.b16 %v1972
        %v2281 = vunpack.c.l.b16 %v1973
        %v2282 = vunpack.c.h.b16 %v1973
        %v2283 = vunpack.c.l.b16 %v1974
        %v2284 = vunpack.c.h.b16 %v1974
        %v2285 = vunpack.c.l.b16 %v1975
        %v2286 = vunpack.c.h.b16 %v1975
        %v2287 = vunpack.c.l.b16 %v1976
        %v2288 = vunpack.c.h.b16 %v1976
        %v2289 = vunpack.c.l.b16 %v1977
        %v2290 = vunpack.c.h.b16 %v1977
        %v2291 = vunpack.c.l.b16 %v1978
        %v2292 = vunpack.c.h.b16 %v1978
        %v2293 = vunpack.c.l.b16 %v1979
        %v2294 = vunpack.c.h.b16 %v1979
        %v2295 = vunpack.c.l.b16 %v1980
        %v2296 = vunpack.c.h.b16 %v1980
        %v2297 = vunpack.c.l.b16 %v1981
        %v2298 = vunpack.c.h.b16 %v1981
        %v2299 = vunpack.c.l.b16 %v1982
        %v2300 = vunpack.c.h.b16 %v1982
        %v2301 = vunpack.c.l.b16 %v1983
        %v2302 = vunpack.c.h.b16 %v1983
        %v2303 = vunpack.c.l.b16 %v1984
        %v2304 = vunpack.c.h.b16 %v1984
        %v2305 = vunpack.c.l.b16 %v1985
        %v2306 = vunpack.c.h.b16 %v1985
        %v2307 = vunpack.c.l.b16 %v1986
        %v2308 = vunpack.c.h.b16 %v1986
        %v2309 = vunpack.c.l.b16 %v1987
        %v2310 = vunpack.c.h.b16 %v1987
        %v2311 = vunpack.c.l.b16 %v1988
        %v2312 = vunpack.c.h.b16 %v1988
        %v2313 = vunpack.c.l.b16 %v1989
        %v2314 = vunpack.c.h.b16 %v1989
        %v2315 = vunpack.c.l.b16 %v1990
        %v2316 = vunpack.c.h.b16 %v1990
        %v2317 = vunpack.c.l.b16 %v1991
        %v2318 = vunpack.c.h.b16 %v1991
        %v2319 = vunpack.c.l.b16 %v1992
        %v2320 = vunpack.c.h.b16 %v1992
        %v2321 = vunpack.c.l.b16 %v1993
        %v2322 = vunpack.c.h.b16 %v1993
        %v2323 = vunpack.c.l.b16 %v1994
        %v2324 = vunpack.c.h.b16 %v1994
        %v2325 = vunpack.c.l.b16 %v1995
        %v2326 = vunpack.c.h.b16 %v1995
        %v2327 = vunpack.c.l.b16 %v1996
        %v2328 = vunpack.c.h.b16 %v1996
        %v2329 = vunpack.c.l.b16 %v1997
        %v2330 = vunpack.c.h.b16 %v1997
        %v2331 = vunpack.c.l.b16 %v1998
        %v2332 = vunpack.c.h.b16 %v1998
        %v2333 = vunpack.c.l.b16 %v1999
        %v2334 = vunpack.c.h.b16 %v1999
        %v2335 = vunpack.c.l.b16 %v2000
        %v2336 = vunpack.c.h.b16 %v2000
        %v2337 = vunpack.c.l.b16 %v2001
        %v2338 = vunpack.c.h.b16 %v2001
        %v2339 = vunpack.c.l.b16 %v2002
        %v2340 = vunpack.c.h.b16 %v2002
        %v2341 = vunpack.c.l.b16 %v2003
        %v2342 = vunpack.c.h.b16 %v2003
        %v2343 = vunpack.c.l.b16 %v2004
        %v2344 = vunpack.c.h.b16 %v2004
        %v2345 = vunpack.c.l.b16 %v2005
        %v2346 = vunpack.c.h.b16 %v2005
        %v2347 = vunpack.c.l.b16 %v2006
        %v2348 = vunpack.c.h.b16 %v2006
        %v2349 = vunpack.c.l.b16 %v2007
        %v2350 = vunpack.c.h.b16 %v2007
        %v2351 = vunpack.c.l.b16 %v2008
        %v2352 = vunpack.c.h.b16 %v2008
        %v2353 = vunpack.c.l.b16 %v2009
        %v2354 = vunpack.c.h.b16 %v2009
        %v2355 = vunpack.c.l.b16 %v2010
        %v2356 = vunpack.c.h.b16 %v2010
        %v2357 = vunpack.c.l.b16 %v2011
        %v2358 = vunpack.c.h.b16 %v2011
        %v2359 = vunpack.c.l.b16 %v2012
        %v2360 = vunpack.c.h.b16 %v2012
        %v2361 = vunpack.c.l.b16 %v2013
        %v2362 = vunpack.c.h.b16 %v2013
        %v2363 = vunpack.c.l.b16 %v2014
        %v2364 = vunpack.c.h.b16 %v2014
        %v2365 = vunpack.c.l.b16 %v2015
        %v2366 = vunpack.c.h.b16 %v2015
        %v2367 = vunpack.c.l.b16 %v2016
        %v2368 = vunpack.c.h.b16 %v2016
        %v2369 = vunpack.c.l.b16 %v2017
        %v2370 = vunpack.c.h.b16 %v2017
        %v2371 = vunpack.c.l.b16 %v2018
        %v2372 = vunpack.c.h.b16 %v2018
        %v2373 = vunpack.c.l.b16 %v2019
        %v2374 = vunpack.c.h.b16 %v2019
        %v2375 = vunpack.c.l.b16 %v2020
        %v2376 = vunpack.c.h.b16 %v2020
        %v2377 = vunpack.c.l.b16 %v2021
        %v2378 = vunpack.c.h.b16 %v2021
        %v2379 = vunpack.c.l.b16 %v2022
        %v2380 = vunpack.c.h.b16 %v2022
        %v2381 = vunpack.c.l.b16 %v2023
        %v2382 = vunpack.c.h.b16 %v2023
        %v2383 = vunpack.c.l.b16 %v2024
        %v2384 = vunpack.c.h.b16 %v2024
        %v2385 = vunpack.c.l.b16 %v2025
        %v2386 = vunpack.c.h.b16 %v2025
        %v2387 = vunpack.c.l.b16 %v2026
        %v2388 = vunpack.c.h.b16 %v2026
        %v2389 = vunpack.c.l.b16 %v2027
        %v2390 = vunpack.c.h.b16 %v2027
        %v2391 = vunpack.c.l.b16 %v2028
        %v2392 = vunpack.c.h.b16 %v2028
        %v2393 = vunpack.c.l.b16 %v2029
        %v2394 = vunpack.c.h.b16 %v2029
        %v2395 = vunpack.c.l.b16 %v2030
        %v2396 = vunpack.c.h.b16 %v2030
        %v2397 = vunpack.c.l.b16 %v2031
        %v2398 = vunpack.c.h.b16 %v2031
        %v2399 = vunpack.c.l.b16 %v2032
        %v2400 = vunpack.c.h.b16 %v2032
        %v2401 = vunpack.c.l.b16 %v2033
        %v2402 = vunpack.c.h.b16 %v2033
        %v2403 = vunpack.c.l.b16 %v2034
        %v2404 = vunpack.c.h.b16 %v2034
        %v2405 = vunpack.c.l.b16 %v2035
        %v2406 = vunpack.c.h.b16 %v2035
        %v2407 = vunpack.c.l.b16 %v2036
        %v2408 = vunpack.c.h.b16 %v2036
        %v2409 = vunpack.c.l.b16 %v2037
        %v2410 = vunpack.c.h.b16 %v2037
        %v2411 = vunpack.c.l.b16 %v2038
        %v2412 = vunpack.c.h.b16 %v2038
        %v2413 = vunpack.c.l.b16 %v2039
        %v2414 = vunpack.c.h.b16 %v2039
        %v2415 = vunpack.c.l.b16 %v2040
        %v2416 = vunpack.c.h.b16 %v2040
        %v2417 = vunpack.c.l.b16 %v2041
        %v2418 = vunpack.c.h.b16 %v2041
        %v2419 = vunpack.c.l.b16 %v2042
        %v2420 = vunpack.c.h.b16 %v2042
        %v2421 = vunpack.c.l.b16 %v2043
        %v2422 = vunpack.c.h.b16 %v2043
        %v2423 = vunpack.c.l.b16 %v2044
        %v2424 = vunpack.c.h.b16 %v2044
        %v2425 = vunpack.c.l.b16 %v2045
        %v2426 = vunpack.c.h.b16 %v2045
        %v2427 = vunpack.c.l.b16 %v2046
        %v2428 = vunpack.c.h.b16 %v2046
        %v2429 = vunpack.c.l.b16 %v2047
        %v2430 = vunpack.c.h.b16 %v2047
        %v2431 = vunpack.c.l.b16 %v2048
        %v2432 = vunpack.c.h.b16 %v2048
        %v2433 = vunpack.c.l.b16 %v2049
        %v2434 = vunpack.c.h.b16 %v2049
        %v2435 = vunpack.c.l.b16 %v2050
        %v2436 = vunpack.c.h.b16 %v2050
        %v2437 = vunpack.c.l.b16 %v2051
        %v2438 = vunpack.c.h.b16 %v2051
        %v2439 = vunpack.c.l.b16 %v2052
        %v2440 = vunpack.c.h.b16 %v2052
        %v2441 = vunpack.c.l.b16 %v2053
        %v2442 = vunpack.c.h.b16 %v2053
        %v2443 = vunpack.c.l.b16 %v2054
        %v2444 = vunpack.c.h.b16 %v2054
        %v2445 = vunpack.c.l.b16 %v2055
        %v2446 = vunpack.c.h.b16 %v2055
        %v2447 = vunpack.c.l.b16 %v2056
        %v2448 = vunpack.c.h.b16 %v2056
        %v2449 = vunpack.c.l.b16 %v2057
        %v2450 = vunpack.c.h.b16 %v2057
        %v2451 = vunpack.c.l.b16 %v2058
        %v2452 = vunpack.c.h.b16 %v2058
        %v2453 = vunpack.c.l.b16 %v2059
        %v2454 = vunpack.c.h.b16 %v2059
        %v2455 = vunpack.c.l.b16 %v2060
        %v2456 = vunpack.c.h.b16 %v2060
        %v2457 = vpack.c.b16 %v2209, %v2205
        %v2458 = vpack.c.b16 %v2210, %v2206
        %v2459 = vpack.c.b16 %v2211, %v2207
        %v2460 = vpack.c.b16 %v2212, %v2208
        %v2461 = vpack.c.b16 %v2217, %v2213
        %v2462 = vpack.c.b16 %v2218, %v2214
        %v2463 = vpack.c.b16 %v2219, %v2215
        %v2464 = vpack.c.b16 %v2220, %v2216
        %v2465 = vpack.c.b16 %v2225, %v2221
        %v2466 = vpack.c.b16 %v2226, %v2222
        %v2467 = vpack.c.b16 %v2227, %v2223
        %v2468 = vpack.c.b16 %v2228, %v2224
        %v2469 = vpack.c.b16 %v2233, %v2229
        %v2470 = vpack.c.b16 %v2234, %v2230
        %v2471 = vpack.c.b16 %v2235, %v2231
        %v2472 = vpack.c.b16 %v2236, %v2232
        %v2473 = vpack.c.b16 %v2241, %v2237
        %v2474 = vpack.c.b16 %v2242, %v2238
        %v2475 = vpack.c.b16 %v2243, %v2239
        %v2476 = vpack.c.b16 %v2244, %v2240
        %v2477 = vpack.c.b16 %v2249, %v2245
        %v2478 = vpack.c.b16 %v2250, %v2246
        %v2479 = vpack.c.b16 %v2251, %v2247
        %v2480 = vpack.c.b16 %v2252, %v2248
        %v2481 = vpack.c.b16 %v2257, %v2253
        %v2482 = vpack.c.b16 %v2258, %v2254
        %v2483 = vpack.c.b16 %v2259, %v2255
        %v2484 = vpack.c.b16 %v2260, %v2256
        %v2485 = vpack.c.b16 %v2265, %v2261
        %v2486 = vpack.c.b16 %v2266, %v2262
        %v2487 = vpack.c.b16 %v2267, %v2263
        %v2488 = vpack.c.b16 %v2268, %v2264
        %v2489 = vpack.c.b16 %v2273, %v2269
        %v2490 = vpack.c.b16 %v2274, %v2270
        %v2491 = vpack.c.b16 %v2275, %v2271
        %v2492 = vpack.c.b16 %v2276, %v2272
        %v2493 = vpack.c.b16 %v2281, %v2277
        %v2494 = vpack.c.b16 %v2282, %v2278
        %v2495 = vpack.c.b16 %v2283, %v2279
        %v2496 = vpack.c.b16 %v2284, %v2280
        %v2497 = vpack.c.b16 %v2289, %v2285
        %v2498 = vpack.c.b16 %v2290, %v2286
        %v2499 = vpack.c.b16 %v2291, %v2287
        %v2500 = vpack.c.b16 %v2292, %v2288
        %v2501 = vpack.c.b16 %v2297, %v2293
        %v2502 = vpack.c.b16 %v2298, %v2294
        %v2503 = vpack.c.b16 %v2299, %v2295
        %v2504 = vpack.c.b16 %v2300, %v2296
        %v2505 = vpack.c.b16 %v2305, %v2301
        %v2506 = vpack.c.b16 %v2306, %v2302
        %v2507 = vpack.c.b16 %v2307, %v2303
        %v2508 = vpack.c.b16 %v2308, %v2304
        %v2509 = vpack.c.b16 %v2313, %v2309
        %v2510 = vpack.c.b16 %v2314, %v2310
        %v2511 = vpack.c.b16 %v2315, %v2311
        %v2512 = vpack.c.b16 %v2316, %v2312
        %v2513 = vpack.c.b16 %v2321, %v2317
        %v2514 = vpack.c.b16 %v2322, %v2318
        %v2515 = vpack.c.b16 %v2323, %v2319
        %v2516 = vpack.c.b16 %v2324, %v2320
        %v2517 = vpack.c.b16 %v2329, %v2325
        %v2518 = vpack.c.b16 %v2330, %v2326
        %v2519 = vpack.c.b16 %v2331, %v2327
        %v2520 = vpack.c.b16 %v2332, %v2328
        %v2521 = vpack.c.b16 %v2337, %v2333
        %v2522 = vpack.c.b16 %v2338, %v2334
        %v2523 = vpack.c.b16 %v2339, %v2335
        %v2524 = vpack.c.b16 %v2340, %v2336
        %v2525 = vpack.c.b16 %v2345, %v2341
        %v2526 = vpack.c.b16 %v2346, %v2342
        %v2527 = vpack.c.b16 %v2347, %v2343
        %v2528 = vpack.c.b16 %v2348, %v2344
        %v2529 = vpack.c.b16 %v2353, %v2349
        %v2530 = vpack.c.b16 %v2354, %v2350
        %v2531 = vpack.c.b16 %v2355, %v2351
        %v2532 = vpack.c.b16 %v2356, %v2352
        %v2533 = vpack.c.b16 %v2361, %v2357
        %v2534 = vpack.c.b16 %v2362, %v2358
        %v2535 = vpack.c.b16 %v2363, %v2359
        %v2536 = vpack.c.b16 %v2364, %v2360
        %v2537 = vpack.c.b16 %v2369, %v2365
        %v2538 = vpack.c.b16 %v2370, %v2366
        %v2539 = vpack.c.b16 %v2371, %v2367
        %v2540 = vpack.c.b16 %v2372, %v2368
        %v2541 = vpack.c.b16 %v2377, %v2373
        %v2542 = vpack.c.b16 %v2378, %v2374
        %v2543 = vpack.c.b16 %v2379, %v2375
        %v2544 = vpack.c.b16 %v2380, %v2376
        %v2545 = vpack.c.b16 %v2385, %v2381
        %v2546 = vpack.c.b16 %v2386, %v2382
        %v2547 = vpack.c.b16 %v2387, %v2383
        %v2548 = vpack.c.b16 %v2388, %v2384
        %v2549 = vpack.c.b16 %v2393, %v2389
        %v2550 = vpack.c.b16 %v2394, %v2390
        %v2551 = vpack.c.b16 %v2395, %v2391
        %v2552 = vpack.c.b16 %v2396, %v2392
        %v2553 = vpack.c.b16 %v2401, %v2397
        %v2554 = vpack.c.b16 %v2402, %v2398
        %v2555 = vpack.c.b16 %v2403, %v2399
        %v2556 = vpack.c.b16 %v2404, %v2400
        %v2557 = vpack.c.b16 %v2409, %v2405
        %v2558 = vpack.c.b16 %v2410, %v2406
        %v2559 = vpack.c.b16 %v2411, %v2407
        %v2560 = vpack.c.b16 %v2412, %v2408
        %v2561 = vpack.c.b16 %v2417, %v2413
        %v2562 = vpack.c.b16 %v2418, %v2414
        %v2563 = vpack.c.b16 %v2419, %v2415
        %v2564 = vpack.c.b16 %v2420, %v2416
        %v2565 = vpack.c.b16 %v2425, %v2421
        %v2566 = vpack.c.b16 %v2426, %v2422
        %v2567 = vpack.c.b16 %v2427, %v2423
        %v2568 = vpack.c.b16 %v2428, %v2424
        %v2569 = vpack.c.b16 %v2433, %v2429
        %v2570 = vpack.c.b16 %v2434, %v2430
        %v2571 = vpack.c.b16 %v2435, %v2431
        %v2572 = vpack.c.b16 %v2436, %v2432
        %v2573 = vpack.c.b16 %v2441, %v2437
        %v2574 = vpack.c.b16 %v2442, %v2438
        %v2575 = vpack.c.b16 %v2443, %v2439
        %v2576 = vpack.c.b16 %v2444, %v2440
        %v2577 = vpack.c.b16 %v2449, %v2445
        %v2578 = vpack.c.b16 %v2450, %v2446
        %v2579 = vpack.c.b16 %v2451, %v2447
        %v2580 = vpack.c.b16 %v2452, %v2448
        %v2581 = vpack.c.b16 %v2453, %v2453
        %v2582 = vpack.c.b16 %v2454, %v2454
        %v2583 = vpack.c.b16 %v2455, %v2455
        %v2584 = vpack.c.b16 %v2456, %v2456
        %vm2709 = vcmask 949248
        %v2711 = vsel %vm2709, %v2075, 0
        %v2714 = vsel %vm201, %v2581, 0
        %v2717 = vsel %vm201, %v2582, 0
        %v2720 = vsel %vm201, %v2583, 0
        %v2723 = vsel %vm201, %v2584, 0
        %2725 = vmatprep.subr.bf16.mxu0 %v2458
        %2726 = vmatpush1.bf16.msra.mxu0 %v2457
        %2727 = vmatprep.subr.bf16.mxu0 %v2462
        %2728 = vmatpush1.bf16.msra.mxu0 %v2461
        %2729 = vmatprep.subr.bf16.mxu0 %v2466
        %2730 = vmatpush1.bf16.msra.mxu0 %v2465
        %2731 = vmatprep.subr.bf16.mxu0 %v2470
        %2732 = vmatpush1.bf16.msra.mxu0 %v2469
        %2733 = vmatprep.subr.bf16.mxu0 %v2474
        %2734 = vmatpush1.bf16.msra.mxu0 %v2473
        %2735 = vmatprep.subr.bf16.mxu0 %v2478
        %2736 = vmatpush1.bf16.msra.mxu0 %v2477
        %2737 = vmatprep.subr.bf16.mxu0 %v2482
        %2738 = vmatpush1.bf16.msra.mxu0 %v2481
        %2739 = vmatprep.subr.bf16.mxu0 %v2486
        %2740 = vmatpush1.bf16.msra.mxu0 %v2485
        %2741 = vmatprep.subr.bf16.mxu0 %v2490
        %2742 = vmatpush1.bf16.msra.mxu0 %v2489
        %2743 = vmatprep.subr.bf16.mxu0 %v2494
        %2744 = vmatpush1.bf16.msra.mxu0 %v2493
        %2745 = vmatprep.subr.bf16.mxu0 %v2498
        %2746 = vmatpush1.bf16.msra.mxu0 %v2497
        %2747 = vmatprep.subr.bf16.mxu0 %v2502
        %2748 = vmatpush1.bf16.msra.mxu0 %v2501
        %2749 = vmatprep.subr.bf16.mxu0 %v2506
        %2750 = vmatpush1.bf16.msra.mxu0 %v2505
        %2751 = vmatprep.subr.bf16.mxu0 %v2510
        %2752 = vmatpush1.bf16.msra.mxu0 %v2509
        %2753 = vmatprep.subr.bf16.mxu0 %v2514
        %2754 = vmatpush1.bf16.msra.mxu0 %v2513
        %2755 = vmatprep.subr.bf16.mxu0 %v2518
        %2756 = vmatpush1.bf16.msra.mxu0 %v2517
        %2757 = vmatprep.mubr.bf16.mxu0 %v2073
        %2758 = vmatmul.mubr.bf16.gmra.mrb[0].mxu0 %v2072
        %v2759 = vpop.f32.mrb[0].mxu0
        %v2760 = vadd.f32 %v2064, %v2759
        %v2761 = vpop.f32.mrb[0].mxu0
        %v2762 = vadd.f32 %v2064, %v2761
        %v2763 = vpop.f32.mrb[0].mxu0
        %v2764 = vpop.f32.mrb[0].mxu0
        %2765 = vdwg.mxu0
        %2766 = vmatprep.subr.bf16.mxu0 %v2522
        %2767 = vmatpush1.bf16.msra.mxu0 %v2521
        %2768 = vmatprep.subr.bf16.mxu0 %v2526
        %2769 = vmatpush1.bf16.msra.mxu0 %v2525
        %2770 = vmatprep.subr.bf16.mxu0 %v2530
        %2771 = vmatpush1.bf16.msra.mxu0 %v2529
        %2772 = vmatprep.subr.bf16.mxu0 %v2534
        %2773 = vmatpush1.bf16.msra.mxu0 %v2533
        %2774 = vmatprep.subr.bf16.mxu0 %v2538
        %2775 = vmatpush1.bf16.msra.mxu0 %v2537
        %2776 = vmatprep.subr.bf16.mxu0 %v2542
        %2777 = vmatpush1.bf16.msra.mxu0 %v2541
        %2778 = vmatprep.subr.bf16.mxu0 %v2546
        %2779 = vmatpush1.bf16.msra.mxu0 %v2545
        %2780 = vmatprep.subr.bf16.mxu0 %v2550
        %2781 = vmatpush1.bf16.msra.mxu0 %v2549
        %2782 = vmatprep.subr.bf16.mxu0 %v2554
        %2783 = vmatpush1.bf16.msra.mxu0 %v2553
        %2784 = vmatprep.subr.bf16.mxu0 %v2558
        %2785 = vmatpush1.bf16.msra.mxu0 %v2557
        %2786 = vmatprep.subr.bf16.mxu0 %v2562
        %2787 = vmatpush1.bf16.msra.mxu0 %v2561
        %2788 = vmatprep.subr.bf16.mxu0 %v2566
        %2789 = vmatpush1.bf16.msra.mxu0 %v2565
        %2790 = vmatprep.subr.bf16.mxu0 %v2570
        %2791 = vmatpush1.bf16.msra.mxu0 %v2569
        %2792 = vmatprep.subr.bf16.mxu0 %v2574
        %2793 = vmatpush1.bf16.msra.mxu0 %v2573
        %2794 = vmatprep.subr.bf16.mxu0 %v2578
        %2795 = vmatpush1.bf16.msra.mxu0 %v2577
        %2796 = vmatprep.subr.bf16.mxu0 %v2717
        %2797 = vmatpush1.bf16.msra.mxu0 %v2714
        %2798 = vmatprep.mubr.bf16.mxu0 %v2711
        %2799 = vmatmul.mubr.bf16.gmra.mrb[0].mxu0 %v2074
        %v2800 = vpop.f32.mrb[0].mxu0
        %v2801 = vadd.f32 %v2760, %v2800
        %v2802 = vpop.f32.mrb[0].mxu0
        %v2803 = vadd.f32 %v2762, %v2802
        %v2804 = vpop.f32.mrb[0].mxu0
        %v2805 = vpop.f32.mrb[0].mxu0
        %2806 = vdwg.mxu0
        %2807 = vmatprep.subr.bf16.mxu0 %v2460
        %2808 = vmatpush1.bf16.msra.mxu0 %v2459
        %2809 = vmatprep.subr.bf16.mxu0 %v2464
        %2810 = vmatpush1.bf16.msra.mxu0 %v2463
        %2811 = vmatprep.subr.bf16.mxu0 %v2468
        %2812 = vmatpush1.bf16.msra.mxu0 %v2467
        %2813 = vmatprep.subr.bf16.mxu0 %v2472
        %2814 = vmatpush1.bf16.msra.mxu0 %v2471
        %2815 = vmatprep.subr.bf16.mxu0 %v2476
        %2816 = vmatpush1.bf16.msra.mxu0 %v2475
        %2817 = vmatprep.subr.bf16.mxu0 %v2480
        %2818 = vmatpush1.bf16.msra.mxu0 %v2479
        %2819 = vmatprep.subr.bf16.mxu0 %v2484
        %2820 = vmatpush1.bf16.msra.mxu0 %v2483
        %2821 = vmatprep.subr.bf16.mxu0 %v2488
        %2822 = vmatpush1.bf16.msra.mxu0 %v2487
        %2823 = vmatprep.subr.bf16.mxu0 %v2492
        %2824 = vmatpush1.bf16.msra.mxu0 %v2491
        %2825 = vmatprep.subr.bf16.mxu0 %v2496
        %2826 = vmatpush1.bf16.msra.mxu0 %v2495
        %2827 = vmatprep.subr.bf16.mxu0 %v2500
        %2828 = vmatpush1.bf16.msra.mxu0 %v2499
        %2829 = vmatprep.subr.bf16.mxu0 %v2504
        %2830 = vmatpush1.bf16.msra.mxu0 %v2503
        %2831 = vmatprep.subr.bf16.mxu0 %v2508
        %2832 = vmatpush1.bf16.msra.mxu0 %v2507
        %2833 = vmatprep.subr.bf16.mxu0 %v2512
        %2834 = vmatpush1.bf16.msra.mxu0 %v2511
        %2835 = vmatprep.subr.bf16.mxu0 %v2516
        %2836 = vmatpush1.bf16.msra.mxu0 %v2515
        %2837 = vmatprep.subr.bf16.mxu0 %v2520
        %2838 = vmatpush1.bf16.msra.mxu0 %v2519
        %2839 = vmatprep.mubr.bf16.mxu0 %v2073
        %2840 = vmatmul.mubr.bf16.gmra.mrb[0].mxu0 %v2072
        %v2841 = vpop.f32.mrb[0].mxu0
        %v2842 = vadd.f32 %v2064, %v2841
        %v2843 = vpop.f32.mrb[0].mxu0
        %v2844 = vpop.f32.mrb[0].mxu0
        %v2845 = vpop.f32.mrb[0].mxu0
        %2846 = vdwg.mxu0
        %2847 = vmatprep.subr.bf16.mxu0 %v2524
        %2848 = vmatpush1.bf16.msra.mxu0 %v2523
        %2849 = vmatprep.subr.bf16.mxu0 %v2528
        %2850 = vmatpush1.bf16.msra.mxu0 %v2527
        %2851 = vmatprep.subr.bf16.mxu0 %v2532
        %2852 = vmatpush1.bf16.msra.mxu0 %v2531
        %2853 = vmatprep.subr.bf16.mxu0 %v2536
        %2854 = vmatpush1.bf16.msra.mxu0 %v2535
        %2855 = vmatprep.subr.bf16.mxu0 %v2540
        %2856 = vmatpush1.bf16.msra.mxu0 %v2539
        %2857 = vmatprep.subr.bf16.mxu0 %v2544
        %2858 = vmatpush1.bf16.msra.mxu0 %v2543
        %2859 = vmatprep.subr.bf16.mxu0 %v2548
        %2860 = vmatpush1.bf16.msra.mxu0 %v2547
        %2861 = vmatprep.subr.bf16.mxu0 %v2552
        %2862 = vmatpush1.bf16.msra.mxu0 %v2551
        %2863 = vmatprep.subr.bf16.mxu0 %v2556
        %2864 = vmatpush1.bf16.msra.mxu0 %v2555
        %2865 = vmatprep.subr.bf16.mxu0 %v2560
        %2866 = vmatpush1.bf16.msra.mxu0 %v2559
        %2867 = vmatprep.subr.bf16.mxu0 %v2564
        %2868 = vmatpush1.bf16.msra.mxu0 %v2563
        %2869 = vmatprep.subr.bf16.mxu0 %v2568
        %2870 = vmatpush1.bf16.msra.mxu0 %v2567
        %2871 = vmatprep.subr.bf16.mxu0 %v2572
        %2872 = vmatpush1.bf16.msra.mxu0 %v2571
        %2873 = vmatprep.subr.bf16.mxu0 %v2576
        %2874 = vmatpush1.bf16.msra.mxu0 %v2575
        %2875 = vmatprep.subr.bf16.mxu0 %v2580
        %2876 = vmatpush1.bf16.msra.mxu0 %v2579
        %2877 = vmatprep.subr.bf16.mxu0 %v2723
        %2878 = vmatpush1.bf16.msra.mxu0 %v2720
        %2879 = vmatprep.mubr.bf16.mxu0 %v2711
        %2880 = vmatmul.mubr.bf16.gmra.mrb[0].mxu0 %v2074
        %v2881 = vpop.f32.mrb[0].mxu0
        %v2882 = vadd.f32 %v2842, %v2881
        %v2883 = vpop.f32.mrb[0].mxu0
        %v2884 = vpop.f32.mrb[0].mxu0
        %v2885 = vpop.f32.mrb[0].mxu0
        %2886 = vdwg.mxu0
        %v2887 = vmax.f32 %v2801, 0.0
        %v2888 = vmax.f32 %v2803, 0.0
        %v2889 = vmax.f32 %v2882, 0.0
        %2891 = vrot.lane.b32.xlu0 %v2887, 124
        %v2892 = vpop.permute.xlu0 %2891
        %2894 = vrot.lane.b32.xlu0 %v2887, 120
        %v2895 = vpop.permute.xlu0 %2894
        %2897 = vrot.lane.b32.xlu0 %v2887, 116
        %v2898 = vpop.permute.xlu0 %2897
        %2900 = vrot.lane.b32.xlu0 %v2887, 112
        %v2901 = vpop.permute.xlu0 %2900
        %2903 = vrot.lane.b32.xlu0 %v2887, 108
        %v2904 = vpop.permute.xlu0 %2903
        %2907 = vrot.lane.b32.xlu0 %v2887, 104
        %v2908 = vpop.permute.xlu0 %2907
        %2909 = vrot.lane.b32.xlu0 %v2888, 104
        %v2910 = vpop.permute.xlu0 %2909
        %vm2911 = vcmask 850944
        %v2912 = vsel %vm2911, %v2908, %v2910
        %2914 = vrot.lane.b32.xlu0 %v2888, 100
        %v2915 = vpop.permute.xlu0 %2914
        %2917 = vrot.lane.b32.xlu0 %v2888, 96
        %v2918 = vpop.permute.xlu0 %2917
        %2920 = vrot.lane.b32.xlu0 %v2888, 92
        %v2921 = vpop.permute.xlu0 %2920
        %2923 = vrot.lane.b32.xlu0 %v2888, 88
        %v2924 = vpop.permute.xlu0 %2923
        %2926 = vrot.lane.b32.xlu0 %v2888, 84
        %v2927 = vpop.permute.xlu0 %2926
        %2929 = vrot.lane.b32.xlu0 %v2888, 80
        %v2930 = vpop.permute.xlu0 %2929
        %2933 = vrot.lane.b32.xlu0 %v2889, 76
        %v2934 = vpop.permute.xlu0 %2933
        %2936 = vrot.lane.b32.xlu0 %v2889, 72
        %v2937 = vpop.permute.xlu0 %2936
        %2939 = vrot.lane.b32.xlu0 %v2889, 68
        %v2940 = vpop.permute.xlu0 %2939
        %vm2942 = vcmask 130048
        %v2943 = vsel %vm2942, %v2887, %v2892
        %vm2944 = vcmask 261120
        %v2945 = vsel %vm2944, %v2943, %v2895
        %vm2946 = vcmask 392192
        %v2947 = vsel %vm2946, %v2945, %v2898
        %vm2948 = vcmask 523264
        %v2949 = vsel %vm2948, %v2947, %v2901
        %vm2950 = vcmask 654336
        %v2951 = vsel %vm2950, %v2949, %v2904
        %vm2952 = vcmask 785408
        %v2953 = vsel %vm2952, %v2951, %v2912
        %vm2954 = vcmask 916480
        %v2955 = vsel %vm2954, %v2953, %v2915
        %v2956 = vsel %vm2942, %v2918, %v2921
        %v2957 = vsel %vm2944, %v2956, %v2924
        %v2958 = vsel %vm2946, %v2957, %v2927
        %v2959 = vsel %vm2948, %v2958, %v2930
        %v2960 = vsel %vm2950, %v2959, %v2934
        %v2961 = vsel %vm2952, %v2960, %v2937
        %v2962 = vsel %vm2954, %v2961, %v2940
        %s2963 = smul.u32 %s173, 256
        %s2964 = sshra.s32 %s2963, 7
        %s2965 = sand.u32 %s2963, 127
        %s2966 = smul.addr %s2964, 8
        %s2967 = scalar_lea.vmem %s170, %s2966
        %2968 = vst [vmem:[%s2967] sm:$0xff] %v2955
        %2969 = vst [vmem:[%s2967 + $0x8] sm:$0xff] %v2962
      $region37: #{input_block_forward.1} parent=31 // loop_footer
        %s177 = sadd.s32 1, %s173
      $region38: #{input_block_forward.1} parent=31 // loop_footer_branch
        %172 = sbr.rel target = $region34
      $region39: #{input_block_forward.1} parent=31 // loop_exit
        _
      %p2970 = scmp.lt.s32.totalorder %s14, 1
      %s2971 = scalar_select %p2970, %s14, 1
      %s2972 = smul.addr %s2971, 32
      %s2973 = smul.addr %s2972, 8
      %s2974 = scalar_lea.vmem %s3, %s2973
      // Predicated region
      $region40: #{input_block_forward.1} parent=31 // pred_check
        %p2975 = pneg %p100
      $region41: #{input_block_forward.1} parent=31 // pred_check_branch
        %2977 = sbr.rel (%p2975) target = $region43
      $region42: #{input_block_forward.1} parent=31 // pred_region
        _
      $region43: #{input_block_forward.1} parent=31 // pred_fallthru
        _
    $region32: #{input_block_forward.1} parent=5 // pred_fallthru
      _
    %p2978 = scmp.le.s32.totalorder 2, %s9
    // Predicated region
    $region44: #{input_block_forward.1} parent=5 // pred_check
      %p2979 = pneg %p2978
    $region45: #{input_block_forward.1} parent=5 // pred_check_branch
      %2981 = sbr.rel (%p2979) target = $region47
    $region46: #{input_block_forward.1} parent=5 // pred_region
      %s2982 = ssub.s32 %s9, 2
      // Predicated region
      $region48: #{input_block_forward.1} parent=46 // pred_check
        %p2983 = pneg %p106
      $region49: #{input_block_forward.1} parent=46 // pred_check_branch
        %2985 = sbr.rel (%p2983) target = $region51
      $region50: #{input_block_forward.1} parent=46 // pred_region
        %p2986 = scmp.lt.s32.totalorder %s15, 1
        %s2987 = scalar_select %p2986, %s15, 1
        %s2988 = smul.addr %s2987, 32
        %s2989 = smul.addr %s2988, 8
        %s2990 = scalar_lea.vmem %s3, %s2989
      $region51: #{input_block_forward.1} parent=46 // pred_fallthru
        _
    $region47: #{input_block_forward.1} parent=5 // pred_fallthru
      _
  $region6: #{input_block_forward.1} parent=0 // loop_footer
    %s13 = sadd.s32 1, %s9
  $region7: #{input_block_forward.1} parent=0 // loop_footer_branch
    %8 = sbr.rel target = $region3
  $region8: #{input_block_forward.1} parent=0 // loop_exit
    _

</llo_original>
